<compile_context>
chip_gen: v5e
topology: v5e:2x2
jax: 0.10.0
libtpu: 0.0.40
codegen_flags: <defaults>
</compile_context>

<pallas_src>
import math
import functools

import numpy as np
import jax
import jax.numpy as jnp
from jax.experimental import pallas as pl
from jax.experimental.pallas import tpu as pltpu


# ----------------------------------------------------------------------------
# Fused Pallas kernel: nlayers x TransformerEncoderLayer  +  flatten  +  fc
# ----------------------------------------------------------------------------
def transformer_kernel(x_ref,
                       wq_ref, wk_ref, wv_ref, bq_ref, bk_ref, bv_ref,
                       wo_ref, bo_ref, g1_ref, be1_ref,
                       w1_ref, b1_ref, w2_ref, b2_ref, g2_ref, be2_ref,
                       fcw_ref, fcb_ref,
                       o_ref, *, nhead, nlayers):
    B, S, D = x_ref.shape
    Dh = D // nhead
    scale = 1.0 / math.sqrt(Dh)
    BS = B * S
    Cpad = o_ref.shape[1]

    x2 = x_ref[...].reshape(BS, D)                      # fp32 activations (B*S, D)

    for l in range(nlayers):                            # static unroll over layers
        # --- self attention (QKV over the whole batch) --------------------
        xb = x2.astype(jnp.bfloat16)
        q = jnp.dot(xb, wq_ref[l], preferred_element_type=jnp.float32) + bq_ref[l]
        k = jnp.dot(xb, wk_ref[l], preferred_element_type=jnp.float32) + bk_ref[l]
        v = jnp.dot(xb, wv_ref[l], preferred_element_type=jnp.float32) + bv_ref[l]

        q3 = q.reshape(B, S, D).astype(jnp.bfloat16)
        k3 = k.reshape(B, S, D).astype(jnp.bfloat16)
        v3 = v.reshape(B, S, D).astype(jnp.bfloat16)
        wo_l = wo_ref[l]                                # (D, D) fp32

        acc = jnp.zeros((BS, D), jnp.float32)
        for h in range(nhead):                          # static unroll over heads
            lo = h * Dh
            qh = q3[:, :, lo:lo + Dh]                   # (B, S, Dh)
            kh = k3[:, :, lo:lo + Dh]
            vh = v3[:, :, lo:lo + Dh]
            sc = jnp.einsum('bqd,bkd->bqk', qh, kh,
                            preferred_element_type=jnp.float32) * scale
            sc = sc - jnp.max(sc, axis=-1, keepdims=True)
            pr = jnp.exp(sc)
            pr = pr * pl.reciprocal(jnp.sum(pr, axis=-1, keepdims=True), approx=True)
            oh = jnp.einsum('bqk,bkd->bqd', pr.astype(jnp.bfloat16), vh,
                            preferred_element_type=jnp.float32)      # (B, S, Dh)
            # concat(head_h) @ Wo  ==  sum_h head_h @ Wo[h*Dh:(h+1)*Dh, :]
            acc = acc + jnp.dot(oh.reshape(BS, Dh).astype(jnp.bfloat16),
                                wo_l[lo:lo + Dh, :].astype(jnp.bfloat16),
                                preferred_element_type=jnp.float32)
        attn = acc + bo_ref[l]

        # --- residual + LayerNorm 1 (fp32) --------------------------------
        y = x2 + attn
        mu = jnp.mean(y, axis=-1, keepdims=True)
        var = jnp.mean((y - mu) ** 2, axis=-1, keepdims=True)
        y = (y - mu) * jax.lax.rsqrt(var + 1e-5) * g1_ref[l] + be1_ref[l]

        # --- feed-forward (ReLU) -------------------------------------------
        h1 = jnp.dot(y.astype(jnp.bfloat16), w1_ref[l],
                     preferred_element_type=jnp.float32) + b1_ref[l]
        h1 = jnp.maximum(h1, 0.0)
        f = jnp.dot(h1.astype(jnp.bfloat16), w2_ref[l],
                    preferred_element_type=jnp.float32) + b2_ref[l]

        # --- residual + LayerNorm 2 (fp32) ---------------------------------
        z = y + f
        mu2 = jnp.mean(z, axis=-1, keepdims=True)
        var2 = jnp.mean((z - mu2) ** 2, axis=-1, keepdims=True)
        x2 = (z - mu2) * jax.lax.rsqrt(var2 + 1e-5) * g2_ref[l] + be2_ref[l]

    # --- fused flatten + fc, lane-dense (Cpad = 128) output -----------------
    # out[b, :] = sum_s x[b, s, :] @ fc_w[s*D:(s+1)*D, :]  (== flatten then fc)
    x3 = x2.reshape(B, S, D)
    acc = jnp.zeros((B, Cpad), jnp.float32)
    for s_idx in range(S):                              # static unroll over positions
        acc = acc + jnp.dot(x3[:, s_idx, :].astype(jnp.bfloat16), fcw_ref[s_idx],
                            preferred_element_type=jnp.float32)
    o_ref[...] = acc + fcb_ref[...]


# ----------------------------------------------------------------------------
# Wrapper
# ----------------------------------------------------------------------------
def transformer_pallas(x, p, *, nhead, nlayers):
    B, S, D = x.shape
    Dff = p["w1"].shape[2]
    Cpad = p["fc_w3"].shape[2]
    L = nlayers

    def full(shape):
        return pl.BlockSpec(shape, lambda i, _n=len(shape): (0,) * _n)

    in_specs = [
        full((B, S, D)),                                        # x
        full((L, D, D)), full((L, D, D)), full((L, D, D)),      # wq, wk, wv (bf16)
        full((L, 1, D)), full((L, 1, D)), full((L, 1, D)),      # bq, bk, bv
        full((L, D, D)), full((L, 1, D)),                       # wo (fp32), bo
        full((L, 1, D)), full((L, 1, D)),                       # ln1 gamma, beta
        full((L, D, Dff)), full((L, 1, Dff)),                   # w1 (bf16), b1
        full((L, Dff, D)), full((L, 1, D)),                     # w2 (bf16), b2
        full((L, 1, D)), full((L, 1, D)),                       # ln2 gamma, beta
        full((S, D, Cpad)), full((1, Cpad)),                    # fc_w (bf16), fc_b
    ]
    return pl.pallas_call(
        functools.partial(transformer_kernel, nhead=nhead, nlayers=L),
        out_shape=jax.ShapeDtypeStruct((B, Cpad), jnp.float32),
        grid=(1,),
        in_specs=in_specs,
        out_specs=pl.BlockSpec((B, Cpad), lambda i: (0, 0)),
        compiler_params=pltpu.CompilerParams(dimension_semantics=("arbitrary",)),
    )(x, p["wq"], p["wk"], p["wv"], p["bq"], p["bk"], p["bv"],
      p["wo"], p["bo"], p["g1"], p["be1"],
      p["w1"], p["b1"], p["w2"], p["b2"], p["g2"], p["be2"],
      p["fc_w3"], p["fc_b_pad"])


# ----------------------------------------------------------------------------
# Parameter init & forward
# ----------------------------------------------------------------------------
C_PAD = 128   # lane-dense output width (>= num_classes, multiple of 128)


def make_positional_encoding(max_len, d_model):
    pos = np.arange(max_len, dtype=np.float32)[:, None]
    div = np.exp(np.arange(0, d_model, 2, dtype=np.float32)
                 * (-math.log(10000.0) / d_model))
    pe = np.zeros((max_len, d_model), dtype=np.float32)
    pe[:, 0::2] = np.sin(pos * div)
    pe[:, 1::2] = np.cos(pos * div)
    return jnp.asarray(pe)


def init_params(key, vocab_size, ntoken, d_emb, d_hid, nlayers, num_classes):
    scale = 0.05
    L, D, H = nlayers, d_emb, d_hid
    ks = jax.random.split(key, 8)

    def nrm(k, shape, s=scale):
        return jax.random.normal(k, shape, jnp.float32) * s

    params = {
        "embed": nrm(ks[0], (vocab_size, D), 0.1),
        # per-layer weights stacked on a leading nlayers axis
        "wq": nrm(ks[1], (L, D, D)).astype(jnp.bfloat16),
        "wk": nrm(ks[2], (L, D, D)).astype(jnp.bfloat16),
        "wv": nrm(ks[3], (L, D, D)).astype(jnp.bfloat16),
        "wo": nrm(ks[4], (L, D, D)),                       # fp32 (sliced per head in-kernel)
        "bq": jnp.zeros((L, 1, D), jnp.float32),
        "bk": jnp.zeros((L, 1, D), jnp.float32),
        "bv": jnp.zeros((L, 1, D), jnp.float32),
        "bo": jnp.zeros((L, 1, D), jnp.float32),
        "g1": jnp.ones((L, 1, D), jnp.float32),
        "be1": jnp.zeros((L, 1, D), jnp.float32),
        "w1": nrm(ks[5], (L, D, H)).astype(jnp.bfloat16),
        "b1": jnp.zeros((L, 1, H), jnp.float32),
        "w2": nrm(ks[6], (L, H, D)).astype(jnp.bfloat16),
        "b2": jnp.zeros((L, 1, D), jnp.float32),
        "g2": jnp.ones((L, 1, D), jnp.float32),
        "be2": jnp.zeros((L, 1, D), jnp.float32),
    }
    # final fc: pad num_classes -> C_PAD lanes and reshape to (S, D, C_PAD)
    fc_w = nrm(ks[7], (ntoken * D, num_classes))
    fc_w_pad = jnp.zeros((ntoken * D, C_PAD), jnp.float32).at[:, :num_classes].set(fc_w)
    params["fc_w3"] = fc_w_pad.reshape(ntoken, D, C_PAD).astype(jnp.bfloat16)
    params["fc_b_pad"] = jnp.zeros((1, C_PAD), jnp.float32)
    return params


def transformer_forward(params, ids, pe, *, nhead, nlayers, num_classes):
    # glue: embedding gather + positional-encoding add (dropout = eval identity)
    x = params["embed"][ids]                       # (B, S, D)
    x = x + pe[None, : ids.shape[1], :]
    out_pad = transformer_pallas(x, params, nhead=nhead, nlayers=nlayers)
    return out_pad[:, :num_classes]
    # TODO(synk): nn.Dropout layers are identity here (eval-mode semantics);
    #             self.softmax is defined but never used in forward().


# ----------------------------------------------------------------------------
if __name__ == "__main__":
    # Small, valid configuration (d_emb must be divisible by nhead).
    vocab_size, ntoken = 50, 8
    d_emb, d_hid, nhead, nlayers, num_classes = 32, 64, 4, 2, 15
    B = 2

    root = jax.random.PRNGKey(0)
    k_param, k_ids = jax.random.split(root)

    params = init_params(k_param, vocab_size, ntoken, d_emb, d_hid,
                         nlayers, num_classes)
    pe = make_positional_encoding(ntoken, d_emb)
    ids = jax.random.randint(k_ids, (B, ntoken), 0, vocab_size, dtype=jnp.int32)

    out = transformer_forward(params, ids, pe,
                              nhead=nhead, nlayers=nlayers,
                              num_classes=num_classes)
    out = jax.block_until_ready(out)
    assert out.shape == (B, num_classes)
    assert bool(jnp.all(jnp.isfinite(out)))
    print("KERNEL_OK")
</pallas_src>

<mosaic_0001>
module attributes {stable_mosaic.version = 11 : i64} {
  func.func @transformer_kernel(%arg0: i32, %arg1: memref<2x8x32xf32, #tpu.memory_space<vmem>>, %arg2: memref<2x32x32xbf16, #tpu.memory_space<vmem>>, %arg3: memref<2x32x32xbf16, #tpu.memory_space<vmem>>, %arg4: memref<2x32x32xbf16, #tpu.memory_space<vmem>>, %arg5: memref<2x1x32xf32, #tpu.memory_space<vmem>>, %arg6: memref<2x1x32xf32, #tpu.memory_space<vmem>>, %arg7: memref<2x1x32xf32, #tpu.memory_space<vmem>>, %arg8: memref<2x32x32xf32, #tpu.memory_space<vmem>>, %arg9: memref<2x1x32xf32, #tpu.memory_space<vmem>>, %arg10: memref<2x1x32xf32, #tpu.memory_space<vmem>>, %arg11: memref<2x1x32xf32, #tpu.memory_space<vmem>>, %arg12: memref<2x32x64xbf16, #tpu.memory_space<vmem>>, %arg13: memref<2x1x64xf32, #tpu.memory_space<vmem>>, %arg14: memref<2x64x32xbf16, #tpu.memory_space<vmem>>, %arg15: memref<2x1x32xf32, #tpu.memory_space<vmem>>, %arg16: memref<2x1x32xf32, #tpu.memory_space<vmem>>, %arg17: memref<2x1x32xf32, #tpu.memory_space<vmem>>, %arg18: memref<8x32x128xbf16, #tpu.memory_space<vmem>>, %arg19: memref<1x128xf32, #tpu.memory_space<vmem>>, %arg20: memref<2x128xf32, #tpu.memory_space<vmem>>) attributes {dimension_semantics = [#tpu.dimension_semantics<arbitrary>], iteration_bounds = array<i64: 1>, scalar_prefetch = 0 : i64, scratch_operands = 0 : i64, tpu.core_type = #tpu.core_type<tc>, window_params = [{pipeline_mode = #tpu.pipeline_mode<synchronous>, transform_indices = @transform_0, window_bounds = array<i64: 2, 8, 32>}, {pipeline_mode = #tpu.pipeline_mode<synchronous>, transform_indices = @transform_1, window_bounds = array<i64: 2, 32, 32>}, {pipeline_mode = #tpu.pipeline_mode<synchronous>, transform_indices = @transform_2, window_bounds = array<i64: 2, 32, 32>}, {pipeline_mode = #tpu.pipeline_mode<synchronous>, transform_indices = @transform_3, window_bounds = array<i64: 2, 32, 32>}, {pipeline_mode = #tpu.pipeline_mode<synchronous>, transform_indices = @transform_4, window_bounds = array<i64: 2, 1, 32>}, {pipeline_mode = #tpu.pipeline_mode<synchronous>, transform_indices = @transform_5, window_bounds = array<i64: 2, 1, 32>}, {pipeline_mode = #tpu.pipeline_mode<synchronous>, transform_indices = @transform_6, window_bounds = array<i64: 2, 1, 32>}, {pipeline_mode = #tpu.pipeline_mode<synchronous>, transform_indices = @transform_7, window_bounds = array<i64: 2, 32, 32>}, {pipeline_mode = #tpu.pipeline_mode<synchronous>, transform_indices = @transform_8, window_bounds = array<i64: 2, 1, 32>}, {pipeline_mode = #tpu.pipeline_mode<synchronous>, transform_indices = @transform_9, window_bounds = array<i64: 2, 1, 32>}, {pipeline_mode = #tpu.pipeline_mode<synchronous>, transform_indices = @transform_10, window_bounds = array<i64: 2, 1, 32>}, {pipeline_mode = #tpu.pipeline_mode<synchronous>, transform_indices = @transform_11, window_bounds = array<i64: 2, 32, 64>}, {pipeline_mode = #tpu.pipeline_mode<synchronous>, transform_indices = @transform_12, window_bounds = array<i64: 2, 1, 64>}, {pipeline_mode = #tpu.pipeline_mode<synchronous>, transform_indices = @transform_13, window_bounds = array<i64: 2, 64, 32>}, {pipeline_mode = #tpu.pipeline_mode<synchronous>, transform_indices = @transform_14, window_bounds = array<i64: 2, 1, 32>}, {pipeline_mode = #tpu.pipeline_mode<synchronous>, transform_indices = @transform_15, window_bounds = array<i64: 2, 1, 32>}, {pipeline_mode = #tpu.pipeline_mode<synchronous>, transform_indices = @transform_16, window_bounds = array<i64: 2, 1, 32>}, {pipeline_mode = #tpu.pipeline_mode<synchronous>, transform_indices = @transform_17, window_bounds = array<i64: 8, 32, 128>}, {pipeline_mode = #tpu.pipeline_mode<synchronous>, transform_indices = @transform_18, window_bounds = array<i64: 1, 128>}, {pipeline_mode = #tpu.pipeline_mode<synchronous>, transform_indices = @transform_19, window_bounds = array<i64: 2, 128>}]} {
    %c0 = arith.constant 0 : index
    %c0_0 = arith.constant 0 : index
    %c0_1 = arith.constant 0 : index
    %0 = vector.load %arg1[%c0, %c0_0, %c0_1] : memref<2x8x32xf32, #tpu.memory_space<vmem>>, vector<2x8x32xf32>
    %1 = vector.shape_cast %0 : vector<2x8x32xf32> to vector<16x32xf32>
    %2 = arith.truncf %1 : vector<16x32xf32> to vector<16x32xbf16>
    %c0_2 = arith.constant 0 : index
    %c0_3 = arith.constant 0 : index
    %c0_4 = arith.constant 0 : index
    %3 = vector.load %arg2[%c0_2, %c0_3, %c0_4] : memref<2x32x32xbf16, #tpu.memory_space<vmem>>, vector<1x32x32xbf16>
    %4 = vector.shape_cast %3 : vector<1x32x32xbf16> to vector<32x32xbf16>
    %cst = arith.constant dense<0.000000e+00> : vector<16x32xf32>
    %5 = tpu.matmul %2, %4, %cst {dimension_numbers = #tpu.dot_dimension_numbers<[1], [0], [0], [1], [0, 0, 1, 1], [], []>} : vector<16x32xbf16>, vector<32x32xbf16>, vector<16x32xf32> -> vector<16x32xf32>
    %c0_5 = arith.constant 0 : index
    %c0_6 = arith.constant 0 : index
    %c0_7 = arith.constant 0 : index
    %6 = vector.load %arg5[%c0_5, %c0_6, %c0_7] : memref<2x1x32xf32, #tpu.memory_space<vmem>>, vector<1x1x32xf32>
    %7 = vector.shape_cast %6 : vector<1x1x32xf32> to vector<1x32xf32>
    %8 = vector.broadcast %7 : vector<1x32xf32> to vector<16x32xf32>
    %9 = arith.addf %5, %8 : vector<16x32xf32>
    %c0_8 = arith.constant 0 : index
    %c0_9 = arith.constant 0 : index
    %c0_10 = arith.constant 0 : index
    %10 = vector.load %arg3[%c0_8, %c0_9, %c0_10] : memref<2x32x32xbf16, #tpu.memory_space<vmem>>, vector<1x32x32xbf16>
    %11 = vector.shape_cast %10 : vector<1x32x32xbf16> to vector<32x32xbf16>
    %cst_11 = arith.constant dense<0.000000e+00> : vector<16x32xf32>
    %12 = tpu.matmul %2, %11, %cst_11 {dimension_numbers = #tpu.dot_dimension_numbers<[1], [0], [0], [1], [0, 0, 1, 1], [], []>} : vector<16x32xbf16>, vector<32x32xbf16>, vector<16x32xf32> -> vector<16x32xf32>
    %c0_12 = arith.constant 0 : index
    %c0_13 = arith.constant 0 : index
    %c0_14 = arith.constant 0 : index
    %13 = vector.load %arg6[%c0_12, %c0_13, %c0_14] : memref<2x1x32xf32, #tpu.memory_space<vmem>>, vector<1x1x32xf32>
    %14 = vector.shape_cast %13 : vector<1x1x32xf32> to vector<1x32xf32>
    %15 = vector.broadcast %14 : vector<1x32xf32> to vector<16x32xf32>
    %16 = arith.addf %12, %15 : vector<16x32xf32>
    %c0_15 = arith.constant 0 : index
    %c0_16 = arith.constant 0 : index
    %c0_17 = arith.constant 0 : index
    %17 = vector.load %arg4[%c0_15, %c0_16, %c0_17] : memref<2x32x32xbf16, #tpu.memory_space<vmem>>, vector<1x32x32xbf16>
    %18 = vector.shape_cast %17 : vector<1x32x32xbf16> to vector<32x32xbf16>
    %cst_18 = arith.constant dense<0.000000e+00> : vector<16x32xf32>
    %19 = tpu.matmul %2, %18, %cst_18 {dimension_numbers = #tpu.dot_dimension_numbers<[1], [0], [0], [1], [0, 0, 1, 1], [], []>} : vector<16x32xbf16>, vector<32x32xbf16>, vector<16x32xf32> -> vector<16x32xf32>
    %c0_19 = arith.constant 0 : index
    %c0_20 = arith.constant 0 : index
    %c0_21 = arith.constant 0 : index
    %20 = vector.load %arg7[%c0_19, %c0_20, %c0_21] : memref<2x1x32xf32, #tpu.memory_space<vmem>>, vector<1x1x32xf32>
    %21 = vector.shape_cast %20 : vector<1x1x32xf32> to vector<1x32xf32>
    %22 = vector.broadcast %21 : vector<1x32xf32> to vector<16x32xf32>
    %23 = arith.addf %19, %22 : vector<16x32xf32>
    %24 = vector.shape_cast %9 : vector<16x32xf32> to vector<2x8x32xf32>
    %25 = arith.truncf %24 : vector<2x8x32xf32> to vector<2x8x32xbf16>
    %26 = vector.shape_cast %16 : vector<16x32xf32> to vector<2x8x32xf32>
    %27 = arith.truncf %26 : vector<2x8x32xf32> to vector<2x8x32xbf16>
    %28 = vector.shape_cast %23 : vector<16x32xf32> to vector<2x8x32xf32>
    %29 = arith.truncf %28 : vector<2x8x32xf32> to vector<2x8x32xbf16>
    %c0_22 = arith.constant 0 : index
    %c0_23 = arith.constant 0 : index
    %c0_24 = arith.constant 0 : index
    %30 = vector.load %arg8[%c0_22, %c0_23, %c0_24] : memref<2x32x32xf32, #tpu.memory_space<vmem>>, vector<1x32x32xf32>
    %31 = vector.shape_cast %30 : vector<1x32x32xf32> to vector<32x32xf32>
    %cst_25 = arith.constant 0.000000e+00 : f32
    %32 = vector.broadcast %cst_25 : f32 to vector<16x32xf32>
    %33 = vector.extract_strided_slice %25 {offsets = [0, 0, 0], sizes = [2, 8, 8], strides = [1, 1, 1]} : vector<2x8x32xbf16> to vector<2x8x8xbf16>
    %34 = vector.extract_strided_slice %27 {offsets = [0, 0, 0], sizes = [2, 8, 8], strides = [1, 1, 1]} : vector<2x8x32xbf16> to vector<2x8x8xbf16>
    %35 = vector.extract_strided_slice %29 {offsets = [0, 0, 0], sizes = [2, 8, 8], strides = [1, 1, 1]} : vector<2x8x32xbf16> to vector<2x8x8xbf16>
    "tpu.trace_start"() <{level = 10 : i32, message = "bqd,bkd->bqk"}> : () -> ()
    %cst_26 = arith.constant dense<0.000000e+00> : vector<2x8x8xf32>
    %36 = tpu.matmul %33, %34, %cst_26 {dimension_numbers = #tpu.dot_dimension_numbers<[2], [2], [1], [1], [0, 0, 0, 1, 1, 1], [0], [0]>} : vector<2x8x8xbf16>, vector<2x8x8xbf16>, vector<2x8x8xf32> -> vector<2x8x8xf32>
    "tpu.trace_stop"() : () -> ()
    %cst_27 = arith.constant 0.353553385 : f32
    %37 = vector.broadcast %cst_27 : f32 to vector<2x8x8xf32>
    %38 = arith.mulf %36, %37 : vector<2x8x8xf32>
    %cst_28 = arith.constant dense<0xFF800000> : vector<2x8xf32>
    %39 = vector.multi_reduction <maximumf>, %38, %cst_28 [2] : vector<2x8x8xf32> to vector<2x8xf32>
    %40 = vector.shape_cast %39 : vector<2x8xf32> to vector<2x8x1xf32>
    %41 = vector.broadcast %40 : vector<2x8x1xf32> to vector<2x8x8xf32>
    %42 = arith.subf %38, %41 : vector<2x8x8xf32>
    %43 = math.exp %42 : vector<2x8x8xf32>
    %cst_29 = arith.constant dense<0.000000e+00> : vector<2x8xf32>
    %44 = vector.multi_reduction <add>, %43, %cst_29 [2] : vector<2x8x8xf32> to vector<2x8xf32>
    %45 = vector.shape_cast %44 : vector<2x8xf32> to vector<2x8x1xf32>
    %46 = tpu.reciprocal %45 {approx = true} : vector<2x8x1xf32> -> vector<2x8x1xf32>
    %47 = vector.broadcast %46 : vector<2x8x1xf32> to vector<2x8x8xf32>
    %48 = arith.mulf %43, %47 : vector<2x8x8xf32>
    %49 = arith.truncf %48 : vector<2x8x8xf32> to vector<2x8x8xbf16>
    "tpu.trace_start"() <{level = 10 : i32, message = "bqk,bkd->bqd"}> : () -> ()
    %cst_30 = arith.constant dense<0.000000e+00> : vector<2x8x8xf32>
    %50 = tpu.matmul %49, %35, %cst_30 {dimension_numbers = #tpu.dot_dimension_numbers<[2], [1], [1], [2], [0, 0, 0, 1, 1, 2], [0], [0]>} : vector<2x8x8xbf16>, vector<2x8x8xbf16>, vector<2x8x8xf32> -> vector<2x8x8xf32>
    "tpu.trace_stop"() : () -> ()
    %51 = vector.shape_cast %50 : vector<2x8x8xf32> to vector<16x8xf32>
    %52 = arith.truncf %51 : vector<16x8xf32> to vector<16x8xbf16>
    %53 = vector.extract_strided_slice %31 {offsets = [0, 0], sizes = [8, 32], strides = [1, 1]} : vector<32x32xf32> to vector<8x32xf32>
    %54 = arith.truncf %53 : vector<8x32xf32> to vector<8x32xbf16>
    %cst_31 = arith.constant dense<0.000000e+00> : vector<16x32xf32>
    %55 = tpu.matmul %52, %54, %cst_31 {dimension_numbers = #tpu.dot_dimension_numbers<[1], [0], [0], [1], [0, 0, 1, 1], [], []>} : vector<16x8xbf16>, vector<8x32xbf16>, vector<16x32xf32> -> vector<16x32xf32>
    %56 = arith.addf %32, %55 : vector<16x32xf32>
    %57 = vector.extract_strided_slice %25 {offsets = [0, 0, 8], sizes = [2, 8, 8], strides = [1, 1, 1]} : vector<2x8x32xbf16> to vector<2x8x8xbf16>
    %58 = vector.extract_strided_slice %27 {offsets = [0, 0, 8], sizes = [2, 8, 8], strides = [1, 1, 1]} : vector<2x8x32xbf16> to vector<2x8x8xbf16>
    %59 = vector.extract_strided_slice %29 {offsets = [0, 0, 8], sizes = [2, 8, 8], strides = [1, 1, 1]} : vector<2x8x32xbf16> to vector<2x8x8xbf16>
    "tpu.trace_start"() <{level = 10 : i32, message = "bqd,bkd->bqk"}> : () -> ()
    %cst_32 = arith.constant dense<0.000000e+00> : vector<2x8x8xf32>
    %60 = tpu.matmul %57, %58, %cst_32 {dimension_numbers = #tpu.dot_dimension_numbers<[2], [2], [1], [1], [0, 0, 0, 1, 1, 1], [0], [0]>} : vector<2x8x8xbf16>, vector<2x8x8xbf16>, vector<2x8x8xf32> -> vector<2x8x8xf32>
    "tpu.trace_stop"() : () -> ()
    %cst_33 = arith.constant 0.353553385 : f32
    %61 = vector.broadcast %cst_33 : f32 to vector<2x8x8xf32>
    %62 = arith.mulf %60, %61 : vector<2x8x8xf32>
    %cst_34 = arith.constant dense<0xFF800000> : vector<2x8xf32>
    %63 = vector.multi_reduction <maximumf>, %62, %cst_34 [2] : vector<2x8x8xf32> to vector<2x8xf32>
    %64 = vector.shape_cast %63 : vector<2x8xf32> to vector<2x8x1xf32>
    %65 = vector.broadcast %64 : vector<2x8x1xf32> to vector<2x8x8xf32>
    %66 = arith.subf %62, %65 : vector<2x8x8xf32>
    %67 = math.exp %66 : vector<2x8x8xf32>
    %cst_35 = arith.constant dense<0.000000e+00> : vector<2x8xf32>
    %68 = vector.multi_reduction <add>, %67, %cst_35 [2] : vector<2x8x8xf32> to vector<2x8xf32>
    %69 = vector.shape_cast %68 : vector<2x8xf32> to vector<2x8x1xf32>
    %70 = tpu.reciprocal %69 {approx = true} : vector<2x8x1xf32> -> vector<2x8x1xf32>
    %71 = vector.broadcast %70 : vector<2x8x1xf32> to vector<2x8x8xf32>
    %72 = arith.mulf %67, %71 : vector<2x8x8xf32>
    %73 = arith.truncf %72 : vector<2x8x8xf32> to vector<2x8x8xbf16>
    "tpu.trace_start"() <{level = 10 : i32, message = "bqk,bkd->bqd"}> : () -> ()
    %cst_36 = arith.constant dense<0.000000e+00> : vector<2x8x8xf32>
    %74 = tpu.matmul %73, %59, %cst_36 {dimension_numbers = #tpu.dot_dimension_numbers<[2], [1], [1], [2], [0, 0, 0, 1, 1, 2], [0], [0]>} : vector<2x8x8xbf16>, vector<2x8x8xbf16>, vector<2x8x8xf32> -> vector<2x8x8xf32>
    "tpu.trace_stop"() : () -> ()
    %75 = vector.shape_cast %74 : vector<2x8x8xf32> to vector<16x8xf32>
    %76 = arith.truncf %75 : vector<16x8xf32> to vector<16x8xbf16>
    %77 = vector.extract_strided_slice %31 {offsets = [8, 0], sizes = [8, 32], strides = [1, 1]} : vector<32x32xf32> to vector<8x32xf32>
    %78 = arith.truncf %77 : vector<8x32xf32> to vector<8x32xbf16>
    %cst_37 = arith.constant dense<0.000000e+00> : vector<16x32xf32>
    %79 = tpu.matmul %76, %78, %cst_37 {dimension_numbers = #tpu.dot_dimension_numbers<[1], [0], [0], [1], [0, 0, 1, 1], [], []>} : vector<16x8xbf16>, vector<8x32xbf16>, vector<16x32xf32> -> vector<16x32xf32>
    %80 = arith.addf %56, %79 : vector<16x32xf32>
    %81 = vector.extract_strided_slice %25 {offsets = [0, 0, 16], sizes = [2, 8, 8], strides = [1, 1, 1]} : vector<2x8x32xbf16> to vector<2x8x8xbf16>
    %82 = vector.extract_strided_slice %27 {offsets = [0, 0, 16], sizes = [2, 8, 8], strides = [1, 1, 1]} : vector<2x8x32xbf16> to vector<2x8x8xbf16>
    %83 = vector.extract_strided_slice %29 {offsets = [0, 0, 16], sizes = [2, 8, 8], strides = [1, 1, 1]} : vector<2x8x32xbf16> to vector<2x8x8xbf16>
    "tpu.trace_start"() <{level = 10 : i32, message = "bqd,bkd->bqk"}> : () -> ()
    %cst_38 = arith.constant dense<0.000000e+00> : vector<2x8x8xf32>
    %84 = tpu.matmul %81, %82, %cst_38 {dimension_numbers = #tpu.dot_dimension_numbers<[2], [2], [1], [1], [0, 0, 0, 1, 1, 1], [0], [0]>} : vector<2x8x8xbf16>, vector<2x8x8xbf16>, vector<2x8x8xf32> -> vector<2x8x8xf32>
    "tpu.trace_stop"() : () -> ()
    %cst_39 = arith.constant 0.353553385 : f32
    %85 = vector.broadcast %cst_39 : f32 to vector<2x8x8xf32>
    %86 = arith.mulf %84, %85 : vector<2x8x8xf32>
    %cst_40 = arith.constant dense<0xFF800000> : vector<2x8xf32>
    %87 = vector.multi_reduction <maximumf>, %86, %cst_40 [2] : vector<2x8x8xf32> to vector<2x8xf32>
    %88 = vector.shape_cast %87 : vector<2x8xf32> to vector<2x8x1xf32>
    %89 = vector.broadcast %88 : vector<2x8x1xf32> to vector<2x8x8xf32>
    %90 = arith.subf %86, %89 : vector<2x8x8xf32>
    %91 = math.exp %90 : vector<2x8x8xf32>
    %cst_41 = arith.constant dense<0.000000e+00> : vector<2x8xf32>
    %92 = vector.multi_reduction <add>, %91, %cst_41 [2] : vector<2x8x8xf32> to vector<2x8xf32>
    %93 = vector.shape_cast %92 : vector<2x8xf32> to vector<2x8x1xf32>
    %94 = tpu.reciprocal %93 {approx = true} : vector<2x8x1xf32> -> vector<2x8x1xf32>
    %95 = vector.broadcast %94 : vector<2x8x1xf32> to vector<2x8x8xf32>
    %96 = arith.mulf %91, %95 : vector<2x8x8xf32>
    %97 = arith.truncf %96 : vector<2x8x8xf32> to vector<2x8x8xbf16>
    "tpu.trace_start"() <{level = 10 : i32, message = "bqk,bkd->bqd"}> : () -> ()
    %cst_42 = arith.constant dense<0.000000e+00> : vector<2x8x8xf32>
    %98 = tpu.matmul %97, %83, %cst_42 {dimension_numbers = #tpu.dot_dimension_numbers<[2], [1], [1], [2], [0, 0, 0, 1, 1, 2], [0], [0]>} : vector<2x8x8xbf16>, vector<2x8x8xbf16>, vector<2x8x8xf32> -> vector<2x8x8xf32>
    "tpu.trace_stop"() : () -> ()
    %99 = vector.shape_cast %98 : vector<2x8x8xf32> to vector<16x8xf32>
    %100 = arith.truncf %99 : vector<16x8xf32> to vector<16x8xbf16>
    %101 = vector.extract_strided_slice %31 {offsets = [16, 0], sizes = [8, 32], strides = [1, 1]} : vector<32x32xf32> to vector<8x32xf32>
    %102 = arith.truncf %101 : vector<8x32xf32> to vector<8x32xbf16>
    %cst_43 = arith.constant dense<0.000000e+00> : vector<16x32xf32>
    %103 = tpu.matmul %100, %102, %cst_43 {dimension_numbers = #tpu.dot_dimension_numbers<[1], [0], [0], [1], [0, 0, 1, 1], [], []>} : vector<16x8xbf16>, vector<8x32xbf16>, vector<16x32xf32> -> vector<16x32xf32>
    %104 = arith.addf %80, %103 : vector<16x32xf32>
    %105 = vector.extract_strided_slice %25 {offsets = [0, 0, 24], sizes = [2, 8, 8], strides = [1, 1, 1]} : vector<2x8x32xbf16> to vector<2x8x8xbf16>
    %106 = vector.extract_strided_slice %27 {offsets = [0, 0, 24], sizes = [2, 8, 8], strides = [1, 1, 1]} : vector<2x8x32xbf16> to vector<2x8x8xbf16>
    %107 = vector.extract_strided_slice %29 {offsets = [0, 0, 24], sizes = [2, 8, 8], strides = [1, 1, 1]} : vector<2x8x32xbf16> to vector<2x8x8xbf16>
    "tpu.trace_start"() <{level = 10 : i32, message = "bqd,bkd->bqk"}> : () -> ()
    %cst_44 = arith.constant dense<0.000000e+00> : vector<2x8x8xf32>
    %108 = tpu.matmul %105, %106, %cst_44 {dimension_numbers = #tpu.dot_dimension_numbers<[2], [2], [1], [1], [0, 0, 0, 1, 1, 1], [0], [0]>} : vector<2x8x8xbf16>, vector<2x8x8xbf16>, vector<2x8x8xf32> -> vector<2x8x8xf32>
    "tpu.trace_stop"() : () -> ()
    %cst_45 = arith.constant 0.353553385 : f32
    %109 = vector.broadcast %cst_45 : f32 to vector<2x8x8xf32>
    %110 = arith.mulf %108, %109 : vector<2x8x8xf32>
    %cst_46 = arith.constant dense<0xFF800000> : vector<2x8xf32>
    %111 = vector.multi_reduction <maximumf>, %110, %cst_46 [2] : vector<2x8x8xf32> to vector<2x8xf32>
    %112 = vector.shape_cast %111 : vector<2x8xf32> to vector<2x8x1xf32>
    %113 = vector.broadcast %112 : vector<2x8x1xf32> to vector<2x8x8xf32>
    %114 = arith.subf %110, %113 : vector<2x8x8xf32>
    %115 = math.exp %114 : vector<2x8x8xf32>
    %cst_47 = arith.constant dense<0.000000e+00> : vector<2x8xf32>
    %116 = vector.multi_reduction <add>, %115, %cst_47 [2] : vector<2x8x8xf32> to vector<2x8xf32>
    %117 = vector.shape_cast %116 : vector<2x8xf32> to vector<2x8x1xf32>
    %118 = tpu.reciprocal %117 {approx = true} : vector<2x8x1xf32> -> vector<2x8x1xf32>
    %119 = vector.broadcast %118 : vector<2x8x1xf32> to vector<2x8x8xf32>
    %120 = arith.mulf %115, %119 : vector<2x8x8xf32>
    %121 = arith.truncf %120 : vector<2x8x8xf32> to vector<2x8x8xbf16>
    "tpu.trace_start"() <{level = 10 : i32, message = "bqk,bkd->bqd"}> : () -> ()
    %cst_48 = arith.constant dense<0.000000e+00> : vector<2x8x8xf32>
    %122 = tpu.matmul %121, %107, %cst_48 {dimension_numbers = #tpu.dot_dimension_numbers<[2], [1], [1], [2], [0, 0, 0, 1, 1, 2], [0], [0]>} : vector<2x8x8xbf16>, vector<2x8x8xbf16>, vector<2x8x8xf32> -> vector<2x8x8xf32>
    "tpu.trace_stop"() : () -> ()
    %123 = vector.shape_cast %122 : vector<2x8x8xf32> to vector<16x8xf32>
    %124 = arith.truncf %123 : vector<16x8xf32> to vector<16x8xbf16>
    %125 = vector.extract_strided_slice %31 {offsets = [24, 0], sizes = [8, 32], strides = [1, 1]} : vector<32x32xf32> to vector<8x32xf32>
    %126 = arith.truncf %125 : vector<8x32xf32> to vector<8x32xbf16>
    %cst_49 = arith.constant dense<0.000000e+00> : vector<16x32xf32>
    %127 = tpu.matmul %124, %126, %cst_49 {dimension_numbers = #tpu.dot_dimension_numbers<[1], [0], [0], [1], [0, 0, 1, 1], [], []>} : vector<16x8xbf16>, vector<8x32xbf16>, vector<16x32xf32> -> vector<16x32xf32>
    %128 = arith.addf %104, %127 : vector<16x32xf32>
    %c0_50 = arith.constant 0 : index
    %c0_51 = arith.constant 0 : index
    %c0_52 = arith.constant 0 : index
    %129 = vector.load %arg9[%c0_50, %c0_51, %c0_52] : memref<2x1x32xf32, #tpu.memory_space<vmem>>, vector<1x1x32xf32>
    %130 = vector.shape_cast %129 : vector<1x1x32xf32> to vector<1x32xf32>
    %131 = vector.broadcast %130 : vector<1x32xf32> to vector<16x32xf32>
    %132 = arith.addf %128, %131 : vector<16x32xf32>
    %133 = arith.addf %1, %132 : vector<16x32xf32>
    %cst_53 = arith.constant dense<0.000000e+00> : vector<16xf32>
    %134 = vector.multi_reduction <add>, %133, %cst_53 [1] : vector<16x32xf32> to vector<16xf32>
    %135 = vector.shape_cast %134 : vector<16xf32> to vector<16x1xf32>
    %cst_54 = arith.constant 3.200000e+01 : f32
    %136 = vector.broadcast %cst_54 : f32 to vector<16x1xf32>
    %137 = arith.divf %135, %136 : vector<16x1xf32>
    %138 = vector.broadcast %137 : vector<16x1xf32> to vector<16x32xf32>
    %139 = arith.subf %133, %138 : vector<16x32xf32>
    %140 = arith.mulf %139, %139 : vector<16x32xf32>
    %cst_55 = arith.constant dense<0.000000e+00> : vector<16xf32>
    %141 = vector.multi_reduction <add>, %140, %cst_55 [1] : vector<16x32xf32> to vector<16xf32>
    %142 = vector.shape_cast %141 : vector<16xf32> to vector<16x1xf32>
    %cst_56 = arith.constant 3.200000e+01 : f32
    %143 = vector.broadcast %cst_56 : f32 to vector<16x1xf32>
    %144 = arith.divf %142, %143 : vector<16x1xf32>
    %145 = vector.broadcast %137 : vector<16x1xf32> to vector<16x32xf32>
    %146 = arith.subf %133, %145 : vector<16x32xf32>
    %cst_57 = arith.constant 9.99999974E-6 : f32
    %147 = vector.broadcast %cst_57 : f32 to vector<16x1xf32>
    %148 = arith.addf %144, %147 : vector<16x1xf32>
    %149 = math.rsqrt %148 : vector<16x1xf32>
    %150 = vector.broadcast %149 : vector<16x1xf32> to vector<16x32xf32>
    %151 = arith.mulf %146, %150 : vector<16x32xf32>
    %c0_58 = arith.constant 0 : index
    %c0_59 = arith.constant 0 : index
    %c0_60 = arith.constant 0 : index
    %152 = vector.load %arg10[%c0_58, %c0_59, %c0_60] : memref<2x1x32xf32, #tpu.memory_space<vmem>>, vector<1x1x32xf32>
    %153 = vector.shape_cast %152 : vector<1x1x32xf32> to vector<1x32xf32>
    %154 = vector.broadcast %153 : vector<1x32xf32> to vector<16x32xf32>
    %155 = arith.mulf %151, %154 : vector<16x32xf32>
    %c0_61 = arith.constant 0 : index
    %c0_62 = arith.constant 0 : index
    %c0_63 = arith.constant 0 : index
    %156 = vector.load %arg11[%c0_61, %c0_62, %c0_63] : memref<2x1x32xf32, #tpu.memory_space<vmem>>, vector<1x1x32xf32>
    %157 = vector.shape_cast %156 : vector<1x1x32xf32> to vector<1x32xf32>
    %158 = vector.broadcast %157 : vector<1x32xf32> to vector<16x32xf32>
    %159 = arith.addf %155, %158 : vector<16x32xf32>
    %160 = arith.truncf %159 : vector<16x32xf32> to vector<16x32xbf16>
    %c0_64 = arith.constant 0 : index
    %c0_65 = arith.constant 0 : index
    %c0_66 = arith.constant 0 : index
    %161 = vector.load %arg12[%c0_64, %c0_65, %c0_66] : memref<2x32x64xbf16, #tpu.memory_space<vmem>>, vector<1x32x64xbf16>
    %162 = vector.shape_cast %161 : vector<1x32x64xbf16> to vector<32x64xbf16>
    %cst_67 = arith.constant dense<0.000000e+00> : vector<16x64xf32>
    %163 = tpu.matmul %160, %162, %cst_67 {dimension_numbers = #tpu.dot_dimension_numbers<[1], [0], [0], [1], [0, 0, 1, 1], [], []>} : vector<16x32xbf16>, vector<32x64xbf16>, vector<16x64xf32> -> vector<16x64xf32>
    %c0_68 = arith.constant 0 : index
    %c0_69 = arith.constant 0 : index
    %c0_70 = arith.constant 0 : index
    %164 = vector.load %arg13[%c0_68, %c0_69, %c0_70] : memref<2x1x64xf32, #tpu.memory_space<vmem>>, vector<1x1x64xf32>
    %165 = vector.shape_cast %164 : vector<1x1x64xf32> to vector<1x64xf32>
    %166 = vector.broadcast %165 : vector<1x64xf32> to vector<16x64xf32>
    %167 = arith.addf %163, %166 : vector<16x64xf32>
    %cst_71 = arith.constant 0.000000e+00 : f32
    %168 = vector.broadcast %cst_71 : f32 to vector<16x64xf32>
    %169 = arith.maximumf %167, %168 : vector<16x64xf32>
    %170 = arith.truncf %169 : vector<16x64xf32> to vector<16x64xbf16>
    %c0_72 = arith.constant 0 : index
    %c0_73 = arith.constant 0 : index
    %c0_74 = arith.constant 0 : index
    %171 = vector.load %arg14[%c0_72, %c0_73, %c0_74] : memref<2x64x32xbf16, #tpu.memory_space<vmem>>, vector<1x64x32xbf16>
    %172 = vector.shape_cast %171 : vector<1x64x32xbf16> to vector<64x32xbf16>
    %cst_75 = arith.constant dense<0.000000e+00> : vector<16x32xf32>
    %173 = tpu.matmul %170, %172, %cst_75 {dimension_numbers = #tpu.dot_dimension_numbers<[1], [0], [0], [1], [0, 0, 1, 1], [], []>} : vector<16x64xbf16>, vector<64x32xbf16>, vector<16x32xf32> -> vector<16x32xf32>
    %c0_76 = arith.constant 0 : index
    %c0_77 = arith.constant 0 : index
    %c0_78 = arith.constant 0 : index
    %174 = vector.load %arg15[%c0_76, %c0_77, %c0_78] : memref<2x1x32xf32, #tpu.memory_space<vmem>>, vector<1x1x32xf32>
    %175 = vector.shape_cast %174 : vector<1x1x32xf32> to vector<1x32xf32>
    %176 = vector.broadcast %175 : vector<1x32xf32> to vector<16x32xf32>
    %177 = arith.addf %173, %176 : vector<16x32xf32>
    %178 = arith.addf %159, %177 : vector<16x32xf32>
    %cst_79 = arith.constant dense<0.000000e+00> : vector<16xf32>
    %179 = vector.multi_reduction <add>, %178, %cst_79 [1] : vector<16x32xf32> to vector<16xf32>
    %180 = vector.shape_cast %179 : vector<16xf32> to vector<16x1xf32>
    %cst_80 = arith.constant 3.200000e+01 : f32
    %181 = vector.broadcast %cst_80 : f32 to vector<16x1xf32>
    %182 = arith.divf %180, %181 : vector<16x1xf32>
    %183 = vector.broadcast %182 : vector<16x1xf32> to vector<16x32xf32>
    %184 = arith.subf %178, %183 : vector<16x32xf32>
    %185 = arith.mulf %184, %184 : vector<16x32xf32>
    %cst_81 = arith.constant dense<0.000000e+00> : vector<16xf32>
    %186 = vector.multi_reduction <add>, %185, %cst_81 [1] : vector<16x32xf32> to vector<16xf32>
    %187 = vector.shape_cast %186 : vector<16xf32> to vector<16x1xf32>
    %cst_82 = arith.constant 3.200000e+01 : f32
    %188 = vector.broadcast %cst_82 : f32 to vector<16x1xf32>
    %189 = arith.divf %187, %188 : vector<16x1xf32>
    %190 = vector.broadcast %182 : vector<16x1xf32> to vector<16x32xf32>
    %191 = arith.subf %178, %190 : vector<16x32xf32>
    %cst_83 = arith.constant 9.99999974E-6 : f32
    %192 = vector.broadcast %cst_83 : f32 to vector<16x1xf32>
    %193 = arith.addf %189, %192 : vector<16x1xf32>
    %194 = math.rsqrt %193 : vector<16x1xf32>
    %195 = vector.broadcast %194 : vector<16x1xf32> to vector<16x32xf32>
    %196 = arith.mulf %191, %195 : vector<16x32xf32>
    %c0_84 = arith.constant 0 : index
    %c0_85 = arith.constant 0 : index
    %c0_86 = arith.constant 0 : index
    %197 = vector.load %arg16[%c0_84, %c0_85, %c0_86] : memref<2x1x32xf32, #tpu.memory_space<vmem>>, vector<1x1x32xf32>
    %198 = vector.shape_cast %197 : vector<1x1x32xf32> to vector<1x32xf32>
    %199 = vector.broadcast %198 : vector<1x32xf32> to vector<16x32xf32>
    %200 = arith.mulf %196, %199 : vector<16x32xf32>
    %c0_87 = arith.constant 0 : index
    %c0_88 = arith.constant 0 : index
    %c0_89 = arith.constant 0 : index
    %201 = vector.load %arg17[%c0_87, %c0_88, %c0_89] : memref<2x1x32xf32, #tpu.memory_space<vmem>>, vector<1x1x32xf32>
    %202 = vector.shape_cast %201 : vector<1x1x32xf32> to vector<1x32xf32>
    %203 = vector.broadcast %202 : vector<1x32xf32> to vector<16x32xf32>
    %204 = arith.addf %200, %203 : vector<16x32xf32>
    %205 = arith.truncf %204 : vector<16x32xf32> to vector<16x32xbf16>
    %c1 = arith.constant 1 : index
    %c0_90 = arith.constant 0 : index
    %c0_91 = arith.constant 0 : index
    %206 = vector.load %arg2[%c1, %c0_90, %c0_91] : memref<2x32x32xbf16, #tpu.memory_space<vmem>>, vector<1x32x32xbf16>
    %207 = vector.shape_cast %206 : vector<1x32x32xbf16> to vector<32x32xbf16>
    %cst_92 = arith.constant dense<0.000000e+00> : vector<16x32xf32>
    %208 = tpu.matmul %205, %207, %cst_92 {dimension_numbers = #tpu.dot_dimension_numbers<[1], [0], [0], [1], [0, 0, 1, 1], [], []>} : vector<16x32xbf16>, vector<32x32xbf16>, vector<16x32xf32> -> vector<16x32xf32>
    %c1_93 = arith.constant 1 : index
    %c0_94 = arith.constant 0 : index
    %c0_95 = arith.constant 0 : index
    %209 = vector.load %arg5[%c1_93, %c0_94, %c0_95] : memref<2x1x32xf32, #tpu.memory_space<vmem>>, vector<1x1x32xf32>
    %210 = vector.shape_cast %209 : vector<1x1x32xf32> to vector<1x32xf32>
    %211 = vector.broadcast %210 : vector<1x32xf32> to vector<16x32xf32>
    %212 = arith.addf %208, %211 : vector<16x32xf32>
    %c1_96 = arith.constant 1 : index
    %c0_97 = arith.constant 0 : index
    %c0_98 = arith.constant 0 : index
    %213 = vector.load %arg3[%c1_96, %c0_97, %c0_98] : memref<2x32x32xbf16, #tpu.memory_space<vmem>>, vector<1x32x32xbf16>
    %214 = vector.shape_cast %213 : vector<1x32x32xbf16> to vector<32x32xbf16>
    %cst_99 = arith.constant dense<0.000000e+00> : vector<16x32xf32>
    %215 = tpu.matmul %205, %214, %cst_99 {dimension_numbers = #tpu.dot_dimension_numbers<[1], [0], [0], [1], [0, 0, 1, 1], [], []>} : vector<16x32xbf16>, vector<32x32xbf16>, vector<16x32xf32> -> vector<16x32xf32>
    %c1_100 = arith.constant 1 : index
    %c0_101 = arith.constant 0 : index
    %c0_102 = arith.constant 0 : index
    %216 = vector.load %arg6[%c1_100, %c0_101, %c0_102] : memref<2x1x32xf32, #tpu.memory_space<vmem>>, vector<1x1x32xf32>
    %217 = vector.shape_cast %216 : vector<1x1x32xf32> to vector<1x32xf32>
    %218 = vector.broadcast %217 : vector<1x32xf32> to vector<16x32xf32>
    %219 = arith.addf %215, %218 : vector<16x32xf32>
    %c1_103 = arith.constant 1 : index
    %c0_104 = arith.constant 0 : index
    %c0_105 = arith.constant 0 : index
    %220 = vector.load %arg4[%c1_103, %c0_104, %c0_105] : memref<2x32x32xbf16, #tpu.memory_space<vmem>>, vector<1x32x32xbf16>
    %221 = vector.shape_cast %220 : vector<1x32x32xbf16> to vector<32x32xbf16>
    %cst_106 = arith.constant dense<0.000000e+00> : vector<16x32xf32>
    %222 = tpu.matmul %205, %221, %cst_106 {dimension_numbers = #tpu.dot_dimension_numbers<[1], [0], [0], [1], [0, 0, 1, 1], [], []>} : vector<16x32xbf16>, vector<32x32xbf16>, vector<16x32xf32> -> vector<16x32xf32>
    %c1_107 = arith.constant 1 : index
    %c0_108 = arith.constant 0 : index
    %c0_109 = arith.constant 0 : index
    %223 = vector.load %arg7[%c1_107, %c0_108, %c0_109] : memref<2x1x32xf32, #tpu.memory_space<vmem>>, vector<1x1x32xf32>
    %224 = vector.shape_cast %223 : vector<1x1x32xf32> to vector<1x32xf32>
    %225 = vector.broadcast %224 : vector<1x32xf32> to vector<16x32xf32>
    %226 = arith.addf %222, %225 : vector<16x32xf32>
    %227 = vector.shape_cast %212 : vector<16x32xf32> to vector<2x8x32xf32>
    %228 = arith.truncf %227 : vector<2x8x32xf32> to vector<2x8x32xbf16>
    %229 = vector.shape_cast %219 : vector<16x32xf32> to vector<2x8x32xf32>
    %230 = arith.truncf %229 : vector<2x8x32xf32> to vector<2x8x32xbf16>
    %231 = vector.shape_cast %226 : vector<16x32xf32> to vector<2x8x32xf32>
    %232 = arith.truncf %231 : vector<2x8x32xf32> to vector<2x8x32xbf16>
    %c1_110 = arith.constant 1 : index
    %c0_111 = arith.constant 0 : index
    %c0_112 = arith.constant 0 : index
    %233 = vector.load %arg8[%c1_110, %c0_111, %c0_112] : memref<2x32x32xf32, #tpu.memory_space<vmem>>, vector<1x32x32xf32>
    %234 = vector.shape_cast %233 : vector<1x32x32xf32> to vector<32x32xf32>
    %cst_113 = arith.constant 0.000000e+00 : f32
    %235 = vector.broadcast %cst_113 : f32 to vector<16x32xf32>
    %236 = vector.extract_strided_slice %228 {offsets = [0, 0, 0], sizes = [2, 8, 8], strides = [1, 1, 1]} : vector<2x8x32xbf16> to vector<2x8x8xbf16>
    %237 = vector.extract_strided_slice %230 {offsets = [0, 0, 0], sizes = [2, 8, 8], strides = [1, 1, 1]} : vector<2x8x32xbf16> to vector<2x8x8xbf16>
    %238 = vector.extract_strided_slice %232 {offsets = [0, 0, 0], sizes = [2, 8, 8], strides = [1, 1, 1]} : vector<2x8x32xbf16> to vector<2x8x8xbf16>
    "tpu.trace_start"() <{level = 10 : i32, message = "bqd,bkd->bqk"}> : () -> ()
    %cst_114 = arith.constant dense<0.000000e+00> : vector<2x8x8xf32>
    %239 = tpu.matmul %236, %237, %cst_114 {dimension_numbers = #tpu.dot_dimension_numbers<[2], [2], [1], [1], [0, 0, 0, 1, 1, 1], [0], [0]>} : vector<2x8x8xbf16>, vector<2x8x8xbf16>, vector<2x8x8xf32> -> vector<2x8x8xf32>
    "tpu.trace_stop"() : () -> ()
    %cst_115 = arith.constant 0.353553385 : f32
    %240 = vector.broadcast %cst_115 : f32 to vector<2x8x8xf32>
    %241 = arith.mulf %239, %240 : vector<2x8x8xf32>
    %cst_116 = arith.constant dense<0xFF800000> : vector<2x8xf32>
    %242 = vector.multi_reduction <maximumf>, %241, %cst_116 [2] : vector<2x8x8xf32> to vector<2x8xf32>
    %243 = vector.shape_cast %242 : vector<2x8xf32> to vector<2x8x1xf32>
    %244 = vector.broadcast %243 : vector<2x8x1xf32> to vector<2x8x8xf32>
    %245 = arith.subf %241, %244 : vector<2x8x8xf32>
    %246 = math.exp %245 : vector<2x8x8xf32>
    %cst_117 = arith.constant dense<0.000000e+00> : vector<2x8xf32>
    %247 = vector.multi_reduction <add>, %246, %cst_117 [2] : vector<2x8x8xf32> to vector<2x8xf32>
    %248 = vector.shape_cast %247 : vector<2x8xf32> to vector<2x8x1xf32>
    %249 = tpu.reciprocal %248 {approx = true} : vector<2x8x1xf32> -> vector<2x8x1xf32>
    %250 = vector.broadcast %249 : vector<2x8x1xf32> to vector<2x8x8xf32>
    %251 = arith.mulf %246, %250 : vector<2x8x8xf32>
    %252 = arith.truncf %251 : vector<2x8x8xf32> to vector<2x8x8xbf16>
    "tpu.trace_start"() <{level = 10 : i32, message = "bqk,bkd->bqd"}> : () -> ()
    %cst_118 = arith.constant dense<0.000000e+00> : vector<2x8x8xf32>
    %253 = tpu.matmul %252, %238, %cst_118 {dimension_numbers = #tpu.dot_dimension_numbers<[2], [1], [1], [2], [0, 0, 0, 1, 1, 2], [0], [0]>} : vector<2x8x8xbf16>, vector<2x8x8xbf16>, vector<2x8x8xf32> -> vector<2x8x8xf32>
    "tpu.trace_stop"() : () -> ()
    %254 = vector.shape_cast %253 : vector<2x8x8xf32> to vector<16x8xf32>
    %255 = arith.truncf %254 : vector<16x8xf32> to vector<16x8xbf16>
    %256 = vector.extract_strided_slice %234 {offsets = [0, 0], sizes = [8, 32], strides = [1, 1]} : vector<32x32xf32> to vector<8x32xf32>
    %257 = arith.truncf %256 : vector<8x32xf32> to vector<8x32xbf16>
    %cst_119 = arith.constant dense<0.000000e+00> : vector<16x32xf32>
    %258 = tpu.matmul %255, %257, %cst_119 {dimension_numbers = #tpu.dot_dimension_numbers<[1], [0], [0], [1], [0, 0, 1, 1], [], []>} : vector<16x8xbf16>, vector<8x32xbf16>, vector<16x32xf32> -> vector<16x32xf32>
    %259 = arith.addf %235, %258 : vector<16x32xf32>
    %260 = vector.extract_strided_slice %228 {offsets = [0, 0, 8], sizes = [2, 8, 8], strides = [1, 1, 1]} : vector<2x8x32xbf16> to vector<2x8x8xbf16>
    %261 = vector.extract_strided_slice %230 {offsets = [0, 0, 8], sizes = [2, 8, 8], strides = [1, 1, 1]} : vector<2x8x32xbf16> to vector<2x8x8xbf16>
    %262 = vector.extract_strided_slice %232 {offsets = [0, 0, 8], sizes = [2, 8, 8], strides = [1, 1, 1]} : vector<2x8x32xbf16> to vector<2x8x8xbf16>
    "tpu.trace_start"() <{level = 10 : i32, message = "bqd,bkd->bqk"}> : () -> ()
    %cst_120 = arith.constant dense<0.000000e+00> : vector<2x8x8xf32>
    %263 = tpu.matmul %260, %261, %cst_120 {dimension_numbers = #tpu.dot_dimension_numbers<[2], [2], [1], [1], [0, 0, 0, 1, 1, 1], [0], [0]>} : vector<2x8x8xbf16>, vector<2x8x8xbf16>, vector<2x8x8xf32> -> vector<2x8x8xf32>
    "tpu.trace_stop"() : () -> ()
    %cst_121 = arith.constant 0.353553385 : f32
    %264 = vector.broadcast %cst_121 : f32 to vector<2x8x8xf32>
    %265 = arith.mulf %263, %264 : vector<2x8x8xf32>
    %cst_122 = arith.constant dense<0xFF800000> : vector<2x8xf32>
    %266 = vector.multi_reduction <maximumf>, %265, %cst_122 [2] : vector<2x8x8xf32> to vector<2x8xf32>
    %267 = vector.shape_cast %266 : vector<2x8xf32> to vector<2x8x1xf32>
    %268 = vector.broadcast %267 : vector<2x8x1xf32> to vector<2x8x8xf32>
    %269 = arith.subf %265, %268 : vector<2x8x8xf32>
    %270 = math.exp %269 : vector<2x8x8xf32>
    %cst_123 = arith.constant dense<0.000000e+00> : vector<2x8xf32>
    %271 = vector.multi_reduction <add>, %270, %cst_123 [2] : vector<2x8x8xf32> to vector<2x8xf32>
    %272 = vector.shape_cast %271 : vector<2x8xf32> to vector<2x8x1xf32>
    %273 = tpu.reciprocal %272 {approx = true} : vector<2x8x1xf32> -> vector<2x8x1xf32>
    %274 = vector.broadcast %273 : vector<2x8x1xf32> to vector<2x8x8xf32>
    %275 = arith.mulf %270, %274 : vector<2x8x8xf32>
    %276 = arith.truncf %275 : vector<2x8x8xf32> to vector<2x8x8xbf16>
    "tpu.trace_start"() <{level = 10 : i32, message = "bqk,bkd->bqd"}> : () -> ()
    %cst_124 = arith.constant dense<0.000000e+00> : vector<2x8x8xf32>
    %277 = tpu.matmul %276, %262, %cst_124 {dimension_numbers = #tpu.dot_dimension_numbers<[2], [1], [1], [2], [0, 0, 0, 1, 1, 2], [0], [0]>} : vector<2x8x8xbf16>, vector<2x8x8xbf16>, vector<2x8x8xf32> -> vector<2x8x8xf32>
    "tpu.trace_stop"() : () -> ()
    %278 = vector.shape_cast %277 : vector<2x8x8xf32> to vector<16x8xf32>
    %279 = arith.truncf %278 : vector<16x8xf32> to vector<16x8xbf16>
    %280 = vector.extract_strided_slice %234 {offsets = [8, 0], sizes = [8, 32], strides = [1, 1]} : vector<32x32xf32> to vector<8x32xf32>
    %281 = arith.truncf %280 : vector<8x32xf32> to vector<8x32xbf16>
    %cst_125 = arith.constant dense<0.000000e+00> : vector<16x32xf32>
    %282 = tpu.matmul %279, %281, %cst_125 {dimension_numbers = #tpu.dot_dimension_numbers<[1], [0], [0], [1], [0, 0, 1, 1], [], []>} : vector<16x8xbf16>, vector<8x32xbf16>, vector<16x32xf32> -> vector<16x32xf32>
    %283 = arith.addf %259, %282 : vector<16x32xf32>
    %284 = vector.extract_strided_slice %228 {offsets = [0, 0, 16], sizes = [2, 8, 8], strides = [1, 1, 1]} : vector<2x8x32xbf16> to vector<2x8x8xbf16>
    %285 = vector.extract_strided_slice %230 {offsets = [0, 0, 16], sizes = [2, 8, 8], strides = [1, 1, 1]} : vector<2x8x32xbf16> to vector<2x8x8xbf16>
    %286 = vector.extract_strided_slice %232 {offsets = [0, 0, 16], sizes = [2, 8, 8], strides = [1, 1, 1]} : vector<2x8x32xbf16> to vector<2x8x8xbf16>
    "tpu.trace_start"() <{level = 10 : i32, message = "bqd,bkd->bqk"}> : () -> ()
    %cst_126 = arith.constant dense<0.000000e+00> : vector<2x8x8xf32>
    %287 = tpu.matmul %284, %285, %cst_126 {dimension_numbers = #tpu.dot_dimension_numbers<[2], [2], [1], [1], [0, 0, 0, 1, 1, 1], [0], [0]>} : vector<2x8x8xbf16>, vector<2x8x8xbf16>, vector<2x8x8xf32> -> vector<2x8x8xf32>
    "tpu.trace_stop"() : () -> ()
    %cst_127 = arith.constant 0.353553385 : f32
    %288 = vector.broadcast %cst_127 : f32 to vector<2x8x8xf32>
    %289 = arith.mulf %287, %288 : vector<2x8x8xf32>
    %cst_128 = arith.constant dense<0xFF800000> : vector<2x8xf32>
    %290 = vector.multi_reduction <maximumf>, %289, %cst_128 [2] : vector<2x8x8xf32> to vector<2x8xf32>
    %291 = vector.shape_cast %290 : vector<2x8xf32> to vector<2x8x1xf32>
    %292 = vector.broadcast %291 : vector<2x8x1xf32> to vector<2x8x8xf32>
    %293 = arith.subf %289, %292 : vector<2x8x8xf32>
    %294 = math.exp %293 : vector<2x8x8xf32>
    %cst_129 = arith.constant dense<0.000000e+00> : vector<2x8xf32>
    %295 = vector.multi_reduction <add>, %294, %cst_129 [2] : vector<2x8x8xf32> to vector<2x8xf32>
    %296 = vector.shape_cast %295 : vector<2x8xf32> to vector<2x8x1xf32>
    %297 = tpu.reciprocal %296 {approx = true} : vector<2x8x1xf32> -> vector<2x8x1xf32>
    %298 = vector.broadcast %297 : vector<2x8x1xf32> to vector<2x8x8xf32>
    %299 = arith.mulf %294, %298 : vector<2x8x8xf32>
    %300 = arith.truncf %299 : vector<2x8x8xf32> to vector<2x8x8xbf16>
    "tpu.trace_start"() <{level = 10 : i32, message = "bqk,bkd->bqd"}> : () -> ()
    %cst_130 = arith.constant dense<0.000000e+00> : vector<2x8x8xf32>
    %301 = tpu.matmul %300, %286, %cst_130 {dimension_numbers = #tpu.dot_dimension_numbers<[2], [1], [1], [2], [0, 0, 0, 1, 1, 2], [0], [0]>} : vector<2x8x8xbf16>, vector<2x8x8xbf16>, vector<2x8x8xf32> -> vector<2x8x8xf32>
    "tpu.trace_stop"() : () -> ()
    %302 = vector.shape_cast %301 : vector<2x8x8xf32> to vector<16x8xf32>
    %303 = arith.truncf %302 : vector<16x8xf32> to vector<16x8xbf16>
    %304 = vector.extract_strided_slice %234 {offsets = [16, 0], sizes = [8, 32], strides = [1, 1]} : vector<32x32xf32> to vector<8x32xf32>
    %305 = arith.truncf %304 : vector<8x32xf32> to vector<8x32xbf16>
    %cst_131 = arith.constant dense<0.000000e+00> : vector<16x32xf32>
    %306 = tpu.matmul %303, %305, %cst_131 {dimension_numbers = #tpu.dot_dimension_numbers<[1], [0], [0], [1], [0, 0, 1, 1], [], []>} : vector<16x8xbf16>, vector<8x32xbf16>, vector<16x32xf32> -> vector<16x32xf32>
    %307 = arith.addf %283, %306 : vector<16x32xf32>
    %308 = vector.extract_strided_slice %228 {offsets = [0, 0, 24], sizes = [2, 8, 8], strides = [1, 1, 1]} : vector<2x8x32xbf16> to vector<2x8x8xbf16>
    %309 = vector.extract_strided_slice %230 {offsets = [0, 0, 24], sizes = [2, 8, 8], strides = [1, 1, 1]} : vector<2x8x32xbf16> to vector<2x8x8xbf16>
    %310 = vector.extract_strided_slice %232 {offsets = [0, 0, 24], sizes = [2, 8, 8], strides = [1, 1, 1]} : vector<2x8x32xbf16> to vector<2x8x8xbf16>
    "tpu.trace_start"() <{level = 10 : i32, message = "bqd,bkd->bqk"}> : () -> ()
    %cst_132 = arith.constant dense<0.000000e+00> : vector<2x8x8xf32>
    %311 = tpu.matmul %308, %309, %cst_132 {dimension_numbers = #tpu.dot_dimension_numbers<[2], [2], [1], [1], [0, 0, 0, 1, 1, 1], [0], [0]>} : vector<2x8x8xbf16>, vector<2x8x8xbf16>, vector<2x8x8xf32> -> vector<2x8x8xf32>
    "tpu.trace_stop"() : () -> ()
    %cst_133 = arith.constant 0.353553385 : f32
    %312 = vector.broadcast %cst_133 : f32 to vector<2x8x8xf32>
    %313 = arith.mulf %311, %312 : vector<2x8x8xf32>
    %cst_134 = arith.constant dense<0xFF800000> : vector<2x8xf32>
    %314 = vector.multi_reduction <maximumf>, %313, %cst_134 [2] : vector<2x8x8xf32> to vector<2x8xf32>
    %315 = vector.shape_cast %314 : vector<2x8xf32> to vector<2x8x1xf32>
    %316 = vector.broadcast %315 : vector<2x8x1xf32> to vector<2x8x8xf32>
    %317 = arith.subf %313, %316 : vector<2x8x8xf32>
    %318 = math.exp %317 : vector<2x8x8xf32>
    %cst_135 = arith.constant dense<0.000000e+00> : vector<2x8xf32>
    %319 = vector.multi_reduction <add>, %318, %cst_135 [2] : vector<2x8x8xf32> to vector<2x8xf32>
    %320 = vector.shape_cast %319 : vector<2x8xf32> to vector<2x8x1xf32>
    %321 = tpu.reciprocal %320 {approx = true} : vector<2x8x1xf32> -> vector<2x8x1xf32>
    %322 = vector.broadcast %321 : vector<2x8x1xf32> to vector<2x8x8xf32>
    %323 = arith.mulf %318, %322 : vector<2x8x8xf32>
    %324 = arith.truncf %323 : vector<2x8x8xf32> to vector<2x8x8xbf16>
    "tpu.trace_start"() <{level = 10 : i32, message = "bqk,bkd->bqd"}> : () -> ()
    %cst_136 = arith.constant dense<0.000000e+00> : vector<2x8x8xf32>
    %325 = tpu.matmul %324, %310, %cst_136 {dimension_numbers = #tpu.dot_dimension_numbers<[2], [1], [1], [2], [0, 0, 0, 1, 1, 2], [0], [0]>} : vector<2x8x8xbf16>, vector<2x8x8xbf16>, vector<2x8x8xf32> -> vector<2x8x8xf32>
    "tpu.trace_stop"() : () -> ()
    %326 = vector.shape_cast %325 : vector<2x8x8xf32> to vector<16x8xf32>
    %327 = arith.truncf %326 : vector<16x8xf32> to vector<16x8xbf16>
    %328 = vector.extract_strided_slice %234 {offsets = [24, 0], sizes = [8, 32], strides = [1, 1]} : vector<32x32xf32> to vector<8x32xf32>
    %329 = arith.truncf %328 : vector<8x32xf32> to vector<8x32xbf16>
    %cst_137 = arith.constant dense<0.000000e+00> : vector<16x32xf32>
    %330 = tpu.matmul %327, %329, %cst_137 {dimension_numbers = #tpu.dot_dimension_numbers<[1], [0], [0], [1], [0, 0, 1, 1], [], []>} : vector<16x8xbf16>, vector<8x32xbf16>, vector<16x32xf32> -> vector<16x32xf32>
    %331 = arith.addf %307, %330 : vector<16x32xf32>
    %c1_138 = arith.constant 1 : index
    %c0_139 = arith.constant 0 : index
    %c0_140 = arith.constant 0 : index
    %332 = vector.load %arg9[%c1_138, %c0_139, %c0_140] : memref<2x1x32xf32, #tpu.memory_space<vmem>>, vector<1x1x32xf32>
    %333 = vector.shape_cast %332 : vector<1x1x32xf32> to vector<1x32xf32>
    %334 = vector.broadcast %333 : vector<1x32xf32> to vector<16x32xf32>
    %335 = arith.addf %331, %334 : vector<16x32xf32>
    %336 = arith.addf %204, %335 : vector<16x32xf32>
    %cst_141 = arith.constant dense<0.000000e+00> : vector<16xf32>
    %337 = vector.multi_reduction <add>, %336, %cst_141 [1] : vector<16x32xf32> to vector<16xf32>
    %338 = vector.shape_cast %337 : vector<16xf32> to vector<16x1xf32>
    %cst_142 = arith.constant 3.200000e+01 : f32
    %339 = vector.broadcast %cst_142 : f32 to vector<16x1xf32>
    %340 = arith.divf %338, %339 : vector<16x1xf32>
    %341 = vector.broadcast %340 : vector<16x1xf32> to vector<16x32xf32>
    %342 = arith.subf %336, %341 : vector<16x32xf32>
    %343 = arith.mulf %342, %342 : vector<16x32xf32>
    %cst_143 = arith.constant dense<0.000000e+00> : vector<16xf32>
    %344 = vector.multi_reduction <add>, %343, %cst_143 [1] : vector<16x32xf32> to vector<16xf32>
    %345 = vector.shape_cast %344 : vector<16xf32> to vector<16x1xf32>
    %cst_144 = arith.constant 3.200000e+01 : f32
    %346 = vector.broadcast %cst_144 : f32 to vector<16x1xf32>
    %347 = arith.divf %345, %346 : vector<16x1xf32>
    %348 = vector.broadcast %340 : vector<16x1xf32> to vector<16x32xf32>
    %349 = arith.subf %336, %348 : vector<16x32xf32>
    %cst_145 = arith.constant 9.99999974E-6 : f32
    %350 = vector.broadcast %cst_145 : f32 to vector<16x1xf32>
    %351 = arith.addf %347, %350 : vector<16x1xf32>
    %352 = math.rsqrt %351 : vector<16x1xf32>
    %353 = vector.broadcast %352 : vector<16x1xf32> to vector<16x32xf32>
    %354 = arith.mulf %349, %353 : vector<16x32xf32>
    %c1_146 = arith.constant 1 : index
    %c0_147 = arith.constant 0 : index
    %c0_148 = arith.constant 0 : index
    %355 = vector.load %arg10[%c1_146, %c0_147, %c0_148] : memref<2x1x32xf32, #tpu.memory_space<vmem>>, vector<1x1x32xf32>
    %356 = vector.shape_cast %355 : vector<1x1x32xf32> to vector<1x32xf32>
    %357 = vector.broadcast %356 : vector<1x32xf32> to vector<16x32xf32>
    %358 = arith.mulf %354, %357 : vector<16x32xf32>
    %c1_149 = arith.constant 1 : index
    %c0_150 = arith.constant 0 : index
    %c0_151 = arith.constant 0 : index
    %359 = vector.load %arg11[%c1_149, %c0_150, %c0_151] : memref<2x1x32xf32, #tpu.memory_space<vmem>>, vector<1x1x32xf32>
    %360 = vector.shape_cast %359 : vector<1x1x32xf32> to vector<1x32xf32>
    %361 = vector.broadcast %360 : vector<1x32xf32> to vector<16x32xf32>
    %362 = arith.addf %358, %361 : vector<16x32xf32>
    %363 = arith.truncf %362 : vector<16x32xf32> to vector<16x32xbf16>
    %c1_152 = arith.constant 1 : index
    %c0_153 = arith.constant 0 : index
    %c0_154 = arith.constant 0 : index
    %364 = vector.load %arg12[%c1_152, %c0_153, %c0_154] : memref<2x32x64xbf16, #tpu.memory_space<vmem>>, vector<1x32x64xbf16>
    %365 = vector.shape_cast %364 : vector<1x32x64xbf16> to vector<32x64xbf16>
    %cst_155 = arith.constant dense<0.000000e+00> : vector<16x64xf32>
    %366 = tpu.matmul %363, %365, %cst_155 {dimension_numbers = #tpu.dot_dimension_numbers<[1], [0], [0], [1], [0, 0, 1, 1], [], []>} : vector<16x32xbf16>, vector<32x64xbf16>, vector<16x64xf32> -> vector<16x64xf32>
    %c1_156 = arith.constant 1 : index
    %c0_157 = arith.constant 0 : index
    %c0_158 = arith.constant 0 : index
    %367 = vector.load %arg13[%c1_156, %c0_157, %c0_158] : memref<2x1x64xf32, #tpu.memory_space<vmem>>, vector<1x1x64xf32>
    %368 = vector.shape_cast %367 : vector<1x1x64xf32> to vector<1x64xf32>
    %369 = vector.broadcast %368 : vector<1x64xf32> to vector<16x64xf32>
    %370 = arith.addf %366, %369 : vector<16x64xf32>
    %cst_159 = arith.constant 0.000000e+00 : f32
    %371 = vector.broadcast %cst_159 : f32 to vector<16x64xf32>
    %372 = arith.maximumf %370, %371 : vector<16x64xf32>
    %373 = arith.truncf %372 : vector<16x64xf32> to vector<16x64xbf16>
    %c1_160 = arith.constant 1 : index
    %c0_161 = arith.constant 0 : index
    %c0_162 = arith.constant 0 : index
    %374 = vector.load %arg14[%c1_160, %c0_161, %c0_162] : memref<2x64x32xbf16, #tpu.memory_space<vmem>>, vector<1x64x32xbf16>
    %375 = vector.shape_cast %374 : vector<1x64x32xbf16> to vector<64x32xbf16>
    %cst_163 = arith.constant dense<0.000000e+00> : vector<16x32xf32>
    %376 = tpu.matmul %373, %375, %cst_163 {dimension_numbers = #tpu.dot_dimension_numbers<[1], [0], [0], [1], [0, 0, 1, 1], [], []>} : vector<16x64xbf16>, vector<64x32xbf16>, vector<16x32xf32> -> vector<16x32xf32>
    %c1_164 = arith.constant 1 : index
    %c0_165 = arith.constant 0 : index
    %c0_166 = arith.constant 0 : index
    %377 = vector.load %arg15[%c1_164, %c0_165, %c0_166] : memref<2x1x32xf32, #tpu.memory_space<vmem>>, vector<1x1x32xf32>
    %378 = vector.shape_cast %377 : vector<1x1x32xf32> to vector<1x32xf32>
    %379 = vector.broadcast %378 : vector<1x32xf32> to vector<16x32xf32>
    %380 = arith.addf %376, %379 : vector<16x32xf32>
    %381 = arith.addf %362, %380 : vector<16x32xf32>
    %cst_167 = arith.constant dense<0.000000e+00> : vector<16xf32>
    %382 = vector.multi_reduction <add>, %381, %cst_167 [1] : vector<16x32xf32> to vector<16xf32>
    %383 = vector.shape_cast %382 : vector<16xf32> to vector<16x1xf32>
    %cst_168 = arith.constant 3.200000e+01 : f32
    %384 = vector.broadcast %cst_168 : f32 to vector<16x1xf32>
    %385 = arith.divf %383, %384 : vector<16x1xf32>
    %386 = vector.broadcast %385 : vector<16x1xf32> to vector<16x32xf32>
    %387 = arith.subf %381, %386 : vector<16x32xf32>
    %388 = arith.mulf %387, %387 : vector<16x32xf32>
    %cst_169 = arith.constant dense<0.000000e+00> : vector<16xf32>
    %389 = vector.multi_reduction <add>, %388, %cst_169 [1] : vector<16x32xf32> to vector<16xf32>
    %390 = vector.shape_cast %389 : vector<16xf32> to vector<16x1xf32>
    %cst_170 = arith.constant 3.200000e+01 : f32
    %391 = vector.broadcast %cst_170 : f32 to vector<16x1xf32>
    %392 = arith.divf %390, %391 : vector<16x1xf32>
    %393 = vector.broadcast %385 : vector<16x1xf32> to vector<16x32xf32>
    %394 = arith.subf %381, %393 : vector<16x32xf32>
    %cst_171 = arith.constant 9.99999974E-6 : f32
    %395 = vector.broadcast %cst_171 : f32 to vector<16x1xf32>
    %396 = arith.addf %392, %395 : vector<16x1xf32>
    %397 = math.rsqrt %396 : vector<16x1xf32>
    %398 = vector.broadcast %397 : vector<16x1xf32> to vector<16x32xf32>
    %399 = arith.mulf %394, %398 : vector<16x32xf32>
    %c1_172 = arith.constant 1 : index
    %c0_173 = arith.constant 0 : index
    %c0_174 = arith.constant 0 : index
    %400 = vector.load %arg16[%c1_172, %c0_173, %c0_174] : memref<2x1x32xf32, #tpu.memory_space<vmem>>, vector<1x1x32xf32>
    %401 = vector.shape_cast %400 : vector<1x1x32xf32> to vector<1x32xf32>
    %402 = vector.broadcast %401 : vector<1x32xf32> to vector<16x32xf32>
    %403 = arith.mulf %399, %402 : vector<16x32xf32>
    %c1_175 = arith.constant 1 : index
    %c0_176 = arith.constant 0 : index
    %c0_177 = arith.constant 0 : index
    %404 = vector.load %arg17[%c1_175, %c0_176, %c0_177] : memref<2x1x32xf32, #tpu.memory_space<vmem>>, vector<1x1x32xf32>
    %405 = vector.shape_cast %404 : vector<1x1x32xf32> to vector<1x32xf32>
    %406 = vector.broadcast %405 : vector<1x32xf32> to vector<16x32xf32>
    %407 = arith.addf %403, %406 : vector<16x32xf32>
    %408 = vector.shape_cast %407 : vector<16x32xf32> to vector<2x8x32xf32>
    %cst_178 = arith.constant 0.000000e+00 : f32
    %409 = vector.broadcast %cst_178 : f32 to vector<2x128xf32>
    %410 = vector.extract_strided_slice %408 {offsets = [0, 0, 0], sizes = [2, 1, 32], strides = [1, 1, 1]} : vector<2x8x32xf32> to vector<2x1x32xf32>
    %411 = vector.shape_cast %410 : vector<2x1x32xf32> to vector<2x32xf32>
    %412 = arith.truncf %411 : vector<2x32xf32> to vector<2x32xbf16>
    %c0_179 = arith.constant 0 : index
    %c0_180 = arith.constant 0 : index
    %c0_181 = arith.constant 0 : index
    %413 = vector.load %arg18[%c0_179, %c0_180, %c0_181] : memref<8x32x128xbf16, #tpu.memory_space<vmem>>, vector<1x32x128xbf16>
    %414 = vector.shape_cast %413 : vector<1x32x128xbf16> to vector<32x128xbf16>
    %cst_182 = arith.constant dense<0.000000e+00> : vector<2x128xf32>
    %415 = tpu.matmul %412, %414, %cst_182 {dimension_numbers = #tpu.dot_dimension_numbers<[1], [0], [0], [1], [0, 0, 1, 1], [], []>} : vector<2x32xbf16>, vector<32x128xbf16>, vector<2x128xf32> -> vector<2x128xf32>
    %416 = arith.addf %409, %415 : vector<2x128xf32>
    %417 = vector.extract_strided_slice %408 {offsets = [0, 1, 0], sizes = [2, 1, 32], strides = [1, 1, 1]} : vector<2x8x32xf32> to vector<2x1x32xf32>
    %418 = vector.shape_cast %417 : vector<2x1x32xf32> to vector<2x32xf32>
    %419 = arith.truncf %418 : vector<2x32xf32> to vector<2x32xbf16>
    %c1_183 = arith.constant 1 : index
    %c0_184 = arith.constant 0 : index
    %c0_185 = arith.constant 0 : index
    %420 = vector.load %arg18[%c1_183, %c0_184, %c0_185] : memref<8x32x128xbf16, #tpu.memory_space<vmem>>, vector<1x32x128xbf16>
    %421 = vector.shape_cast %420 : vector<1x32x128xbf16> to vector<32x128xbf16>
    %cst_186 = arith.constant dense<0.000000e+00> : vector<2x128xf32>
    %422 = tpu.matmul %419, %421, %cst_186 {dimension_numbers = #tpu.dot_dimension_numbers<[1], [0], [0], [1], [0, 0, 1, 1], [], []>} : vector<2x32xbf16>, vector<32x128xbf16>, vector<2x128xf32> -> vector<2x128xf32>
    %423 = arith.addf %416, %422 : vector<2x128xf32>
    %424 = vector.extract_strided_slice %408 {offsets = [0, 2, 0], sizes = [2, 1, 32], strides = [1, 1, 1]} : vector<2x8x32xf32> to vector<2x1x32xf32>
    %425 = vector.shape_cast %424 : vector<2x1x32xf32> to vector<2x32xf32>
    %426 = arith.truncf %425 : vector<2x32xf32> to vector<2x32xbf16>
    %c2 = arith.constant 2 : index
    %c0_187 = arith.constant 0 : index
    %c0_188 = arith.constant 0 : index
    %427 = vector.load %arg18[%c2, %c0_187, %c0_188] : memref<8x32x128xbf16, #tpu.memory_space<vmem>>, vector<1x32x128xbf16>
    %428 = vector.shape_cast %427 : vector<1x32x128xbf16> to vector<32x128xbf16>
    %cst_189 = arith.constant dense<0.000000e+00> : vector<2x128xf32>
    %429 = tpu.matmul %426, %428, %cst_189 {dimension_numbers = #tpu.dot_dimension_numbers<[1], [0], [0], [1], [0, 0, 1, 1], [], []>} : vector<2x32xbf16>, vector<32x128xbf16>, vector<2x128xf32> -> vector<2x128xf32>
    %430 = arith.addf %423, %429 : vector<2x128xf32>
    %431 = vector.extract_strided_slice %408 {offsets = [0, 3, 0], sizes = [2, 1, 32], strides = [1, 1, 1]} : vector<2x8x32xf32> to vector<2x1x32xf32>
    %432 = vector.shape_cast %431 : vector<2x1x32xf32> to vector<2x32xf32>
    %433 = arith.truncf %432 : vector<2x32xf32> to vector<2x32xbf16>
    %c3 = arith.constant 3 : index
    %c0_190 = arith.constant 0 : index
    %c0_191 = arith.constant 0 : index
    %434 = vector.load %arg18[%c3, %c0_190, %c0_191] : memref<8x32x128xbf16, #tpu.memory_space<vmem>>, vector<1x32x128xbf16>
    %435 = vector.shape_cast %434 : vector<1x32x128xbf16> to vector<32x128xbf16>
    %cst_192 = arith.constant dense<0.000000e+00> : vector<2x128xf32>
    %436 = tpu.matmul %433, %435, %cst_192 {dimension_numbers = #tpu.dot_dimension_numbers<[1], [0], [0], [1], [0, 0, 1, 1], [], []>} : vector<2x32xbf16>, vector<32x128xbf16>, vector<2x128xf32> -> vector<2x128xf32>
    %437 = arith.addf %430, %436 : vector<2x128xf32>
    %438 = vector.extract_strided_slice %408 {offsets = [0, 4, 0], sizes = [2, 1, 32], strides = [1, 1, 1]} : vector<2x8x32xf32> to vector<2x1x32xf32>
    %439 = vector.shape_cast %438 : vector<2x1x32xf32> to vector<2x32xf32>
    %440 = arith.truncf %439 : vector<2x32xf32> to vector<2x32xbf16>
    %c4 = arith.constant 4 : index
    %c0_193 = arith.constant 0 : index
    %c0_194 = arith.constant 0 : index
    %441 = vector.load %arg18[%c4, %c0_193, %c0_194] : memref<8x32x128xbf16, #tpu.memory_space<vmem>>, vector<1x32x128xbf16>
    %442 = vector.shape_cast %441 : vector<1x32x128xbf16> to vector<32x128xbf16>
    %cst_195 = arith.constant dense<0.000000e+00> : vector<2x128xf32>
    %443 = tpu.matmul %440, %442, %cst_195 {dimension_numbers = #tpu.dot_dimension_numbers<[1], [0], [0], [1], [0, 0, 1, 1], [], []>} : vector<2x32xbf16>, vector<32x128xbf16>, vector<2x128xf32> -> vector<2x128xf32>
    %444 = arith.addf %437, %443 : vector<2x128xf32>
    %445 = vector.extract_strided_slice %408 {offsets = [0, 5, 0], sizes = [2, 1, 32], strides = [1, 1, 1]} : vector<2x8x32xf32> to vector<2x1x32xf32>
    %446 = vector.shape_cast %445 : vector<2x1x32xf32> to vector<2x32xf32>
    %447 = arith.truncf %446 : vector<2x32xf32> to vector<2x32xbf16>
    %c5 = arith.constant 5 : index
    %c0_196 = arith.constant 0 : index
    %c0_197 = arith.constant 0 : index
    %448 = vector.load %arg18[%c5, %c0_196, %c0_197] : memref<8x32x128xbf16, #tpu.memory_space<vmem>>, vector<1x32x128xbf16>
    %449 = vector.shape_cast %448 : vector<1x32x128xbf16> to vector<32x128xbf16>
    %cst_198 = arith.constant dense<0.000000e+00> : vector<2x128xf32>
    %450 = tpu.matmul %447, %449, %cst_198 {dimension_numbers = #tpu.dot_dimension_numbers<[1], [0], [0], [1], [0, 0, 1, 1], [], []>} : vector<2x32xbf16>, vector<32x128xbf16>, vector<2x128xf32> -> vector<2x128xf32>
    %451 = arith.addf %444, %450 : vector<2x128xf32>
    %452 = vector.extract_strided_slice %408 {offsets = [0, 6, 0], sizes = [2, 1, 32], strides = [1, 1, 1]} : vector<2x8x32xf32> to vector<2x1x32xf32>
    %453 = vector.shape_cast %452 : vector<2x1x32xf32> to vector<2x32xf32>
    %454 = arith.truncf %453 : vector<2x32xf32> to vector<2x32xbf16>
    %c6 = arith.constant 6 : index
    %c0_199 = arith.constant 0 : index
    %c0_200 = arith.constant 0 : index
    %455 = vector.load %arg18[%c6, %c0_199, %c0_200] : memref<8x32x128xbf16, #tpu.memory_space<vmem>>, vector<1x32x128xbf16>
    %456 = vector.shape_cast %455 : vector<1x32x128xbf16> to vector<32x128xbf16>
    %cst_201 = arith.constant dense<0.000000e+00> : vector<2x128xf32>
    %457 = tpu.matmul %454, %456, %cst_201 {dimension_numbers = #tpu.dot_dimension_numbers<[1], [0], [0], [1], [0, 0, 1, 1], [], []>} : vector<2x32xbf16>, vector<32x128xbf16>, vector<2x128xf32> -> vector<2x128xf32>
    %458 = arith.addf %451, %457 : vector<2x128xf32>
    %459 = vector.extract_strided_slice %408 {offsets = [0, 7, 0], sizes = [2, 1, 32], strides = [1, 1, 1]} : vector<2x8x32xf32> to vector<2x1x32xf32>
    %460 = vector.shape_cast %459 : vector<2x1x32xf32> to vector<2x32xf32>
    %461 = arith.truncf %460 : vector<2x32xf32> to vector<2x32xbf16>
    %c7 = arith.constant 7 : index
    %c0_202 = arith.constant 0 : index
    %c0_203 = arith.constant 0 : index
    %462 = vector.load %arg18[%c7, %c0_202, %c0_203] : memref<8x32x128xbf16, #tpu.memory_space<vmem>>, vector<1x32x128xbf16>
    %463 = vector.shape_cast %462 : vector<1x32x128xbf16> to vector<32x128xbf16>
    %cst_204 = arith.constant dense<0.000000e+00> : vector<2x128xf32>
    %464 = tpu.matmul %461, %463, %cst_204 {dimension_numbers = #tpu.dot_dimension_numbers<[1], [0], [0], [1], [0, 0, 1, 1], [], []>} : vector<2x32xbf16>, vector<32x128xbf16>, vector<2x128xf32> -> vector<2x128xf32>
    %465 = arith.addf %458, %464 : vector<2x128xf32>
    %c0_205 = arith.constant 0 : index
    %c0_206 = arith.constant 0 : index
    %466 = vector.load %arg19[%c0_205, %c0_206] : memref<1x128xf32, #tpu.memory_space<vmem>>, vector<1x128xf32>
    %467 = vector.broadcast %466 : vector<1x128xf32> to vector<2x128xf32>
    %468 = arith.addf %465, %467 : vector<2x128xf32>
    %c0_207 = arith.constant 0 : index
    %c0_208 = arith.constant 0 : index
    %469 = vector.load %arg20[%c0_207, %c0_208] : memref<2x128xf32, #tpu.memory_space<vmem>>, vector<2x128xf32>
    tpu.vector_store %arg20[%c0_207, %c0_208], %468 {strides = array<i32>} : memref<2x128xf32, #tpu.memory_space<vmem>>, vector<2x128xf32>,
    return
  }
  func.func @transform_0(%arg0: i32) -> (i32, i32, i32) {
    %c0_i32 = arith.constant 0 : i32
    %c0_i32_0 = arith.constant 0 : i32
    %c0_i32_1 = arith.constant 0 : i32
    %c0_i32_2 = arith.constant 0 : i32
    return %c0_i32, %c0_i32_0, %c0_i32_1 : i32, i32, i32
  }
  func.func @transform_1(%arg0: i32) -> (i32, i32, i32) {
    %c0_i32 = arith.constant 0 : i32
    %c0_i32_0 = arith.constant 0 : i32
    %c0_i32_1 = arith.constant 0 : i32
    %c0_i32_2 = arith.constant 0 : i32
    return %c0_i32, %c0_i32_0, %c0_i32_1 : i32, i32, i32
  }
  func.func @transform_2(%arg0: i32) -> (i32, i32, i32) {
    %c0_i32 = arith.constant 0 : i32
    %c0_i32_0 = arith.constant 0 : i32
    %c0_i32_1 = arith.constant 0 : i32
    %c0_i32_2 = arith.constant 0 : i32
    return %c0_i32, %c0_i32_0, %c0_i32_1 : i32, i32, i32
  }
  func.func @transform_3(%arg0: i32) -> (i32, i32, i32) {
    %c0_i32 = arith.constant 0 : i32
    %c0_i32_0 = arith.constant 0 : i32
    %c0_i32_1 = arith.constant 0 : i32
    %c0_i32_2 = arith.constant 0 : i32
    return %c0_i32, %c0_i32_0, %c0_i32_1 : i32, i32, i32
  }
  func.func @transform_4(%arg0: i32) -> (i32, i32, i32) {
    %c0_i32 = arith.constant 0 : i32
    %c0_i32_0 = arith.constant 0 : i32
    %c0_i32_1 = arith.constant 0 : i32
    %c0_i32_2 = arith.constant 0 : i32
    return %c0_i32, %c0_i32_0, %c0_i32_1 : i32, i32, i32
  }
  func.func @transform_5(%arg0: i32) -> (i32, i32, i32) {
    %c0_i32 = arith.constant 0 : i32
    %c0_i32_0 = arith.constant 0 : i32
    %c0_i32_1 = arith.constant 0 : i32
    %c0_i32_2 = arith.constant 0 : i32
    return %c0_i32, %c0_i32_0, %c0_i32_1 : i32, i32, i32
  }
  func.func @transform_6(%arg0: i32) -> (i32, i32, i32) {
    %c0_i32 = arith.constant 0 : i32
    %c0_i32_0 = arith.constant 0 : i32
    %c0_i32_1 = arith.constant 0 : i32
    %c0_i32_2 = arith.constant 0 : i32
    return %c0_i32, %c0_i32_0, %c0_i32_1 : i32, i32, i32
  }
  func.func @transform_7(%arg0: i32) -> (i32, i32, i32) {
    %c0_i32 = arith.constant 0 : i32
    %c0_i32_0 = arith.constant 0 : i32
    %c0_i32_1 = arith.constant 0 : i32
    %c0_i32_2 = arith.constant 0 : i32
    return %c0_i32, %c0_i32_0, %c0_i32_1 : i32, i32, i32
  }
  func.func @transform_8(%arg0: i32) -> (i32, i32, i32) {
    %c0_i32 = arith.constant 0 : i32
    %c0_i32_0 = arith.constant 0 : i32
    %c0_i32_1 = arith.constant 0 : i32
    %c0_i32_2 = arith.constant 0 : i32
    return %c0_i32, %c0_i32_0, %c0_i32_1 : i32, i32, i32
  }
  func.func @transform_9(%arg0: i32) -> (i32, i32, i32) {
    %c0_i32 = arith.constant 0 : i32
    %c0_i32_0 = arith.constant 0 : i32
    %c0_i32_1 = arith.constant 0 : i32
    %c0_i32_2 = arith.constant 0 : i32
    return %c0_i32, %c0_i32_0, %c0_i32_1 : i32, i32, i32
  }
  func.func @transform_10(%arg0: i32) -> (i32, i32, i32) {
    %c0_i32 = arith.constant 0 : i32
    %c0_i32_0 = arith.constant 0 : i32
    %c0_i32_1 = arith.constant 0 : i32
    %c0_i32_2 = arith.constant 0 : i32
    return %c0_i32, %c0_i32_0, %c0_i32_1 : i32, i32, i32
  }
  func.func @transform_11(%arg0: i32) -> (i32, i32, i32) {
    %c0_i32 = arith.constant 0 : i32
    %c0_i32_0 = arith.constant 0 : i32
    %c0_i32_1 = arith.constant 0 : i32
    %c0_i32_2 = arith.constant 0 : i32
    return %c0_i32, %c0_i32_0, %c0_i32_1 : i32, i32, i32
  }
  func.func @transform_12(%arg0: i32) -> (i32, i32, i32) {
    %c0_i32 = arith.constant 0 : i32
    %c0_i32_0 = arith.constant 0 : i32
    %c0_i32_1 = arith.constant 0 : i32
    %c0_i32_2 = arith.constant 0 : i32
    return %c0_i32, %c0_i32_0, %c0_i32_1 : i32, i32, i32
  }
  func.func @transform_13(%arg0: i32) -> (i32, i32, i32) {
    %c0_i32 = arith.constant 0 : i32
    %c0_i32_0 = arith.constant 0 : i32
    %c0_i32_1 = arith.constant 0 : i32
    %c0_i32_2 = arith.constant 0 : i32
    return %c0_i32, %c0_i32_0, %c0_i32_1 : i32, i32, i32
  }
  func.func @transform_14(%arg0: i32) -> (i32, i32, i32) {
    %c0_i32 = arith.constant 0 : i32
    %c0_i32_0 = arith.constant 0 : i32
    %c0_i32_1 = arith.constant 0 : i32
    %c0_i32_2 = arith.constant 0 : i32
    return %c0_i32, %c0_i32_0, %c0_i32_1 : i32, i32, i32
  }
  func.func @transform_15(%arg0: i32) -> (i32, i32, i32) {
    %c0_i32 = arith.constant 0 : i32
    %c0_i32_0 = arith.constant 0 : i32
    %c0_i32_1 = arith.constant 0 : i32
    %c0_i32_2 = arith.constant 0 : i32
    return %c0_i32, %c0_i32_0, %c0_i32_1 : i32, i32, i32
  }
  func.func @transform_16(%arg0: i32) -> (i32, i32, i32) {
    %c0_i32 = arith.constant 0 : i32
    %c0_i32_0 = arith.constant 0 : i32
    %c0_i32_1 = arith.constant 0 : i32
    %c0_i32_2 = arith.constant 0 : i32
    return %c0_i32, %c0_i32_0, %c0_i32_1 : i32, i32, i32
  }
  func.func @transform_17(%arg0: i32) -> (i32, i32, i32) {
    %c0_i32 = arith.constant 0 : i32
    %c0_i32_0 = arith.constant 0 : i32
    %c0_i32_1 = arith.constant 0 : i32
    %c0_i32_2 = arith.constant 0 : i32
    return %c0_i32, %c0_i32_0, %c0_i32_1 : i32, i32, i32
  }
  func.func @transform_18(%arg0: i32) -> (i32, i32) {
    %c0_i32 = arith.constant 0 : i32
    %c0_i32_0 = arith.constant 0 : i32
    %c0_i32_1 = arith.constant 0 : i32
    return %c0_i32, %c0_i32_0 : i32, i32
  }
  func.func @transform_19(%arg0: i32) -> (i32, i32) {
    %c0_i32 = arith.constant 0 : i32
    %c0_i32_0 = arith.constant 0 : i32
    %c0_i32_1 = arith.constant 0 : i32
    return %c0_i32, %c0_i32_0 : i32, i32
  }
}

</mosaic_0001>

<llo_original>
// kernel: tpu_custom_call.1
$region0: #{tpu_custom_call.1}
  #allocation0 [shape = 'u32[]', space=smem, size = 0x4, offset = 0x4, fixed_abs, tag = 'smem constant byte address 0x4 - core index']
  #allocation1 [shape = 'u32[72,128]{1,0:T(1,128)}', space=vmem, size = 0x9000, scoped, tag = 'internal scratch']
  %s0 = inlined_call_operand.hbm [shape: f32[2,8,32], index: 0, kind: input, shape index: {}]
  %s1 = inlined_call_operand.vmem [shape: bf16[2,32,32], index: 1, kind: input, shape index: {}]
  %s2 = inlined_call_operand.hbm [shape: bf16[2,32,32], index: 2, kind: input, shape index: {}]
  %s3 = inlined_call_operand.hbm [shape: bf16[2,32,32], index: 3, kind: input, shape index: {}]
  %s4 = inlined_call_operand.vmem [shape: f32[2,1,32], index: 4, kind: input, shape index: {}]
  %s5 = inlined_call_operand.vmem [shape: f32[2,1,32], index: 5, kind: input, shape index: {}]
  %s6 = inlined_call_operand.vmem [shape: f32[2,1,32], index: 6, kind: input, shape index: {}]
  %s7 = inlined_call_operand.vmem [shape: f32[2,32,32], index: 7, kind: input, shape index: {}]
  %s8 = inlined_call_operand.hbm [shape: f32[2,1,32], index: 8, kind: input, shape index: {}]
  %s9 = inlined_call_operand.hbm [shape: f32[2,1,32], index: 9, kind: input, shape index: {}]
  %s10 = inlined_call_operand.vmem [shape: f32[2,1,32], index: 10, kind: input, shape index: {}]
  %s11 = inlined_call_operand.hbm [shape: bf16[2,32,64], index: 11, kind: input, shape index: {}]
  %s12 = inlined_call_operand.vmem [shape: f32[2,1,64], index: 12, kind: input, shape index: {}]
  %s13 = inlined_call_operand.vmem [shape: bf16[2,64,32], index: 13, kind: input, shape index: {}]
  %s14 = inlined_call_operand.vmem [shape: f32[2,1,32], index: 14, kind: input, shape index: {}]
  %s15 = inlined_call_operand.hbm [shape: f32[2,1,32], index: 15, kind: input, shape index: {}]
  %s16 = inlined_call_operand.vmem [shape: f32[2,1,32], index: 16, kind: input, shape index: {}]
  %s17 = inlined_call_operand.hbm [shape: bf16[8,32,128], index: 17, kind: input, shape index: {}]
  %s18 = inlined_call_operand.vmem [shape: f32[1,128], index: 18, kind: input, shape index: {}]
  %s19 = inlined_call_operand.hbm [shape: f32[2,128], index: 19, kind: output, shape index: {}]
  %s20 = sld [smem:[#allocation0]]
  $region118: #{tpu_custom_call.1} parent=0
    _
  %s22 = ssub.s32 1, %s20
  %s23 = scalar_select 0, %s22, %s20
  $region1: #{tpu_custom_call.1} parent=0
    #allocation2 [shape = 'u8[8192]{0}', space=vmem, size = 0x2000, scoped, tag = 'input window, operand 0, single buffered']
    #allocation3 [shape = 's32[1]{0}', space=sflag, size = 0x4, scoped, tag = 'scoped memory for tpu_custom_call.1']
    #allocation4 [shape = 's32[1]{0}', space=sflag, size = 0x4, scoped, tag = 'scoped memory for tpu_custom_call.1']
    #allocation5 [shape = 'u8[16384]{0}', space=vmem, size = 0x4000, scoped, tag = 'input window, operand 2, single buffered']
    #allocation6 [shape = 's32[1]{0}', space=sflag, size = 0x4, scoped, tag = 'scoped memory for tpu_custom_call.1']
    #allocation7 [shape = 'u8[16384]{0}', space=vmem, size = 0x4000, scoped, tag = 'input window, operand 3, single buffered']
    #allocation8 [shape = 'u8[1024]{0}', space=vmem, size = 0x400, scoped, tag = 'input window, operand 8, single buffered']
    #allocation9 [shape = 's32[1]{0}', space=sflag, size = 0x4, scoped, tag = 'scoped memory for tpu_custom_call.1']
    #allocation10 [shape = 'u8[1024]{0}', space=vmem, size = 0x400, scoped, tag = 'input window, operand 9, single buffered']
    #allocation11 [shape = 'u8[16384]{0}', space=vmem, size = 0x4000, scoped, tag = 'input window, operand 11, single buffered']
    #allocation12 [shape = 's32[1]{0}', space=sflag, size = 0x4, scoped, tag = 'scoped memory for tpu_custom_call.1']
    #allocation13 [shape = 'u8[1024]{0}', space=vmem, size = 0x400, scoped, tag = 'input window, operand 15, single buffered']
    #allocation14 [shape = 'u8[65536]{0}', space=vmem, size = 0x10000, scoped, tag = 'input window, operand 17, single buffered']
    #allocation15 [shape = 's32[1]{0}', space=sflag, size = 0x4, scoped, tag = 'scoped memory for tpu_custom_call.1']
    #allocation16 [shape = 'u8[1024]{0}', space=vmem, size = 0x400, scoped, tag = 'output window, operand 0, single buffered']
    %24 = vsyncpa [#allocation3], 0
    %25 = vsyncpa [#allocation6], 0
    %26 = vsyncpa [#allocation9], 0
    %27 = vsyncpa [#allocation12], 0
    %28 = vsyncpa [#allocation15], 0
    %29 = vsyncpa [#allocation4], 0
    // Predicated region
    $region2: #{tpu_custom_call.1} parent=1 // pred_check
      _
    $region3: #{tpu_custom_call.1} parent=1 // pred_check_branch
      %31 = sbr.rel (0) target = $region5
    $region4: #{tpu_custom_call.1} parent=1 // pred_region
      %33 = vsyncadd [#allocation3], 0
      %s34 = sshll.u32 %s0, 4
      %s35 = int_to_ptr.hbm [resolvable:$true] %s34
      %s36 = sshll.u32 [#allocation2], 4
      %s37 = int_to_ptr.vmem [resolvable:$true] %s36
      %42 = dma.hbm_to_vmem [thread:$0]  %s35, 256, %s37, [#allocation3], 128, 128, 8
    $region5: #{tpu_custom_call.1} parent=1 // pred_fallthru
      _
    // Predicated region
    $region6: #{tpu_custom_call.1} parent=1 // pred_check
      _
    $region7: #{tpu_custom_call.1} parent=1 // pred_check_branch
      %44 = sbr.rel (0) target = $region9
    $region8: #{tpu_custom_call.1} parent=1 // pred_region
      _
    $region9: #{tpu_custom_call.1} parent=1 // pred_fallthru
      _
    // Predicated region
    $region10: #{tpu_custom_call.1} parent=1 // pred_check
      _
    $region11: #{tpu_custom_call.1} parent=1 // pred_check_branch
      %46 = sbr.rel (0) target = $region13
    $region12: #{tpu_custom_call.1} parent=1 // pred_region
      %48 = vsyncadd [#allocation6], 0
      %s49 = sshll.u32 %s2, 4
      %s50 = int_to_ptr.hbm [resolvable:$true] %s49
      %s51 = sshll.u32 [#allocation5], 4
      %s52 = int_to_ptr.vmem [resolvable:$true] %s51
      %57 = dma.hbm_to_vmem [thread:$0]  %s50, 512, %s52, [#allocation6], 64, 64, 4
    $region13: #{tpu_custom_call.1} parent=1 // pred_fallthru
      _
    // Predicated region
    $region14: #{tpu_custom_call.1} parent=1 // pred_check
      _
    $region15: #{tpu_custom_call.1} parent=1 // pred_check_branch
      %59 = sbr.rel (0) target = $region17
    $region16: #{tpu_custom_call.1} parent=1 // pred_region
      %61 = vsyncadd [#allocation6], 0
      %s62 = sshll.u32 %s3, 4
      %s63 = int_to_ptr.hbm [resolvable:$true] %s62
      %s64 = sshll.u32 [#allocation7], 4
      %s65 = int_to_ptr.vmem [resolvable:$true] %s64
      %70 = dma.hbm_to_vmem [thread:$0]  %s63, 512, %s65, [#allocation6], 64, 64, 4
    $region17: #{tpu_custom_call.1} parent=1 // pred_fallthru
      _
    // Predicated region
    $region18: #{tpu_custom_call.1} parent=1 // pred_check
      _
    $region19: #{tpu_custom_call.1} parent=1 // pred_check_branch
      %72 = sbr.rel (0) target = $region21
    $region20: #{tpu_custom_call.1} parent=1 // pred_region
      _
    $region21: #{tpu_custom_call.1} parent=1 // pred_fallthru
      _
    // Predicated region
    $region22: #{tpu_custom_call.1} parent=1 // pred_check
      _
    $region23: #{tpu_custom_call.1} parent=1 // pred_check_branch
      %74 = sbr.rel (0) target = $region25
    $region24: #{tpu_custom_call.1} parent=1 // pred_region
      _
    $region25: #{tpu_custom_call.1} parent=1 // pred_fallthru
      _
    // Predicated region
    $region26: #{tpu_custom_call.1} parent=1 // pred_check
      _
    $region27: #{tpu_custom_call.1} parent=1 // pred_check_branch
      %76 = sbr.rel (0) target = $region29
    $region28: #{tpu_custom_call.1} parent=1 // pred_region
      _
    $region29: #{tpu_custom_call.1} parent=1 // pred_fallthru
      _
    // Predicated region
    $region30: #{tpu_custom_call.1} parent=1 // pred_check
      _
    $region31: #{tpu_custom_call.1} parent=1 // pred_check_branch
      %78 = sbr.rel (0) target = $region33
    $region32: #{tpu_custom_call.1} parent=1 // pred_region
      _
    $region33: #{tpu_custom_call.1} parent=1 // pred_fallthru
      _
    // Predicated region
    $region34: #{tpu_custom_call.1} parent=1 // pred_check
      _
    $region35: #{tpu_custom_call.1} parent=1 // pred_check_branch
      %80 = sbr.rel (0) target = $region37
    $region36: #{tpu_custom_call.1} parent=1 // pred_region
      %82 = vsyncadd [#allocation9], 0
      %s83 = sshll.u32 %s8, 4
      %s84 = int_to_ptr.hbm [resolvable:$true] %s83
      %s85 = sshll.u32 [#allocation8], 4
      %s86 = int_to_ptr.vmem [resolvable:$true] %s85
      %91 = dma.hbm_to_vmem [thread:$0]  %s84, 32, %s86, [#allocation9], 16, 16, 1
    $region37: #{tpu_custom_call.1} parent=1 // pred_fallthru
      _
    // Predicated region
    $region38: #{tpu_custom_call.1} parent=1 // pred_check
      _
    $region39: #{tpu_custom_call.1} parent=1 // pred_check_branch
      %93 = sbr.rel (0) target = $region41
    $region40: #{tpu_custom_call.1} parent=1 // pred_region
      %95 = vsyncadd [#allocation9], 0
      %s96 = sshll.u32 %s9, 4
      %s97 = int_to_ptr.hbm [resolvable:$true] %s96
      %s98 = sshll.u32 [#allocation10], 4
      %s99 = int_to_ptr.vmem [resolvable:$true] %s98
      %104 = dma.hbm_to_vmem [thread:$0]  %s97, 32, %s99, [#allocation9], 16, 16, 1
    $region41: #{tpu_custom_call.1} parent=1 // pred_fallthru
      _
    // Predicated region
    $region42: #{tpu_custom_call.1} parent=1 // pred_check
      _
    $region43: #{tpu_custom_call.1} parent=1 // pred_check_branch
      %106 = sbr.rel (0) target = $region45
    $region44: #{tpu_custom_call.1} parent=1 // pred_region
      _
    $region45: #{tpu_custom_call.1} parent=1 // pred_fallthru
      _
    // Predicated region
    $region46: #{tpu_custom_call.1} parent=1 // pred_check
      _
    $region47: #{tpu_custom_call.1} parent=1 // pred_check_branch
      %108 = sbr.rel (0) target = $region49
    $region48: #{tpu_custom_call.1} parent=1 // pred_region
      %110 = vsyncadd [#allocation12], 0
      %s111 = sshll.u32 %s11, 4
      %s112 = int_to_ptr.hbm [resolvable:$true] %s111
      %s113 = sshll.u32 [#allocation11], 4
      %s114 = int_to_ptr.vmem [resolvable:$true] %s113
      %119 = dma.hbm_to_vmem [thread:$0]  %s112, 512, %s114, [#allocation12], 64, 64, 4
    $region49: #{tpu_custom_call.1} parent=1 // pred_fallthru
      _
    // Predicated region
    $region50: #{tpu_custom_call.1} parent=1 // pred_check
      _
    $region51: #{tpu_custom_call.1} parent=1 // pred_check_branch
      %121 = sbr.rel (0) target = $region53
    $region52: #{tpu_custom_call.1} parent=1 // pred_region
      _
    $region53: #{tpu_custom_call.1} parent=1 // pred_fallthru
      _
    // Predicated region
    $region54: #{tpu_custom_call.1} parent=1 // pred_check
      _
    $region55: #{tpu_custom_call.1} parent=1 // pred_check_branch
      %123 = sbr.rel (0) target = $region57
    $region56: #{tpu_custom_call.1} parent=1 // pred_region
      _
    $region57: #{tpu_custom_call.1} parent=1 // pred_fallthru
      _
    // Predicated region
    $region58: #{tpu_custom_call.1} parent=1 // pred_check
      _
    $region59: #{tpu_custom_call.1} parent=1 // pred_check_branch
      %125 = sbr.rel (0) target = $region61
    $region60: #{tpu_custom_call.1} parent=1 // pred_region
      _
    $region61: #{tpu_custom_call.1} parent=1 // pred_fallthru
      _
    // Predicated region
    $region62: #{tpu_custom_call.1} parent=1 // pred_check
      _
    $region63: #{tpu_custom_call.1} parent=1 // pred_check_branch
      %127 = sbr.rel (0) target = $region65
    $region64: #{tpu_custom_call.1} parent=1 // pred_region
      %129 = vsyncadd [#allocation12], 0
      %s130 = sshll.u32 %s15, 4
      %s131 = int_to_ptr.hbm [resolvable:$true] %s130
      %s132 = sshll.u32 [#allocation13], 4
      %s133 = int_to_ptr.vmem [resolvable:$true] %s132
      %138 = dma.hbm_to_vmem [thread:$0]  %s131, 32, %s133, [#allocation12], 16, 16, 1
    $region65: #{tpu_custom_call.1} parent=1 // pred_fallthru
      _
    // Predicated region
    $region66: #{tpu_custom_call.1} parent=1 // pred_check
      _
    $region67: #{tpu_custom_call.1} parent=1 // pred_check_branch
      %140 = sbr.rel (0) target = $region69
    $region68: #{tpu_custom_call.1} parent=1 // pred_region
      _
    $region69: #{tpu_custom_call.1} parent=1 // pred_fallthru
      _
    // Predicated region
    $region70: #{tpu_custom_call.1} parent=1 // pred_check
      _
    $region71: #{tpu_custom_call.1} parent=1 // pred_check_branch
      %142 = sbr.rel (0) target = $region73
    $region72: #{tpu_custom_call.1} parent=1 // pred_region
      %144 = vsyncadd [#allocation15], 0
      %s145 = sshll.u32 %s17, 4
      %s146 = int_to_ptr.hbm [resolvable:$true] %s145
      %s147 = sshll.u32 [#allocation14], 4
      %s148 = int_to_ptr.vmem [resolvable:$true] %s147
      %153 = dma.hbm_to_vmem [thread:$0]  %s146, 2048, %s148, [#allocation15], 64, 64, 4
    $region73: #{tpu_custom_call.1} parent=1 // pred_fallthru
      _
    // Predicated region
    $region74: #{tpu_custom_call.1} parent=1 // pred_check
      _
    $region75: #{tpu_custom_call.1} parent=1 // pred_check_branch
      %155 = sbr.rel (0) target = $region77
    $region76: #{tpu_custom_call.1} parent=1 // pred_region
      _
    $region77: #{tpu_custom_call.1} parent=1 // pred_fallthru
      _
    // Predicated region
    $region78: #{tpu_custom_call.1} parent=1 // pred_check
      _
    $region79: #{tpu_custom_call.1} parent=1 // pred_check_branch
      %157 = sbr.rel (0) target = $region81
    $region80: #{tpu_custom_call.1} parent=1 // pred_region
      %159 = dma.done [#allocation3], 256
    $region81: #{tpu_custom_call.1} parent=1 // pred_fallthru
      _
    // Predicated region
    $region82: #{tpu_custom_call.1} parent=1 // pred_check
      _
    $region83: #{tpu_custom_call.1} parent=1 // pred_check_branch
      %161 = sbr.rel (0) target = $region85
    $region84: #{tpu_custom_call.1} parent=1 // pred_region
      %163 = dma.done [#allocation6], 512
    $region85: #{tpu_custom_call.1} parent=1 // pred_fallthru
      _
    // Predicated region
    $region86: #{tpu_custom_call.1} parent=1 // pred_check
      _
    $region87: #{tpu_custom_call.1} parent=1 // pred_check_branch
      %165 = sbr.rel (0) target = $region89
    $region88: #{tpu_custom_call.1} parent=1 // pred_region
      %167 = dma.done [#allocation6], 512
    $region89: #{tpu_custom_call.1} parent=1 // pred_fallthru
      _
    // Predicated region
    $region90: #{tpu_custom_call.1} parent=1 // pred_check
      _
    $region91: #{tpu_custom_call.1} parent=1 // pred_check_branch
      %169 = sbr.rel (0) target = $region93
    $region92: #{tpu_custom_call.1} parent=1 // pred_region
      %171 = dma.done [#allocation9], 32
    $region93: #{tpu_custom_call.1} parent=1 // pred_fallthru
      _
    // Predicated region
    $region94: #{tpu_custom_call.1} parent=1 // pred_check
      _
    $region95: #{tpu_custom_call.1} parent=1 // pred_check_branch
      %173 = sbr.rel (0) target = $region97
    $region96: #{tpu_custom_call.1} parent=1 // pred_region
      %175 = dma.done [#allocation9], 32
    $region97: #{tpu_custom_call.1} parent=1 // pred_fallthru
      _
    // Predicated region
    $region98: #{tpu_custom_call.1} parent=1 // pred_check
      _
    $region99: #{tpu_custom_call.1} parent=1 // pred_check_branch
      %177 = sbr.rel (0) target = $region101
    $region100: #{tpu_custom_call.1} parent=1 // pred_region
      %179 = dma.done [#allocation12], 512
    $region101: #{tpu_custom_call.1} parent=1 // pred_fallthru
      _
    // Predicated region
    $region102: #{tpu_custom_call.1} parent=1 // pred_check
      _
    $region103: #{tpu_custom_call.1} parent=1 // pred_check_branch
      %181 = sbr.rel (0) target = $region105
    $region104: #{tpu_custom_call.1} parent=1 // pred_region
      %183 = dma.done [#allocation12], 32
    $region105: #{tpu_custom_call.1} parent=1 // pred_fallthru
      _
    // Predicated region
    $region106: #{tpu_custom_call.1} parent=1 // pred_check
      _
    $region107: #{tpu_custom_call.1} parent=1 // pred_check_branch
      %185 = sbr.rel (0) target = $region109
    $region108: #{tpu_custom_call.1} parent=1 // pred_region
      %187 = dma.done [#allocation15], 2048
    $region109: #{tpu_custom_call.1} parent=1 // pred_fallthru
      _
    %v189 = vld [vmem:[#allocation2] sm:$0xff]
    %v190 = vld [vmem:[#allocation2 + $0x8] sm:$0xff]
    %v191 = vpack.c.bf16 %v190, %v189
    %v192 = vld [vmem:[%s1] sm:$0xf]
    %v193 = vld [vmem:[%s1 + $0x4] sm:$0xf]
    %v194 = vld [vmem:[%s1 + $0x8] sm:$0xf]
    %v195 = vld [vmem:[%s1 + $0xc] sm:$0xf]
    %v196 = vld [vmem:[%s4] sm:$0x1]
    %v198 = vperm.slane %v196, 0
    %v204 = vunpack.c.l.b16 %v192
    %v205 = vunpack.c.l.b16 %v193
    %v206 = vunpack.c.l.b16 %v194
    %v207 = vunpack.c.l.b16 %v195
    %v208 = vpack.c.b16 %v205, %v204
    %v209 = vpack.c.b16 %v207, %v206
    %vm212 = vcmask 261120
    %v214 = vsel %vm212, %v191, 0
    %216 = vmatpush.bf16.msra.mxu0 0
    %217 = vmatpush.bf16.msra.mxu0 0
    %218 = vmatpush.bf16.msra.mxu0 0
    %219 = vmatpush.bf16.msra.mxu0 0
    %220 = vmatpush.bf16.msra.mxu0 0
    %221 = vmatpush.bf16.msra.mxu0 0
    %222 = vmatpush.bf16.msra.mxu0 %v209
    %223 = vmatpush.bf16.msra.mxu0 %v208
    %224 = vmatmul.bf16.gmra.mxu0 %v214
    %v225 = vpop.f32.mrf.mxu0
    %v226 = vadd.f32 %v198, %v225
    %v227 = vpop.f32.mrf.mxu0
    %v228 = vadd.f32 %v198, %v227
    %229 = vdwg.mxu0
    %v230 = vld [vmem:[#allocation5] sm:$0xf]
    %v231 = vld [vmem:[#allocation5 + $0x4] sm:$0xf]
    %v232 = vld [vmem:[#allocation5 + $0x8] sm:$0xf]
    %v233 = vld [vmem:[#allocation5 + $0xc] sm:$0xf]
    %v234 = vld [vmem:[%s5] sm:$0x1]
    %v236 = vperm.slane %v234, 0
    %v242 = vunpack.c.l.b16 %v230
    %v243 = vunpack.c.l.b16 %v231
    %v244 = vunpack.c.l.b16 %v232
    %v245 = vunpack.c.l.b16 %v233
    %v246 = vpack.c.b16 %v243, %v242
    %v247 = vpack.c.b16 %v245, %v244
    %250 = vmatpush.bf16.msra.mxu0 0
    %251 = vmatpush.bf16.msra.mxu0 0
    %252 = vmatpush.bf16.msra.mxu0 0
    %253 = vmatpush.bf16.msra.mxu0 0
    %254 = vmatpush.bf16.msra.mxu0 0
    %255 = vmatpush.bf16.msra.mxu0 0
    %256 = vmatpush.bf16.msra.mxu0 %v247
    %257 = vmatpush.bf16.msra.mxu0 %v246
    %258 = vmatmul.bf16.gmra.mxu0 %v214
    %v259 = vpop.f32.mrf.mxu0
    %v260 = vadd.f32 %v236, %v259
    %v261 = vpop.f32.mrf.mxu0
    %v262 = vadd.f32 %v236, %v261
    %263 = vdwg.mxu0
    %v264 = vld [vmem:[#allocation7] sm:$0xf]
    %v265 = vld [vmem:[#allocation7 + $0x4] sm:$0xf]
    %v266 = vld [vmem:[#allocation7 + $0x8] sm:$0xf]
    %v267 = vld [vmem:[#allocation7 + $0xc] sm:$0xf]
    %v268 = vld [vmem:[%s6] sm:$0x1]
    %v270 = vperm.slane %v268, 0
    %v276 = vunpack.c.l.b16 %v264
    %v277 = vunpack.c.l.b16 %v265
    %v278 = vunpack.c.l.b16 %v266
    %v279 = vunpack.c.l.b16 %v267
    %v280 = vpack.c.b16 %v277, %v276
    %v281 = vpack.c.b16 %v279, %v278
    %284 = vmatpush.bf16.msra.mxu0 0
    %285 = vmatpush.bf16.msra.mxu0 0
    %286 = vmatpush.bf16.msra.mxu0 0
    %287 = vmatpush.bf16.msra.mxu0 0
    %288 = vmatpush.bf16.msra.mxu0 0
    %289 = vmatpush.bf16.msra.mxu0 0
    %290 = vmatpush.bf16.msra.mxu0 %v281
    %291 = vmatpush.bf16.msra.mxu0 %v280
    %292 = vmatmul.bf16.gmra.mxu0 %v214
    %v293 = vpop.f32.mrf.mxu0
    %v294 = vadd.f32 %v270, %v293
    %v295 = vpop.f32.mrf.mxu0
    %v296 = vadd.f32 %v270, %v295
    %297 = vdwg.mxu0
    %v298 = vpack.c.bf16 %v226, %v226
    %v299 = vpack.c.bf16 %v228, %v228
    %v300 = vpack.c.bf16 %v260, %v260
    %v301 = vpack.c.bf16 %v262, %v262
    %v302 = vpack.c.bf16 %v294, %v294
    %v303 = vpack.c.bf16 %v296, %v296
    %v304 = vld [vmem:[%s7] sm:$0xff]
    %v305 = vld [vmem:[%s7 + $0x8] sm:$0xff]
    %v306 = vld [vmem:[%s7 + $0x10] sm:$0xff]
    %v307 = vld [vmem:[%s7 + $0x18] sm:$0xff]
    %vm308 = vcmask 64512
    %v310 = vsel %vm308, %v298, 0
    %v313 = vsel %vm308, %v300, 0
    %315 = vmatpush.bf16.xpose.msra.mxu0 0
    %316 = vmatpush.bf16.xpose.msra.mxu0 0
    %317 = vmatpush.bf16.xpose.msra.mxu0 0
    %318 = vmatpush.bf16.xpose.msra.mxu0 0
    %319 = vmatpush.bf16.xpose.msra.mxu0 0
    %320 = vmatpush.bf16.xpose.msra.mxu0 0
    %321 = vmatpush.bf16.xpose.msra.mxu0 0
    %322 = vmatpush.bf16.xpose.msra.mxu0 %v313
    %323 = vmatmul.bf16.gmra.mxu0 %v310
    %v324 = vpop.f32.mrf.mxu0
    %v325 = vadd.f32 0.0, %v324
    %v326 = vpop.f32.mrf.mxu0
    %327 = vdwg.mxu0
    %v329 = vsel %vm308, %v299, 0
    %v332 = vsel %vm308, %v301, 0
    %334 = vmatpush.bf16.xpose.msra.mxu0 0
    %335 = vmatpush.bf16.xpose.msra.mxu0 0
    %336 = vmatpush.bf16.xpose.msra.mxu0 0
    %337 = vmatpush.bf16.xpose.msra.mxu0 0
    %338 = vmatpush.bf16.xpose.msra.mxu0 0
    %339 = vmatpush.bf16.xpose.msra.mxu0 0
    %340 = vmatpush.bf16.xpose.msra.mxu0 0
    %341 = vmatpush.bf16.xpose.msra.mxu0 %v332
    %342 = vmatmul.bf16.gmra.mxu0 %v329
    %v343 = vpop.f32.mrf.mxu0
    %v344 = vadd.f32 0.0, %v343
    %v345 = vpop.f32.mrf.mxu0
    %346 = vdwg.mxu0
    %v347 = vmul.f32 %v325, 0.35355338
    %v348 = vmul.f32 %v344, 0.35355338
    %v349 = vsel %vm308, %v347, -inf
    %350 = vmax.xlane.f32.xlu0 %v349
    %v351 = vpop.xlane.xlu0 %350
    %v352 = vsel %vm308, %v348, -inf
    %353 = vmax.xlane.f32.xlu0 %v352
    %v354 = vpop.xlane.xlu0 %353
    %v355 = vsub.f32 %v347, %v351
    %v356 = vsub.f32 %v348, %v354
    %v357 = vmul.f32 %v355, 1.442695
    %v358 = vpow.pop %v357
    %v359 = vmul.f32 %v356, 1.442695
    %v360 = vpow.pop %v359
    %v361 = vsel %vm308, %v358, 0.0
    %362 = vadd.xlane.f32.xlu0 %v361
    %v363 = vpop.xlane.xlu0 %362
    %v364 = vsel %vm308, %v360, 0.0
    %365 = vadd.xlane.f32.xlu0 %v364
    %v366 = vpop.xlane.xlu0 %365
    %v367 = vrcp.pop %v363
    %v368 = vrcp.pop %v366
    %v369 = vmul.f32 %v358, %v367
    %v370 = vmul.f32 %v360, %v368
    %v371 = vpack.c.bf16 %v369, %v369
    %v372 = vpack.c.bf16 %v370, %v370
    %v374 = vsel %vm308, %v371, 0
    %vm376 = vcmask 1043456
    %v378 = vsel %vm376, %v302, 0
    %380 = vmatpush.bf16.msra.mxu0 0
    %381 = vmatpush.bf16.msra.mxu0 0
    %382 = vmatpush.bf16.msra.mxu0 0
    %383 = vmatpush.bf16.msra.mxu0 0
    %384 = vmatpush.bf16.msra.mxu0 0
    %385 = vmatpush.bf16.msra.mxu0 0
    %386 = vmatpush.bf16.msra.mxu0 0
    %387 = vmatpush.bf16.msra.mxu0 %v378
    %388 = vmatmul.bf16.gmra.mxu0 %v374
    %v389 = vpop.f32.mrf.mxu0
    %v390 = vadd.f32 0.0, %v389
    %v391 = vpop.f32.mrf.mxu0
    %392 = vdwg.mxu0
    %v394 = vsel %vm308, %v372, 0
    %v397 = vsel %vm376, %v303, 0
    %399 = vmatpush.bf16.msra.mxu0 0
    %400 = vmatpush.bf16.msra.mxu0 0
    %401 = vmatpush.bf16.msra.mxu0 0
    %402 = vmatpush.bf16.msra.mxu0 0
    %403 = vmatpush.bf16.msra.mxu0 0
    %404 = vmatpush.bf16.msra.mxu0 0
    %405 = vmatpush.bf16.msra.mxu0 0
    %406 = vmatpush.bf16.msra.mxu0 %v397
    %407 = vmatmul.bf16.gmra.mxu0 %v394
    %v408 = vpop.f32.mrf.mxu0
    %v409 = vadd.f32 0.0, %v408
    %v410 = vpop.f32.mrf.mxu0
    %411 = vdwg.mxu0
    %v412 = vpack.c.bf16 %v409, %v390
    %v413 = vpack.c.bf16 %v304, %v304
    %v415 = vunpack.c.l.b16 %v298
    %v416 = vpack.c.b16 %v415, %v415
    %417 = vrot.lane.b32.xlu0 %v416, 120
    %v418 = vpop.permute.xlu0 %417
    %v420 = vunpack.c.l.b16 %v300
    %v421 = vpack.c.b16 %v420, %v420
    %422 = vrot.lane.b32.xlu0 %v421, 120
    %v423 = vpop.permute.xlu0 %422
    %v425 = vsel %vm308, %v418, 0
    %v428 = vsel %vm308, %v423, 0
    %430 = vmatpush.bf16.xpose.msra.mxu0 0
    %431 = vmatpush.bf16.xpose.msra.mxu0 0
    %432 = vmatpush.bf16.xpose.msra.mxu0 0
    %433 = vmatpush.bf16.xpose.msra.mxu0 0
    %434 = vmatpush.bf16.xpose.msra.mxu0 0
    %435 = vmatpush.bf16.xpose.msra.mxu0 0
    %436 = vmatpush.bf16.xpose.msra.mxu0 0
    %437 = vmatpush.bf16.xpose.msra.mxu0 %v428
    %438 = vmatmul.bf16.gmra.mxu0 %v425
    %v439 = vpop.f32.mrf.mxu0
    %v440 = vadd.f32 0.0, %v439
    %v441 = vpop.f32.mrf.mxu0
    %442 = vdwg.mxu0
    %v444 = vunpack.c.l.b16 %v299
    %v445 = vpack.c.b16 %v444, %v444
    %446 = vrot.lane.b32.xlu0 %v445, 120
    %v447 = vpop.permute.xlu0 %446
    %v449 = vunpack.c.l.b16 %v301
    %v450 = vpack.c.b16 %v449, %v449
    %451 = vrot.lane.b32.xlu0 %v450, 120
    %v452 = vpop.permute.xlu0 %451
    %v454 = vsel %vm308, %v447, 0
    %v457 = vsel %vm308, %v452, 0
    %459 = vmatpush.bf16.xpose.msra.mxu0 0
    %460 = vmatpush.bf16.xpose.msra.mxu0 0
    %461 = vmatpush.bf16.xpose.msra.mxu0 0
    %462 = vmatpush.bf16.xpose.msra.mxu0 0
    %463 = vmatpush.bf16.xpose.msra.mxu0 0
    %464 = vmatpush.bf16.xpose.msra.mxu0 0
    %465 = vmatpush.bf16.xpose.msra.mxu0 0
    %466 = vmatpush.bf16.xpose.msra.mxu0 %v457
    %467 = vmatmul.bf16.gmra.mxu0 %v454
    %v468 = vpop.f32.mrf.mxu0
    %v469 = vadd.f32 0.0, %v468
    %v470 = vpop.f32.mrf.mxu0
    %471 = vdwg.mxu0
    %v472 = vmul.f32 %v440, 0.35355338
    %v473 = vmul.f32 %v469, 0.35355338
    %v474 = vsel %vm308, %v472, -inf
    %475 = vmax.xlane.f32.xlu0 %v474
    %v476 = vpop.xlane.xlu0 %475
    %v477 = vsel %vm308, %v473, -inf
    %478 = vmax.xlane.f32.xlu0 %v477
    %v479 = vpop.xlane.xlu0 %478
    %v480 = vsub.f32 %v472, %v476
    %v481 = vsub.f32 %v473, %v479
    %v482 = vmul.f32 %v480, 1.442695
    %v483 = vpow.pop %v482
    %v484 = vmul.f32 %v481, 1.442695
    %v485 = vpow.pop %v484
    %v486 = vsel %vm308, %v483, 0.0
    %487 = vadd.xlane.f32.xlu0 %v486
    %v488 = vpop.xlane.xlu0 %487
    %v489 = vsel %vm308, %v485, 0.0
    %490 = vadd.xlane.f32.xlu0 %v489
    %v491 = vpop.xlane.xlu0 %490
    %v492 = vrcp.pop %v488
    %v493 = vrcp.pop %v491
    %v494 = vmul.f32 %v483, %v492
    %v495 = vmul.f32 %v485, %v493
    %v496 = vpack.c.bf16 %v494, %v494
    %v497 = vpack.c.bf16 %v495, %v495
    %v499 = vunpack.c.l.b16 %v302
    %v500 = vpack.c.b16 %v499, %v499
    %501 = vrot.lane.b32.xlu0 %v500, 120
    %v502 = vpop.permute.xlu0 %501
    %v504 = vsel %vm308, %v496, 0
    %v507 = vsel %vm376, %v502, 0
    %509 = vmatpush.bf16.msra.mxu0 0
    %510 = vmatpush.bf16.msra.mxu0 0
    %511 = vmatpush.bf16.msra.mxu0 0
    %512 = vmatpush.bf16.msra.mxu0 0
    %513 = vmatpush.bf16.msra.mxu0 0
    %514 = vmatpush.bf16.msra.mxu0 0
    %515 = vmatpush.bf16.msra.mxu0 0
    %516 = vmatpush.bf16.msra.mxu0 %v507
    %517 = vmatmul.bf16.gmra.mxu0 %v504
    %v518 = vpop.f32.mrf.mxu0
    %v519 = vadd.f32 0.0, %v518
    %v520 = vpop.f32.mrf.mxu0
    %521 = vdwg.mxu0
    %v523 = vunpack.c.l.b16 %v303
    %v524 = vpack.c.b16 %v523, %v523
    %525 = vrot.lane.b32.xlu0 %v524, 120
    %v526 = vpop.permute.xlu0 %525
    %v528 = vsel %vm308, %v497, 0
    %v531 = vsel %vm376, %v526, 0
    %533 = vmatpush.bf16.msra.mxu0 0
    %534 = vmatpush.bf16.msra.mxu0 0
    %535 = vmatpush.bf16.msra.mxu0 0
    %536 = vmatpush.bf16.msra.mxu0 0
    %537 = vmatpush.bf16.msra.mxu0 0
    %538 = vmatpush.bf16.msra.mxu0 0
    %539 = vmatpush.bf16.msra.mxu0 0
    %540 = vmatpush.bf16.msra.mxu0 %v531
    %541 = vmatmul.bf16.gmra.mxu0 %v528
    %v542 = vpop.f32.mrf.mxu0
    %v543 = vadd.f32 0.0, %v542
    %v544 = vpop.f32.mrf.mxu0
    %545 = vdwg.mxu0
    %v546 = vpack.c.bf16 %v543, %v519
    %v547 = vpack.c.bf16 %v305, %v305
    %v549 = vsel %vm308, %v546, 0
    %v552 = vsel %vm376, %v547, 0
    %554 = vmatpush.bf16.msra.mxu0 0
    %555 = vmatpush.bf16.msra.mxu0 0
    %556 = vmatpush.bf16.msra.mxu0 0
    %557 = vmatpush.bf16.msra.mxu0 0
    %558 = vmatpush.bf16.msra.mxu0 0
    %559 = vmatpush.bf16.msra.mxu0 0
    %560 = vmatpush.bf16.msra.mxu0 0
    %561 = vmatpush.bf16.msra.mxu0 %v552
    %562 = vmatmul.bf16.gmra.mxu0 %v549
    %v563 = vpop.f32.mrf.mxu0
    %v564 = vadd.f32 0.0, %v563
    %v565 = vpop.f32.mrf.mxu0
    %v566 = vadd.f32 0.0, %v565
    %567 = vdwg.mxu0
    %v569 = vsel %vm308, %v412, 0
    %v572 = vsel %vm376, %v413, 0
    %574 = vmatpush.bf16.msra.mxu0 0
    %575 = vmatpush.bf16.msra.mxu0 0
    %576 = vmatpush.bf16.msra.mxu0 0
    %577 = vmatpush.bf16.msra.mxu0 0
    %578 = vmatpush.bf16.msra.mxu0 0
    %579 = vmatpush.bf16.msra.mxu0 0
    %580 = vmatpush.bf16.msra.mxu0 0
    %581 = vmatpush.bf16.msra.mxu0 %v572
    %582 = vmatmul.bf16.gmra.mxu0 %v569
    %v583 = vpop.f32.mrf.mxu0
    %v584 = vadd.f32 %v564, %v583
    %v585 = vpop.f32.mrf.mxu0
    %v586 = vadd.f32 %v566, %v585
    %587 = vdwg.mxu0
    %588 = vrot.lane.b32.xlu0 %v416, 112
    %v589 = vpop.permute.xlu0 %588
    %590 = vrot.lane.b32.xlu0 %v421, 112
    %v591 = vpop.permute.xlu0 %590
    %v593 = vsel %vm308, %v589, 0
    %v596 = vsel %vm308, %v591, 0
    %598 = vmatpush.bf16.xpose.msra.mxu0 0
    %599 = vmatpush.bf16.xpose.msra.mxu0 0
    %600 = vmatpush.bf16.xpose.msra.mxu0 0
    %601 = vmatpush.bf16.xpose.msra.mxu0 0
    %602 = vmatpush.bf16.xpose.msra.mxu0 0
    %603 = vmatpush.bf16.xpose.msra.mxu0 0
    %604 = vmatpush.bf16.xpose.msra.mxu0 0
    %605 = vmatpush.bf16.xpose.msra.mxu0 %v596
    %606 = vmatmul.bf16.gmra.mxu0 %v593
    %v607 = vpop.f32.mrf.mxu0
    %v608 = vadd.f32 0.0, %v607
    %v609 = vpop.f32.mrf.mxu0
    %610 = vdwg.mxu0
    %611 = vrot.lane.b32.xlu0 %v445, 112
    %v612 = vpop.permute.xlu0 %611
    %613 = vrot.lane.b32.xlu0 %v450, 112
    %v614 = vpop.permute.xlu0 %613
    %v616 = vsel %vm308, %v612, 0
    %v619 = vsel %vm308, %v614, 0
    %621 = vmatpush.bf16.xpose.msra.mxu0 0
    %622 = vmatpush.bf16.xpose.msra.mxu0 0
    %623 = vmatpush.bf16.xpose.msra.mxu0 0
    %624 = vmatpush.bf16.xpose.msra.mxu0 0
    %625 = vmatpush.bf16.xpose.msra.mxu0 0
    %626 = vmatpush.bf16.xpose.msra.mxu0 0
    %627 = vmatpush.bf16.xpose.msra.mxu0 0
    %628 = vmatpush.bf16.xpose.msra.mxu0 %v619
    %629 = vmatmul.bf16.gmra.mxu0 %v616
    %v630 = vpop.f32.mrf.mxu0
    %v631 = vadd.f32 0.0, %v630
    %v632 = vpop.f32.mrf.mxu0
    %633 = vdwg.mxu0
    %v634 = vmul.f32 %v608, 0.35355338
    %v635 = vmul.f32 %v631, 0.35355338
    %v636 = vsel %vm308, %v634, -inf
    %637 = vmax.xlane.f32.xlu0 %v636
    %v638 = vpop.xlane.xlu0 %637
    %v639 = vsel %vm308, %v635, -inf
    %640 = vmax.xlane.f32.xlu0 %v639
    %v641 = vpop.xlane.xlu0 %640
    %v642 = vsub.f32 %v634, %v638
    %v643 = vsub.f32 %v635, %v641
    %v644 = vmul.f32 %v642, 1.442695
    %v645 = vpow.pop %v644
    %v646 = vmul.f32 %v643, 1.442695
    %v647 = vpow.pop %v646
    %v648 = vsel %vm308, %v645, 0.0
    %649 = vadd.xlane.f32.xlu0 %v648
    %v650 = vpop.xlane.xlu0 %649
    %v651 = vsel %vm308, %v647, 0.0
    %652 = vadd.xlane.f32.xlu0 %v651
    %v653 = vpop.xlane.xlu0 %652
    %v654 = vrcp.pop %v650
    %v655 = vrcp.pop %v653
    %v656 = vmul.f32 %v645, %v654
    %v657 = vmul.f32 %v647, %v655
    %v658 = vpack.c.bf16 %v656, %v656
    %v659 = vpack.c.bf16 %v657, %v657
    %660 = vrot.lane.b32.xlu0 %v500, 112
    %v661 = vpop.permute.xlu0 %660
    %v663 = vsel %vm308, %v658, 0
    %v666 = vsel %vm376, %v661, 0
    %668 = vmatpush.bf16.msra.mxu0 0
    %669 = vmatpush.bf16.msra.mxu0 0
    %670 = vmatpush.bf16.msra.mxu0 0
    %671 = vmatpush.bf16.msra.mxu0 0
    %672 = vmatpush.bf16.msra.mxu0 0
    %673 = vmatpush.bf16.msra.mxu0 0
    %674 = vmatpush.bf16.msra.mxu0 0
    %675 = vmatpush.bf16.msra.mxu0 %v666
    %676 = vmatmul.bf16.gmra.mxu0 %v663
    %v677 = vpop.f32.mrf.mxu0
    %v678 = vadd.f32 0.0, %v677
    %v679 = vpop.f32.mrf.mxu0
    %680 = vdwg.mxu0
    %681 = vrot.lane.b32.xlu0 %v524, 112
    %v682 = vpop.permute.xlu0 %681
    %v684 = vsel %vm308, %v659, 0
    %v687 = vsel %vm376, %v682, 0
    %689 = vmatpush.bf16.msra.mxu0 0
    %690 = vmatpush.bf16.msra.mxu0 0
    %691 = vmatpush.bf16.msra.mxu0 0
    %692 = vmatpush.bf16.msra.mxu0 0
    %693 = vmatpush.bf16.msra.mxu0 0
    %694 = vmatpush.bf16.msra.mxu0 0
    %695 = vmatpush.bf16.msra.mxu0 0
    %696 = vmatpush.bf16.msra.mxu0 %v687
    %697 = vmatmul.bf16.gmra.mxu0 %v684
    %v698 = vpop.f32.mrf.mxu0
    %v699 = vadd.f32 0.0, %v698
    %v700 = vpop.f32.mrf.mxu0
    %701 = vdwg.mxu0
    %v702 = vpack.c.bf16 %v699, %v678
    %v703 = vpack.c.bf16 %v306, %v306
    %v705 = vsel %vm308, %v702, 0
    %v708 = vsel %vm376, %v703, 0
    %710 = vmatpush.bf16.msra.mxu0 0
    %711 = vmatpush.bf16.msra.mxu0 0
    %712 = vmatpush.bf16.msra.mxu0 0
    %713 = vmatpush.bf16.msra.mxu0 0
    %714 = vmatpush.bf16.msra.mxu0 0
    %715 = vmatpush.bf16.msra.mxu0 0
    %716 = vmatpush.bf16.msra.mxu0 0
    %717 = vmatpush.bf16.msra.mxu0 %v708
    %718 = vmatmul.bf16.gmra.mxu0 %v705
    %v719 = vpop.f32.mrf.mxu0
    %v720 = vadd.f32 0.0, %v719
    %v721 = vpop.f32.mrf.mxu0
    %v722 = vadd.f32 0.0, %v721
    %723 = vdwg.mxu0
    %v724 = vadd.f32 %v584, %v720
    %v725 = vadd.f32 %v586, %v722
    %726 = vrot.lane.b32.xlu0 %v416, 104
    %v727 = vpop.permute.xlu0 %726
    %728 = vrot.lane.b32.xlu0 %v421, 104
    %v729 = vpop.permute.xlu0 %728
    %v731 = vsel %vm308, %v727, 0
    %v734 = vsel %vm308, %v729, 0
    %736 = vmatpush.bf16.xpose.msra.mxu0 0
    %737 = vmatpush.bf16.xpose.msra.mxu0 0
    %738 = vmatpush.bf16.xpose.msra.mxu0 0
    %739 = vmatpush.bf16.xpose.msra.mxu0 0
    %740 = vmatpush.bf16.xpose.msra.mxu0 0
    %741 = vmatpush.bf16.xpose.msra.mxu0 0
    %742 = vmatpush.bf16.xpose.msra.mxu0 0
    %743 = vmatpush.bf16.xpose.msra.mxu0 %v734
    %744 = vmatmul.bf16.gmra.mxu0 %v731
    %v745 = vpop.f32.mrf.mxu0
    %v746 = vadd.f32 0.0, %v745
    %v747 = vpop.f32.mrf.mxu0
    %748 = vdwg.mxu0
    %749 = vrot.lane.b32.xlu0 %v445, 104
    %v750 = vpop.permute.xlu0 %749
    %751 = vrot.lane.b32.xlu0 %v450, 104
    %v752 = vpop.permute.xlu0 %751
    %v754 = vsel %vm308, %v750, 0
    %v757 = vsel %vm308, %v752, 0
    %759 = vmatpush.bf16.xpose.msra.mxu0 0
    %760 = vmatpush.bf16.xpose.msra.mxu0 0
    %761 = vmatpush.bf16.xpose.msra.mxu0 0
    %762 = vmatpush.bf16.xpose.msra.mxu0 0
    %763 = vmatpush.bf16.xpose.msra.mxu0 0
    %764 = vmatpush.bf16.xpose.msra.mxu0 0
    %765 = vmatpush.bf16.xpose.msra.mxu0 0
    %766 = vmatpush.bf16.xpose.msra.mxu0 %v757
    %767 = vmatmul.bf16.gmra.mxu0 %v754
    %v768 = vpop.f32.mrf.mxu0
    %v769 = vadd.f32 0.0, %v768
    %v770 = vpop.f32.mrf.mxu0
    %771 = vdwg.mxu0
    %v772 = vmul.f32 %v746, 0.35355338
    %v773 = vmul.f32 %v769, 0.35355338
    %v774 = vsel %vm308, %v772, -inf
    %775 = vmax.xlane.f32.xlu0 %v774
    %v776 = vpop.xlane.xlu0 %775
    %v777 = vsel %vm308, %v773, -inf
    %778 = vmax.xlane.f32.xlu0 %v777
    %v779 = vpop.xlane.xlu0 %778
    %v780 = vsub.f32 %v772, %v776
    %v781 = vsub.f32 %v773, %v779
    %v782 = vmul.f32 %v780, 1.442695
    %v783 = vpow.pop %v782
    %v784 = vmul.f32 %v781, 1.442695
    %v785 = vpow.pop %v784
    %v786 = vsel %vm308, %v783, 0.0
    %787 = vadd.xlane.f32.xlu0 %v786
    %v788 = vpop.xlane.xlu0 %787
    %v789 = vsel %vm308, %v785, 0.0
    %790 = vadd.xlane.f32.xlu0 %v789
    %v791 = vpop.xlane.xlu0 %790
    %v792 = vrcp.pop %v788
    %v793 = vrcp.pop %v791
    %v794 = vmul.f32 %v783, %v792
    %v795 = vmul.f32 %v785, %v793
    %v796 = vpack.c.bf16 %v794, %v794
    %v797 = vpack.c.bf16 %v795, %v795
    %798 = vrot.lane.b32.xlu0 %v500, 104
    %v799 = vpop.permute.xlu0 %798
    %v801 = vsel %vm308, %v796, 0
    %v804 = vsel %vm376, %v799, 0
    %806 = vmatpush.bf16.msra.mxu0 0
    %807 = vmatpush.bf16.msra.mxu0 0
    %808 = vmatpush.bf16.msra.mxu0 0
    %809 = vmatpush.bf16.msra.mxu0 0
    %810 = vmatpush.bf16.msra.mxu0 0
    %811 = vmatpush.bf16.msra.mxu0 0
    %812 = vmatpush.bf16.msra.mxu0 0
    %813 = vmatpush.bf16.msra.mxu0 %v804
    %814 = vmatmul.bf16.gmra.mxu0 %v801
    %v815 = vpop.f32.mrf.mxu0
    %v816 = vadd.f32 0.0, %v815
    %v817 = vpop.f32.mrf.mxu0
    %818 = vdwg.mxu0
    %819 = vrot.lane.b32.xlu0 %v524, 104
    %v820 = vpop.permute.xlu0 %819
    %v822 = vsel %vm308, %v797, 0
    %v825 = vsel %vm376, %v820, 0
    %827 = vmatpush.bf16.msra.mxu0 0
    %828 = vmatpush.bf16.msra.mxu0 0
    %829 = vmatpush.bf16.msra.mxu0 0
    %830 = vmatpush.bf16.msra.mxu0 0
    %831 = vmatpush.bf16.msra.mxu0 0
    %832 = vmatpush.bf16.msra.mxu0 0
    %833 = vmatpush.bf16.msra.mxu0 0
    %834 = vmatpush.bf16.msra.mxu0 %v825
    %835 = vmatmul.bf16.gmra.mxu0 %v822
    %v836 = vpop.f32.mrf.mxu0
    %v837 = vadd.f32 0.0, %v836
    %v838 = vpop.f32.mrf.mxu0
    %839 = vdwg.mxu0
    %v840 = vpack.c.bf16 %v837, %v816
    %v841 = vpack.c.bf16 %v307, %v307
    %v843 = vsel %vm308, %v840, 0
    %v846 = vsel %vm376, %v841, 0
    %848 = vmatpush.bf16.msra.mxu0 0
    %849 = vmatpush.bf16.msra.mxu0 0
    %850 = vmatpush.bf16.msra.mxu0 0
    %851 = vmatpush.bf16.msra.mxu0 0
    %852 = vmatpush.bf16.msra.mxu0 0
    %853 = vmatpush.bf16.msra.mxu0 0
    %854 = vmatpush.bf16.msra.mxu0 0
    %855 = vmatpush.bf16.msra.mxu0 %v846
    %856 = vmatmul.bf16.gmra.mxu0 %v843
    %v857 = vpop.f32.mrf.mxu0
    %v858 = vadd.f32 0.0, %v857
    %v859 = vpop.f32.mrf.mxu0
    %v860 = vadd.f32 0.0, %v859
    %861 = vdwg.mxu0
    %v862 = vadd.f32 %v724, %v858
    %v863 = vadd.f32 %v725, %v860
    %v864 = vld [vmem:[#allocation8] sm:$0x1]
    %v866 = vperm.slane %v864, 0
    %v868 = vadd.f32 %v862, %v866
    %v869 = vadd.f32 %v863, %v866
    %v870 = vadd.f32 %v189, %v868
    %v871 = vadd.f32 %v190, %v869
    %v872 = vsel %vm212, %v870, 0.0
    %873 = vadd.xlane.f32.xlu0 %v872
    %v874 = vpop.xlane.xlu0 %873
    %v875 = vsel %vm212, %v871, 0.0
    %876 = vadd.xlane.f32.xlu0 %v875
    %v877 = vpop.xlane.xlu0 %876
    %v878 = vrcp.pop 32.0
    %v879 = vmul.f32 32.0, %v878
    %v880 = vsub.f32 1.0, %v879
    %v881 = vmul.f32 %v878, %v880
    %v882 = vadd.f32 %v878, %v881
    %vm883 = vweird.f32 %v878
    %v884 = vsel %vm883, %v878, %v882
    %v885 = vmul.f32 %v874, %v884
    %v886 = vmul.f32 %v877, %v884
    %v887 = vsub.f32 %v870, %v885
    %v888 = vsub.f32 %v871, %v886
    %v889 = vmul.f32 %v887, %v887
    %v890 = vmul.f32 %v888, %v888
    %v891 = vsel %vm212, %v889, 0.0
    %892 = vadd.xlane.f32.xlu0 %v891
    %v893 = vpop.xlane.xlu0 %892
    %v894 = vsel %vm212, %v890, 0.0
    %895 = vadd.xlane.f32.xlu0 %v894
    %v896 = vpop.xlane.xlu0 %895
    %v897 = vmul.f32 %v893, %v884
    %v898 = vmul.f32 %v896, %v884
    %v899 = vadd.f32 %v897, 1e-05
    %v900 = vadd.f32 %v898, 1e-05
    %v901 = vrsqrt.pop %v899
    %v902 = vmul.f32 %v901, %v899
    %v903 = vmul.f32 %v902, %v901
    %v904 = vmul.f32 0.5, %v903
    %v905 = vsub.f32 1.5, %v904
    %v906 = vmul.f32 %v901, %v905
    %vm907 = vweird.f32 %v899
    %vm908 = vweird.f32 %v901
    %vm909 = vmor %vm907, %vm908
    %v910 = vsel %vm909, %v901, %v906
    %v911 = vrsqrt.pop %v900
    %v912 = vmul.f32 %v911, %v900
    %v913 = vmul.f32 %v912, %v911
    %v914 = vmul.f32 0.5, %v913
    %v915 = vsub.f32 1.5, %v914
    %v916 = vmul.f32 %v911, %v915
    %vm917 = vweird.f32 %v900
    %vm918 = vweird.f32 %v911
    %vm919 = vmor %vm917, %vm918
    %v920 = vsel %vm919, %v911, %v916
    %v921 = vmul.f32 %v887, %v910
    %v922 = vmul.f32 %v888, %v920
    %v923 = vld [vmem:[#allocation10] sm:$0x1]
    %v925 = vperm.slane %v923, 0
    %v927 = vmul.f32 %v921, %v925
    %v928 = vmul.f32 %v922, %v925
    %v929 = vld [vmem:[%s10] sm:$0x1]
    %v931 = vperm.slane %v929, 0
    %v933 = vadd.f32 %v927, %v931
    %v934 = vadd.f32 %v928, %v931
    %v935 = vpack.c.bf16 %v934, %v933
    %v936 = vld [vmem:[#allocation11] sm:$0xf]
    %v937 = vld [vmem:[#allocation11 + $0x4] sm:$0xf]
    %v938 = vld [vmem:[#allocation11 + $0x8] sm:$0xf]
    %v939 = vld [vmem:[#allocation11 + $0xc] sm:$0xf]
    %v940 = vld [vmem:[%s12] sm:$0x1]
    %v942 = vperm.slane %v940, 0
    %v948 = vunpack.c.l.b16 %v936
    %v949 = vunpack.c.l.b16 %v937
    %v950 = vunpack.c.l.b16 %v938
    %v951 = vunpack.c.l.b16 %v939
    %v952 = vpack.c.b16 %v949, %v948
    %v953 = vpack.c.b16 %v951, %v950
    %v957 = vsel %vm212, %v935, 0
    %959 = vmatpush.bf16.msra.mxu0 0
    %960 = vmatpush.bf16.msra.mxu0 0
    %961 = vmatpush.bf16.msra.mxu0 0
    %962 = vmatpush.bf16.msra.mxu0 0
    %963 = vmatpush.bf16.msra.mxu0 0
    %964 = vmatpush.bf16.msra.mxu0 0
    %965 = vmatpush.bf16.msra.mxu0 %v953
    %966 = vmatpush.bf16.msra.mxu0 %v952
    %967 = vmatmul.bf16.gmra.mxu0 %v957
    %v968 = vpop.f32.mrf.mxu0
    %v969 = vadd.f32 %v942, %v968
    %v970 = vpop.f32.mrf.mxu0
    %v971 = vadd.f32 %v942, %v970
    %972 = vdwg.mxu0
    %v973 = vmax.f32 %v969, 0.0
    %v974 = vmax.f32 %v971, 0.0
    %v975 = vpack.c.bf16 %v974, %v973
    %v976 = vld [vmem:[%s13] sm:$0xf]
    %v977 = vld [vmem:[%s13 + $0x4] sm:$0xf]
    %v978 = vld [vmem:[%s13 + $0x8] sm:$0xf]
    %v979 = vld [vmem:[%s13 + $0xc] sm:$0xf]
    %v980 = vld [vmem:[%s13 + $0x10] sm:$0xf]
    %v981 = vld [vmem:[%s13 + $0x14] sm:$0xf]
    %v982 = vld [vmem:[%s13 + $0x18] sm:$0xf]
    %v983 = vld [vmem:[%s13 + $0x1c] sm:$0xf]
    %v984 = vld [vmem:[%s14] sm:$0x1]
    %v986 = vperm.slane %v984, 0
    %v996 = vunpack.c.l.b16 %v976
    %v997 = vunpack.c.l.b16 %v977
    %v998 = vunpack.c.l.b16 %v978
    %v999 = vunpack.c.l.b16 %v979
    %v1000 = vunpack.c.l.b16 %v980
    %v1001 = vunpack.c.l.b16 %v981
    %v1002 = vunpack.c.l.b16 %v982
    %v1003 = vunpack.c.l.b16 %v983
    %v1004 = vpack.c.b16 %v997, %v996
    %v1005 = vpack.c.b16 %v999, %v998
    %v1006 = vpack.c.b16 %v1001, %v1000
    %v1007 = vpack.c.b16 %v1003, %v1002
    %vm1012 = vcmask 523264
    %v1014 = vsel %vm1012, %v975, 0
    %1016 = vmatpush.bf16.msra.mxu0 0
    %1017 = vmatpush.bf16.msra.mxu0 0
    %1018 = vmatpush.bf16.msra.mxu0 0
    %1019 = vmatpush.bf16.msra.mxu0 0
    %1020 = vmatpush.bf16.msra.mxu0 %v1007
    %1021 = vmatpush.bf16.msra.mxu0 %v1006
    %1022 = vmatpush.bf16.msra.mxu0 %v1005
    %1023 = vmatpush.bf16.msra.mxu0 %v1004
    %1024 = vmatmul.bf16.gmra.mxu0 %v1014
    %v1025 = vpop.f32.mrf.mxu0
    %v1026 = vadd.f32 %v986, %v1025
    %v1027 = vpop.f32.mrf.mxu0
    %v1028 = vadd.f32 %v986, %v1027
    %1029 = vdwg.mxu0
    %v1030 = vadd.f32 %v933, %v1026
    %v1031 = vadd.f32 %v934, %v1028
    %v1032 = vsel %vm212, %v1030, 0.0
    %1033 = vadd.xlane.f32.xlu0 %v1032
    %v1034 = vpop.xlane.xlu0 %1033
    %v1035 = vsel %vm212, %v1031, 0.0
    %1036 = vadd.xlane.f32.xlu0 %v1035
    %v1037 = vpop.xlane.xlu0 %1036
    %v1038 = vmul.f32 %v1034, %v884
    %v1039 = vmul.f32 %v1037, %v884
    %v1040 = vsub.f32 %v1030, %v1038
    %v1041 = vsub.f32 %v1031, %v1039
    %v1042 = vmul.f32 %v1040, %v1040
    %v1043 = vmul.f32 %v1041, %v1041
    %v1044 = vsel %vm212, %v1042, 0.0
    %1045 = vadd.xlane.f32.xlu0 %v1044
    %v1046 = vpop.xlane.xlu0 %1045
    %v1047 = vsel %vm212, %v1043, 0.0
    %1048 = vadd.xlane.f32.xlu0 %v1047
    %v1049 = vpop.xlane.xlu0 %1048
    %v1050 = vmul.f32 %v1046, %v884
    %v1051 = vmul.f32 %v1049, %v884
    %v1052 = vadd.f32 %v1050, 1e-05
    %v1053 = vadd.f32 %v1051, 1e-05
    %v1054 = vrsqrt.pop %v1052
    %v1055 = vmul.f32 %v1054, %v1052
    %v1056 = vmul.f32 %v1055, %v1054
    %v1057 = vmul.f32 0.5, %v1056
    %v1058 = vsub.f32 1.5, %v1057
    %v1059 = vmul.f32 %v1054, %v1058
    %vm1060 = vweird.f32 %v1052
    %vm1061 = vweird.f32 %v1054
    %vm1062 = vmor %vm1060, %vm1061
    %v1063 = vsel %vm1062, %v1054, %v1059
    %v1064 = vrsqrt.pop %v1053
    %v1065 = vmul.f32 %v1064, %v1053
    %v1066 = vmul.f32 %v1065, %v1064
    %v1067 = vmul.f32 0.5, %v1066
    %v1068 = vsub.f32 1.5, %v1067
    %v1069 = vmul.f32 %v1064, %v1068
    %vm1070 = vweird.f32 %v1053
    %vm1071 = vweird.f32 %v1064
    %vm1072 = vmor %vm1070, %vm1071
    %v1073 = vsel %vm1072, %v1064, %v1069
    %v1074 = vmul.f32 %v1040, %v1063
    %v1075 = vmul.f32 %v1041, %v1073
    %v1076 = vld [vmem:[#allocation13] sm:$0x1]
    %v1078 = vperm.slane %v1076, 0
    %v1080 = vmul.f32 %v1074, %v1078
    %v1081 = vmul.f32 %v1075, %v1078
    %v1082 = vld [vmem:[%s16] sm:$0x1]
    %v1084 = vperm.slane %v1082, 0
    %v1086 = vadd.f32 %v1080, %v1084
    %v1087 = vadd.f32 %v1081, %v1084
    %v1088 = vpack.c.bf16 %v1087, %v1086
    %s1089 = scalar_lea.vmem %s1, 16
    %v1090 = vld [vmem:[%s1089] sm:$0xf]
    %v1091 = vld [vmem:[%s1089 + $0x4] sm:$0xf]
    %v1092 = vld [vmem:[%s1089 + $0x8] sm:$0xf]
    %v1093 = vld [vmem:[%s1089 + $0xc] sm:$0xf]
    %s1094 = scalar_lea.vmem %s4, 1
    %v1095 = vld [vmem:[%s1094] sm:$0x1]
    %v1097 = vperm.slane %v1095, 0
    %v1103 = vunpack.c.l.b16 %v1090
    %v1104 = vunpack.c.l.b16 %v1091
    %v1105 = vunpack.c.l.b16 %v1092
    %v1106 = vunpack.c.l.b16 %v1093
    %v1107 = vpack.c.b16 %v1104, %v1103
    %v1108 = vpack.c.b16 %v1106, %v1105
    %v1112 = vsel %vm212, %v1088, 0
    %1114 = vmatpush.bf16.msra.mxu0 0
    %1115 = vmatpush.bf16.msra.mxu0 0
    %1116 = vmatpush.bf16.msra.mxu0 0
    %1117 = vmatpush.bf16.msra.mxu0 0
    %1118 = vmatpush.bf16.msra.mxu0 0
    %1119 = vmatpush.bf16.msra.mxu0 0
    %1120 = vmatpush.bf16.msra.mxu0 %v1108
    %1121 = vmatpush.bf16.msra.mxu0 %v1107
    %1122 = vmatmul.bf16.gmra.mxu0 %v1112
    %v1123 = vpop.f32.mrf.mxu0
    %v1124 = vadd.f32 %v1097, %v1123
    %v1125 = vpop.f32.mrf.mxu0
    %v1126 = vadd.f32 %v1097, %v1125
    %1127 = vdwg.mxu0
    %s1128 = scalar_lea.vmem [#allocation5], 16
    %v1129 = vld [vmem:[%s1128] sm:$0xf]
    %v1130 = vld [vmem:[%s1128 + $0x4] sm:$0xf]
    %v1131 = vld [vmem:[%s1128 + $0x8] sm:$0xf]
    %v1132 = vld [vmem:[%s1128 + $0xc] sm:$0xf]
    %s1133 = scalar_lea.vmem %s5, 1
    %v1134 = vld [vmem:[%s1133] sm:$0x1]
    %v1136 = vperm.slane %v1134, 0
    %v1142 = vunpack.c.l.b16 %v1129
    %v1143 = vunpack.c.l.b16 %v1130
    %v1144 = vunpack.c.l.b16 %v1131
    %v1145 = vunpack.c.l.b16 %v1132
    %v1146 = vpack.c.b16 %v1143, %v1142
    %v1147 = vpack.c.b16 %v1145, %v1144
    %1150 = vmatpush.bf16.msra.mxu0 0
    %1151 = vmatpush.bf16.msra.mxu0 0
    %1152 = vmatpush.bf16.msra.mxu0 0
    %1153 = vmatpush.bf16.msra.mxu0 0
    %1154 = vmatpush.bf16.msra.mxu0 0
    %1155 = vmatpush.bf16.msra.mxu0 0
    %1156 = vmatpush.bf16.msra.mxu0 %v1147
    %1157 = vmatpush.bf16.msra.mxu0 %v1146
    %1158 = vmatmul.bf16.gmra.mxu0 %v1112
    %v1159 = vpop.f32.mrf.mxu0
    %v1160 = vadd.f32 %v1136, %v1159
    %v1161 = vpop.f32.mrf.mxu0
    %v1162 = vadd.f32 %v1136, %v1161
    %1163 = vdwg.mxu0
    %s1164 = scalar_lea.vmem [#allocation7], 16
    %v1165 = vld [vmem:[%s1164] sm:$0xf]
    %v1166 = vld [vmem:[%s1164 + $0x4] sm:$0xf]
    %v1167 = vld [vmem:[%s1164 + $0x8] sm:$0xf]
    %v1168 = vld [vmem:[%s1164 + $0xc] sm:$0xf]
    %s1169 = scalar_lea.vmem %s6, 1
    %v1170 = vld [vmem:[%s1169] sm:$0x1]
    %v1172 = vperm.slane %v1170, 0
    %v1178 = vunpack.c.l.b16 %v1165
    %v1179 = vunpack.c.l.b16 %v1166
    %v1180 = vunpack.c.l.b16 %v1167
    %v1181 = vunpack.c.l.b16 %v1168
    %v1182 = vpack.c.b16 %v1179, %v1178
    %v1183 = vpack.c.b16 %v1181, %v1180
    %1186 = vmatpush.bf16.msra.mxu0 0
    %1187 = vmatpush.bf16.msra.mxu0 0
    %1188 = vmatpush.bf16.msra.mxu0 0
    %1189 = vmatpush.bf16.msra.mxu0 0
    %1190 = vmatpush.bf16.msra.mxu0 0
    %1191 = vmatpush.bf16.msra.mxu0 0
    %1192 = vmatpush.bf16.msra.mxu0 %v1183
    %1193 = vmatpush.bf16.msra.mxu0 %v1182
    %1194 = vmatmul.bf16.gmra.mxu0 %v1112
    %v1195 = vpop.f32.mrf.mxu0
    %v1196 = vadd.f32 %v1172, %v1195
    %v1197 = vpop.f32.mrf.mxu0
    %v1198 = vadd.f32 %v1172, %v1197
    %1199 = vdwg.mxu0
    %v1200 = vpack.c.bf16 %v1124, %v1124
    %v1201 = vpack.c.bf16 %v1126, %v1126
    %v1202 = vpack.c.bf16 %v1160, %v1160
    %v1203 = vpack.c.bf16 %v1162, %v1162
    %v1204 = vpack.c.bf16 %v1196, %v1196
    %v1205 = vpack.c.bf16 %v1198, %v1198
    %s1206 = scalar_lea.vmem %s7, 32
    %v1207 = vld [vmem:[%s1206] sm:$0xff]
    %v1208 = vld [vmem:[%s1206 + $0x8] sm:$0xff]
    %v1209 = vld [vmem:[%s1206 + $0x10] sm:$0xff]
    %v1210 = vld [vmem:[%s1206 + $0x18] sm:$0xff]
    %v1212 = vsel %vm308, %v1200, 0
    %v1215 = vsel %vm308, %v1202, 0
    %1217 = vmatpush.bf16.xpose.msra.mxu0 0
    %1218 = vmatpush.bf16.xpose.msra.mxu0 0
    %1219 = vmatpush.bf16.xpose.msra.mxu0 0
    %1220 = vmatpush.bf16.xpose.msra.mxu0 0
    %1221 = vmatpush.bf16.xpose.msra.mxu0 0
    %1222 = vmatpush.bf16.xpose.msra.mxu0 0
    %1223 = vmatpush.bf16.xpose.msra.mxu0 0
    %1224 = vmatpush.bf16.xpose.msra.mxu0 %v1215
    %1225 = vmatmul.bf16.gmra.mxu0 %v1212
    %v1226 = vpop.f32.mrf.mxu0
    %v1227 = vadd.f32 0.0, %v1226
    %v1228 = vpop.f32.mrf.mxu0
    %1229 = vdwg.mxu0
    %v1231 = vsel %vm308, %v1201, 0
    %v1234 = vsel %vm308, %v1203, 0
    %1236 = vmatpush.bf16.xpose.msra.mxu0 0
    %1237 = vmatpush.bf16.xpose.msra.mxu0 0
    %1238 = vmatpush.bf16.xpose.msra.mxu0 0
    %1239 = vmatpush.bf16.xpose.msra.mxu0 0
    %1240 = vmatpush.bf16.xpose.msra.mxu0 0
    %1241 = vmatpush.bf16.xpose.msra.mxu0 0
    %1242 = vmatpush.bf16.xpose.msra.mxu0 0
    %1243 = vmatpush.bf16.xpose.msra.mxu0 %v1234
    %1244 = vmatmul.bf16.gmra.mxu0 %v1231
    %v1245 = vpop.f32.mrf.mxu0
    %v1246 = vadd.f32 0.0, %v1245
    %v1247 = vpop.f32.mrf.mxu0
    %1248 = vdwg.mxu0
    %v1249 = vmul.f32 %v1227, 0.35355338
    %v1250 = vmul.f32 %v1246, 0.35355338
    %v1251 = vsel %vm308, %v1249, -inf
    %1252 = vmax.xlane.f32.xlu0 %v1251
    %v1253 = vpop.xlane.xlu0 %1252
    %v1254 = vsel %vm308, %v1250, -inf
    %1255 = vmax.xlane.f32.xlu0 %v1254
    %v1256 = vpop.xlane.xlu0 %1255
    %v1257 = vsub.f32 %v1249, %v1253
    %v1258 = vsub.f32 %v1250, %v1256
    %v1259 = vmul.f32 %v1257, 1.442695
    %v1260 = vpow.pop %v1259
    %v1261 = vmul.f32 %v1258, 1.442695
    %v1262 = vpow.pop %v1261
    %v1263 = vsel %vm308, %v1260, 0.0
    %1264 = vadd.xlane.f32.xlu0 %v1263
    %v1265 = vpop.xlane.xlu0 %1264
    %v1266 = vsel %vm308, %v1262, 0.0
    %1267 = vadd.xlane.f32.xlu0 %v1266
    %v1268 = vpop.xlane.xlu0 %1267
    %v1269 = vrcp.pop %v1265
    %v1270 = vrcp.pop %v1268
    %v1271 = vmul.f32 %v1260, %v1269
    %v1272 = vmul.f32 %v1262, %v1270
    %v1273 = vpack.c.bf16 %v1271, %v1271
    %v1274 = vpack.c.bf16 %v1272, %v1272
    %v1276 = vsel %vm308, %v1273, 0
    %v1279 = vsel %vm376, %v1204, 0
    %1281 = vmatpush.bf16.msra.mxu0 0
    %1282 = vmatpush.bf16.msra.mxu0 0
    %1283 = vmatpush.bf16.msra.mxu0 0
    %1284 = vmatpush.bf16.msra.mxu0 0
    %1285 = vmatpush.bf16.msra.mxu0 0
    %1286 = vmatpush.bf16.msra.mxu0 0
    %1287 = vmatpush.bf16.msra.mxu0 0
    %1288 = vmatpush.bf16.msra.mxu0 %v1279
    %1289 = vmatmul.bf16.gmra.mxu0 %v1276
    %v1290 = vpop.f32.mrf.mxu0
    %v1291 = vadd.f32 0.0, %v1290
    %v1292 = vpop.f32.mrf.mxu0
    %1293 = vdwg.mxu0
    %v1295 = vsel %vm308, %v1274, 0
    %v1298 = vsel %vm376, %v1205, 0
    %1300 = vmatpush.bf16.msra.mxu0 0
    %1301 = vmatpush.bf16.msra.mxu0 0
    %1302 = vmatpush.bf16.msra.mxu0 0
    %1303 = vmatpush.bf16.msra.mxu0 0
    %1304 = vmatpush.bf16.msra.mxu0 0
    %1305 = vmatpush.bf16.msra.mxu0 0
    %1306 = vmatpush.bf16.msra.mxu0 0
    %1307 = vmatpush.bf16.msra.mxu0 %v1298
    %1308 = vmatmul.bf16.gmra.mxu0 %v1295
    %v1309 = vpop.f32.mrf.mxu0
    %v1310 = vadd.f32 0.0, %v1309
    %v1311 = vpop.f32.mrf.mxu0
    %1312 = vdwg.mxu0
    %v1313 = vpack.c.bf16 %v1310, %v1291
    %v1314 = vpack.c.bf16 %v1207, %v1207
    %v1316 = vunpack.c.l.b16 %v1200
    %v1317 = vpack.c.b16 %v1316, %v1316
    %1318 = vrot.lane.b32.xlu0 %v1317, 120
    %v1319 = vpop.permute.xlu0 %1318
    %v1321 = vunpack.c.l.b16 %v1202
    %v1322 = vpack.c.b16 %v1321, %v1321
    %1323 = vrot.lane.b32.xlu0 %v1322, 120
    %v1324 = vpop.permute.xlu0 %1323
    %v1326 = vsel %vm308, %v1319, 0
    %v1329 = vsel %vm308, %v1324, 0
    %1331 = vmatpush.bf16.xpose.msra.mxu0 0
    %1332 = vmatpush.bf16.xpose.msra.mxu0 0
    %1333 = vmatpush.bf16.xpose.msra.mxu0 0
    %1334 = vmatpush.bf16.xpose.msra.mxu0 0
    %1335 = vmatpush.bf16.xpose.msra.mxu0 0
    %1336 = vmatpush.bf16.xpose.msra.mxu0 0
    %1337 = vmatpush.bf16.xpose.msra.mxu0 0
    %1338 = vmatpush.bf16.xpose.msra.mxu0 %v1329
    %1339 = vmatmul.bf16.gmra.mxu0 %v1326
    %v1340 = vpop.f32.mrf.mxu0
    %v1341 = vadd.f32 0.0, %v1340
    %v1342 = vpop.f32.mrf.mxu0
    %1343 = vdwg.mxu0
    %v1345 = vunpack.c.l.b16 %v1201
    %v1346 = vpack.c.b16 %v1345, %v1345
    %1347 = vrot.lane.b32.xlu0 %v1346, 120
    %v1348 = vpop.permute.xlu0 %1347
    %v1350 = vunpack.c.l.b16 %v1203
    %v1351 = vpack.c.b16 %v1350, %v1350
    %1352 = vrot.lane.b32.xlu0 %v1351, 120
    %v1353 = vpop.permute.xlu0 %1352
    %v1355 = vsel %vm308, %v1348, 0
    %v1358 = vsel %vm308, %v1353, 0
    %1360 = vmatpush.bf16.xpose.msra.mxu0 0
    %1361 = vmatpush.bf16.xpose.msra.mxu0 0
    %1362 = vmatpush.bf16.xpose.msra.mxu0 0
    %1363 = vmatpush.bf16.xpose.msra.mxu0 0
    %1364 = vmatpush.bf16.xpose.msra.mxu0 0
    %1365 = vmatpush.bf16.xpose.msra.mxu0 0
    %1366 = vmatpush.bf16.xpose.msra.mxu0 0
    %1367 = vmatpush.bf16.xpose.msra.mxu0 %v1358
    %1368 = vmatmul.bf16.gmra.mxu0 %v1355
    %v1369 = vpop.f32.mrf.mxu0
    %v1370 = vadd.f32 0.0, %v1369
    %v1371 = vpop.f32.mrf.mxu0
    %1372 = vdwg.mxu0
    %v1373 = vmul.f32 %v1341, 0.35355338
    %v1374 = vmul.f32 %v1370, 0.35355338
    %v1375 = vsel %vm308, %v1373, -inf
    %1376 = vmax.xlane.f32.xlu0 %v1375
    %v1377 = vpop.xlane.xlu0 %1376
    %v1378 = vsel %vm308, %v1374, -inf
    %1379 = vmax.xlane.f32.xlu0 %v1378
    %v1380 = vpop.xlane.xlu0 %1379
    %v1381 = vsub.f32 %v1373, %v1377
    %v1382 = vsub.f32 %v1374, %v1380
    %v1383 = vmul.f32 %v1381, 1.442695
    %v1384 = vpow.pop %v1383
    %v1385 = vmul.f32 %v1382, 1.442695
    %v1386 = vpow.pop %v1385
    %v1387 = vsel %vm308, %v1384, 0.0
    %1388 = vadd.xlane.f32.xlu0 %v1387
    %v1389 = vpop.xlane.xlu0 %1388
    %v1390 = vsel %vm308, %v1386, 0.0
    %1391 = vadd.xlane.f32.xlu0 %v1390
    %v1392 = vpop.xlane.xlu0 %1391
    %v1393 = vrcp.pop %v1389
    %v1394 = vrcp.pop %v1392
    %v1395 = vmul.f32 %v1384, %v1393
    %v1396 = vmul.f32 %v1386, %v1394
    %v1397 = vpack.c.bf16 %v1395, %v1395
    %v1398 = vpack.c.bf16 %v1396, %v1396
    %v1400 = vunpack.c.l.b16 %v1204
    %v1401 = vpack.c.b16 %v1400, %v1400
    %1402 = vrot.lane.b32.xlu0 %v1401, 120
    %v1403 = vpop.permute.xlu0 %1402
    %v1405 = vsel %vm308, %v1397, 0
    %v1408 = vsel %vm376, %v1403, 0
    %1410 = vmatpush.bf16.msra.mxu0 0
    %1411 = vmatpush.bf16.msra.mxu0 0
    %1412 = vmatpush.bf16.msra.mxu0 0
    %1413 = vmatpush.bf16.msra.mxu0 0
    %1414 = vmatpush.bf16.msra.mxu0 0
    %1415 = vmatpush.bf16.msra.mxu0 0
    %1416 = vmatpush.bf16.msra.mxu0 0
    %1417 = vmatpush.bf16.msra.mxu0 %v1408
    %1418 = vmatmul.bf16.gmra.mxu0 %v1405
    %v1419 = vpop.f32.mrf.mxu0
    %v1420 = vadd.f32 0.0, %v1419
    %v1421 = vpop.f32.mrf.mxu0
    %1422 = vdwg.mxu0
    %v1424 = vunpack.c.l.b16 %v1205
    %v1425 = vpack.c.b16 %v1424, %v1424
    %1426 = vrot.lane.b32.xlu0 %v1425, 120
    %v1427 = vpop.permute.xlu0 %1426
    %v1429 = vsel %vm308, %v1398, 0
    %v1432 = vsel %vm376, %v1427, 0
    %1434 = vmatpush.bf16.msra.mxu0 0
    %1435 = vmatpush.bf16.msra.mxu0 0
    %1436 = vmatpush.bf16.msra.mxu0 0
    %1437 = vmatpush.bf16.msra.mxu0 0
    %1438 = vmatpush.bf16.msra.mxu0 0
    %1439 = vmatpush.bf16.msra.mxu0 0
    %1440 = vmatpush.bf16.msra.mxu0 0
    %1441 = vmatpush.bf16.msra.mxu0 %v1432
    %1442 = vmatmul.bf16.gmra.mxu0 %v1429
    %v1443 = vpop.f32.mrf.mxu0
    %v1444 = vadd.f32 0.0, %v1443
    %v1445 = vpop.f32.mrf.mxu0
    %1446 = vdwg.mxu0
    %v1447 = vpack.c.bf16 %v1444, %v1420
    %v1448 = vpack.c.bf16 %v1208, %v1208
    %v1450 = vsel %vm308, %v1447, 0
    %v1453 = vsel %vm376, %v1448, 0
    %1455 = vmatpush.bf16.msra.mxu0 0
    %1456 = vmatpush.bf16.msra.mxu0 0
    %1457 = vmatpush.bf16.msra.mxu0 0
    %1458 = vmatpush.bf16.msra.mxu0 0
    %1459 = vmatpush.bf16.msra.mxu0 0
    %1460 = vmatpush.bf16.msra.mxu0 0
    %1461 = vmatpush.bf16.msra.mxu0 0
    %1462 = vmatpush.bf16.msra.mxu0 %v1453
    %1463 = vmatmul.bf16.gmra.mxu0 %v1450
    %v1464 = vpop.f32.mrf.mxu0
    %v1465 = vadd.f32 0.0, %v1464
    %v1466 = vpop.f32.mrf.mxu0
    %v1467 = vadd.f32 0.0, %v1466
    %1468 = vdwg.mxu0
    %v1470 = vsel %vm308, %v1313, 0
    %v1473 = vsel %vm376, %v1314, 0
    %1475 = vmatpush.bf16.msra.mxu0 0
    %1476 = vmatpush.bf16.msra.mxu0 0
    %1477 = vmatpush.bf16.msra.mxu0 0
    %1478 = vmatpush.bf16.msra.mxu0 0
    %1479 = vmatpush.bf16.msra.mxu0 0
    %1480 = vmatpush.bf16.msra.mxu0 0
    %1481 = vmatpush.bf16.msra.mxu0 0
    %1482 = vmatpush.bf16.msra.mxu0 %v1473
    %1483 = vmatmul.bf16.gmra.mxu0 %v1470
    %v1484 = vpop.f32.mrf.mxu0
    %v1485 = vadd.f32 %v1465, %v1484
    %v1486 = vpop.f32.mrf.mxu0
    %v1487 = vadd.f32 %v1467, %v1486
    %1488 = vdwg.mxu0
    %1489 = vrot.lane.b32.xlu0 %v1317, 112
    %v1490 = vpop.permute.xlu0 %1489
    %1491 = vrot.lane.b32.xlu0 %v1322, 112
    %v1492 = vpop.permute.xlu0 %1491
    %v1494 = vsel %vm308, %v1490, 0
    %v1497 = vsel %vm308, %v1492, 0
    %1499 = vmatpush.bf16.xpose.msra.mxu0 0
    %1500 = vmatpush.bf16.xpose.msra.mxu0 0
    %1501 = vmatpush.bf16.xpose.msra.mxu0 0
    %1502 = vmatpush.bf16.xpose.msra.mxu0 0
    %1503 = vmatpush.bf16.xpose.msra.mxu0 0
    %1504 = vmatpush.bf16.xpose.msra.mxu0 0
    %1505 = vmatpush.bf16.xpose.msra.mxu0 0
    %1506 = vmatpush.bf16.xpose.msra.mxu0 %v1497
    %1507 = vmatmul.bf16.gmra.mxu0 %v1494
    %v1508 = vpop.f32.mrf.mxu0
    %v1509 = vadd.f32 0.0, %v1508
    %v1510 = vpop.f32.mrf.mxu0
    %1511 = vdwg.mxu0
    %1512 = vrot.lane.b32.xlu0 %v1346, 112
    %v1513 = vpop.permute.xlu0 %1512
    %1514 = vrot.lane.b32.xlu0 %v1351, 112
    %v1515 = vpop.permute.xlu0 %1514
    %v1517 = vsel %vm308, %v1513, 0
    %v1520 = vsel %vm308, %v1515, 0
    %1522 = vmatpush.bf16.xpose.msra.mxu0 0
    %1523 = vmatpush.bf16.xpose.msra.mxu0 0
    %1524 = vmatpush.bf16.xpose.msra.mxu0 0
    %1525 = vmatpush.bf16.xpose.msra.mxu0 0
    %1526 = vmatpush.bf16.xpose.msra.mxu0 0
    %1527 = vmatpush.bf16.xpose.msra.mxu0 0
    %1528 = vmatpush.bf16.xpose.msra.mxu0 0
    %1529 = vmatpush.bf16.xpose.msra.mxu0 %v1520
    %1530 = vmatmul.bf16.gmra.mxu0 %v1517
    %v1531 = vpop.f32.mrf.mxu0
    %v1532 = vadd.f32 0.0, %v1531
    %v1533 = vpop.f32.mrf.mxu0
    %1534 = vdwg.mxu0
    %v1535 = vmul.f32 %v1509, 0.35355338
    %v1536 = vmul.f32 %v1532, 0.35355338
    %v1537 = vsel %vm308, %v1535, -inf
    %1538 = vmax.xlane.f32.xlu0 %v1537
    %v1539 = vpop.xlane.xlu0 %1538
    %v1540 = vsel %vm308, %v1536, -inf
    %1541 = vmax.xlane.f32.xlu0 %v1540
    %v1542 = vpop.xlane.xlu0 %1541
    %v1543 = vsub.f32 %v1535, %v1539
    %v1544 = vsub.f32 %v1536, %v1542
    %v1545 = vmul.f32 %v1543, 1.442695
    %v1546 = vpow.pop %v1545
    %v1547 = vmul.f32 %v1544, 1.442695
    %v1548 = vpow.pop %v1547
    %v1549 = vsel %vm308, %v1546, 0.0
    %1550 = vadd.xlane.f32.xlu0 %v1549
    %v1551 = vpop.xlane.xlu0 %1550
    %v1552 = vsel %vm308, %v1548, 0.0
    %1553 = vadd.xlane.f32.xlu0 %v1552
    %v1554 = vpop.xlane.xlu0 %1553
    %v1555 = vrcp.pop %v1551
    %v1556 = vrcp.pop %v1554
    %v1557 = vmul.f32 %v1546, %v1555
    %v1558 = vmul.f32 %v1548, %v1556
    %v1559 = vpack.c.bf16 %v1557, %v1557
    %v1560 = vpack.c.bf16 %v1558, %v1558
    %1561 = vrot.lane.b32.xlu0 %v1401, 112
    %v1562 = vpop.permute.xlu0 %1561
    %v1564 = vsel %vm308, %v1559, 0
    %v1567 = vsel %vm376, %v1562, 0
    %1569 = vmatpush.bf16.msra.mxu0 0
    %1570 = vmatpush.bf16.msra.mxu0 0
    %1571 = vmatpush.bf16.msra.mxu0 0
    %1572 = vmatpush.bf16.msra.mxu0 0
    %1573 = vmatpush.bf16.msra.mxu0 0
    %1574 = vmatpush.bf16.msra.mxu0 0
    %1575 = vmatpush.bf16.msra.mxu0 0
    %1576 = vmatpush.bf16.msra.mxu0 %v1567
    %1577 = vmatmul.bf16.gmra.mxu0 %v1564
    %v1578 = vpop.f32.mrf.mxu0
    %v1579 = vadd.f32 0.0, %v1578
    %v1580 = vpop.f32.mrf.mxu0
    %1581 = vdwg.mxu0
    %1582 = vrot.lane.b32.xlu0 %v1425, 112
    %v1583 = vpop.permute.xlu0 %1582
    %v1585 = vsel %vm308, %v1560, 0
    %v1588 = vsel %vm376, %v1583, 0
    %1590 = vmatpush.bf16.msra.mxu0 0
    %1591 = vmatpush.bf16.msra.mxu0 0
    %1592 = vmatpush.bf16.msra.mxu0 0
    %1593 = vmatpush.bf16.msra.mxu0 0
    %1594 = vmatpush.bf16.msra.mxu0 0
    %1595 = vmatpush.bf16.msra.mxu0 0
    %1596 = vmatpush.bf16.msra.mxu0 0
    %1597 = vmatpush.bf16.msra.mxu0 %v1588
    %1598 = vmatmul.bf16.gmra.mxu0 %v1585
    %v1599 = vpop.f32.mrf.mxu0
    %v1600 = vadd.f32 0.0, %v1599
    %v1601 = vpop.f32.mrf.mxu0
    %1602 = vdwg.mxu0
    %v1603 = vpack.c.bf16 %v1600, %v1579
    %v1604 = vpack.c.bf16 %v1209, %v1209
    %v1606 = vsel %vm308, %v1603, 0
    %v1609 = vsel %vm376, %v1604, 0
    %1611 = vmatpush.bf16.msra.mxu0 0
    %1612 = vmatpush.bf16.msra.mxu0 0
    %1613 = vmatpush.bf16.msra.mxu0 0
    %1614 = vmatpush.bf16.msra.mxu0 0
    %1615 = vmatpush.bf16.msra.mxu0 0
    %1616 = vmatpush.bf16.msra.mxu0 0
    %1617 = vmatpush.bf16.msra.mxu0 0
    %1618 = vmatpush.bf16.msra.mxu0 %v1609
    %1619 = vmatmul.bf16.gmra.mxu0 %v1606
    %v1620 = vpop.f32.mrf.mxu0
    %v1621 = vadd.f32 0.0, %v1620
    %v1622 = vpop.f32.mrf.mxu0
    %v1623 = vadd.f32 0.0, %v1622
    %1624 = vdwg.mxu0
    %v1625 = vadd.f32 %v1485, %v1621
    %v1626 = vadd.f32 %v1487, %v1623
    %1627 = vrot.lane.b32.xlu0 %v1317, 104
    %v1628 = vpop.permute.xlu0 %1627
    %1629 = vrot.lane.b32.xlu0 %v1322, 104
    %v1630 = vpop.permute.xlu0 %1629
    %v1632 = vsel %vm308, %v1628, 0
    %v1635 = vsel %vm308, %v1630, 0
    %1637 = vmatpush.bf16.xpose.msra.mxu0 0
    %1638 = vmatpush.bf16.xpose.msra.mxu0 0
    %1639 = vmatpush.bf16.xpose.msra.mxu0 0
    %1640 = vmatpush.bf16.xpose.msra.mxu0 0
    %1641 = vmatpush.bf16.xpose.msra.mxu0 0
    %1642 = vmatpush.bf16.xpose.msra.mxu0 0
    %1643 = vmatpush.bf16.xpose.msra.mxu0 0
    %1644 = vmatpush.bf16.xpose.msra.mxu0 %v1635
    %1645 = vmatmul.bf16.gmra.mxu0 %v1632
    %v1646 = vpop.f32.mrf.mxu0
    %v1647 = vadd.f32 0.0, %v1646
    %v1648 = vpop.f32.mrf.mxu0
    %1649 = vdwg.mxu0
    %1650 = vrot.lane.b32.xlu0 %v1346, 104
    %v1651 = vpop.permute.xlu0 %1650
    %1652 = vrot.lane.b32.xlu0 %v1351, 104
    %v1653 = vpop.permute.xlu0 %1652
    %v1655 = vsel %vm308, %v1651, 0
    %v1658 = vsel %vm308, %v1653, 0
    %1660 = vmatpush.bf16.xpose.msra.mxu0 0
    %1661 = vmatpush.bf16.xpose.msra.mxu0 0
    %1662 = vmatpush.bf16.xpose.msra.mxu0 0
    %1663 = vmatpush.bf16.xpose.msra.mxu0 0
    %1664 = vmatpush.bf16.xpose.msra.mxu0 0
    %1665 = vmatpush.bf16.xpose.msra.mxu0 0
    %1666 = vmatpush.bf16.xpose.msra.mxu0 0
    %1667 = vmatpush.bf16.xpose.msra.mxu0 %v1658
    %1668 = vmatmul.bf16.gmra.mxu0 %v1655
    %v1669 = vpop.f32.mrf.mxu0
    %v1670 = vadd.f32 0.0, %v1669
    %v1671 = vpop.f32.mrf.mxu0
    %1672 = vdwg.mxu0
    %v1673 = vmul.f32 %v1647, 0.35355338
    %v1674 = vmul.f32 %v1670, 0.35355338
    %v1675 = vsel %vm308, %v1673, -inf
    %1676 = vmax.xlane.f32.xlu0 %v1675
    %v1677 = vpop.xlane.xlu0 %1676
    %v1678 = vsel %vm308, %v1674, -inf
    %1679 = vmax.xlane.f32.xlu0 %v1678
    %v1680 = vpop.xlane.xlu0 %1679
    %v1681 = vsub.f32 %v1673, %v1677
    %v1682 = vsub.f32 %v1674, %v1680
    %v1683 = vmul.f32 %v1681, 1.442695
    %v1684 = vpow.pop %v1683
    %v1685 = vmul.f32 %v1682, 1.442695
    %v1686 = vpow.pop %v1685
    %v1687 = vsel %vm308, %v1684, 0.0
    %1688 = vadd.xlane.f32.xlu0 %v1687
    %v1689 = vpop.xlane.xlu0 %1688
    %v1690 = vsel %vm308, %v1686, 0.0
    %1691 = vadd.xlane.f32.xlu0 %v1690
    %v1692 = vpop.xlane.xlu0 %1691
    %v1693 = vrcp.pop %v1689
    %v1694 = vrcp.pop %v1692
    %v1695 = vmul.f32 %v1684, %v1693
    %v1696 = vmul.f32 %v1686, %v1694
    %v1697 = vpack.c.bf16 %v1695, %v1695
    %v1698 = vpack.c.bf16 %v1696, %v1696
    %1699 = vrot.lane.b32.xlu0 %v1401, 104
    %v1700 = vpop.permute.xlu0 %1699
    %v1702 = vsel %vm308, %v1697, 0
    %v1705 = vsel %vm376, %v1700, 0
    %1707 = vmatpush.bf16.msra.mxu0 0
    %1708 = vmatpush.bf16.msra.mxu0 0
    %1709 = vmatpush.bf16.msra.mxu0 0
    %1710 = vmatpush.bf16.msra.mxu0 0
    %1711 = vmatpush.bf16.msra.mxu0 0
    %1712 = vmatpush.bf16.msra.mxu0 0
    %1713 = vmatpush.bf16.msra.mxu0 0
    %1714 = vmatpush.bf16.msra.mxu0 %v1705
    %1715 = vmatmul.bf16.gmra.mxu0 %v1702
    %v1716 = vpop.f32.mrf.mxu0
    %v1717 = vadd.f32 0.0, %v1716
    %v1718 = vpop.f32.mrf.mxu0
    %1719 = vdwg.mxu0
    %1720 = vrot.lane.b32.xlu0 %v1425, 104
    %v1721 = vpop.permute.xlu0 %1720
    %v1723 = vsel %vm308, %v1698, 0
    %v1726 = vsel %vm376, %v1721, 0
    %1728 = vmatpush.bf16.msra.mxu0 0
    %1729 = vmatpush.bf16.msra.mxu0 0
    %1730 = vmatpush.bf16.msra.mxu0 0
    %1731 = vmatpush.bf16.msra.mxu0 0
    %1732 = vmatpush.bf16.msra.mxu0 0
    %1733 = vmatpush.bf16.msra.mxu0 0
    %1734 = vmatpush.bf16.msra.mxu0 0
    %1735 = vmatpush.bf16.msra.mxu0 %v1726
    %1736 = vmatmul.bf16.gmra.mxu0 %v1723
    %v1737 = vpop.f32.mrf.mxu0
    %v1738 = vadd.f32 0.0, %v1737
    %v1739 = vpop.f32.mrf.mxu0
    %1740 = vdwg.mxu0
    %v1741 = vpack.c.bf16 %v1738, %v1717
    %v1742 = vpack.c.bf16 %v1210, %v1210
    %v1744 = vsel %vm308, %v1741, 0
    %v1747 = vsel %vm376, %v1742, 0
    %1749 = vmatpush.bf16.msra.mxu0 0
    %1750 = vmatpush.bf16.msra.mxu0 0
    %1751 = vmatpush.bf16.msra.mxu0 0
    %1752 = vmatpush.bf16.msra.mxu0 0
    %1753 = vmatpush.bf16.msra.mxu0 0
    %1754 = vmatpush.bf16.msra.mxu0 0
    %1755 = vmatpush.bf16.msra.mxu0 0
    %1756 = vmatpush.bf16.msra.mxu0 %v1747
    %1757 = vmatmul.bf16.gmra.mxu0 %v1744
    %v1758 = vpop.f32.mrf.mxu0
    %v1759 = vadd.f32 0.0, %v1758
    %v1760 = vpop.f32.mrf.mxu0
    %v1761 = vadd.f32 0.0, %v1760
    %1762 = vdwg.mxu0
    %v1763 = vadd.f32 %v1625, %v1759
    %v1764 = vadd.f32 %v1626, %v1761
    %s1765 = scalar_lea.vmem [#allocation8], 1
    %v1766 = vld [vmem:[%s1765] sm:$0x1]
    %v1768 = vperm.slane %v1766, 0
    %v1770 = vadd.f32 %v1763, %v1768
    %v1771 = vadd.f32 %v1764, %v1768
    %v1772 = vadd.f32 %v1086, %v1770
    %v1773 = vadd.f32 %v1087, %v1771
    %v1774 = vsel %vm212, %v1772, 0.0
    %1775 = vadd.xlane.f32.xlu0 %v1774
    %v1776 = vpop.xlane.xlu0 %1775
    %v1777 = vsel %vm212, %v1773, 0.0
    %1778 = vadd.xlane.f32.xlu0 %v1777
    %v1779 = vpop.xlane.xlu0 %1778
    %v1780 = vmul.f32 %v1776, %v884
    %v1781 = vmul.f32 %v1779, %v884
    %v1782 = vsub.f32 %v1772, %v1780
    %v1783 = vsub.f32 %v1773, %v1781
    %v1784 = vmul.f32 %v1782, %v1782
    %v1785 = vmul.f32 %v1783, %v1783
    %v1786 = vsel %vm212, %v1784, 0.0
    %1787 = vadd.xlane.f32.xlu0 %v1786
    %v1788 = vpop.xlane.xlu0 %1787
    %v1789 = vsel %vm212, %v1785, 0.0
    %1790 = vadd.xlane.f32.xlu0 %v1789
    %v1791 = vpop.xlane.xlu0 %1790
    %v1792 = vmul.f32 %v1788, %v884
    %v1793 = vmul.f32 %v1791, %v884
    %v1794 = vadd.f32 %v1792, 1e-05
    %v1795 = vadd.f32 %v1793, 1e-05
    %v1796 = vrsqrt.pop %v1794
    %v1797 = vmul.f32 %v1796, %v1794
    %v1798 = vmul.f32 %v1797, %v1796
    %v1799 = vmul.f32 0.5, %v1798
    %v1800 = vsub.f32 1.5, %v1799
    %v1801 = vmul.f32 %v1796, %v1800
    %vm1802 = vweird.f32 %v1794
    %vm1803 = vweird.f32 %v1796
    %vm1804 = vmor %vm1802, %vm1803
    %v1805 = vsel %vm1804, %v1796, %v1801
    %v1806 = vrsqrt.pop %v1795
    %v1807 = vmul.f32 %v1806, %v1795
    %v1808 = vmul.f32 %v1807, %v1806
    %v1809 = vmul.f32 0.5, %v1808
    %v1810 = vsub.f32 1.5, %v1809
    %v1811 = vmul.f32 %v1806, %v1810
    %vm1812 = vweird.f32 %v1795
    %vm1813 = vweird.f32 %v1806
    %vm1814 = vmor %vm1812, %vm1813
    %v1815 = vsel %vm1814, %v1806, %v1811
    %v1816 = vmul.f32 %v1782, %v1805
    %v1817 = vmul.f32 %v1783, %v1815
    %s1818 = scalar_lea.vmem [#allocation10], 1
    %v1819 = vld [vmem:[%s1818] sm:$0x1]
    %v1821 = vperm.slane %v1819, 0
    %v1823 = vmul.f32 %v1816, %v1821
    %v1824 = vmul.f32 %v1817, %v1821
    %s1825 = scalar_lea.vmem %s10, 1
    %v1826 = vld [vmem:[%s1825] sm:$0x1]
    %v1828 = vperm.slane %v1826, 0
    %v1830 = vadd.f32 %v1823, %v1828
    %v1831 = vadd.f32 %v1824, %v1828
    %v1832 = vpack.c.bf16 %v1831, %v1830
    %s1833 = scalar_lea.vmem [#allocation11], 16
    %v1834 = vld [vmem:[%s1833] sm:$0xf]
    %v1835 = vld [vmem:[%s1833 + $0x4] sm:$0xf]
    %v1836 = vld [vmem:[%s1833 + $0x8] sm:$0xf]
    %v1837 = vld [vmem:[%s1833 + $0xc] sm:$0xf]
    %s1838 = scalar_lea.vmem %s12, 1
    %v1839 = vld [vmem:[%s1838] sm:$0x1]
    %v1841 = vperm.slane %v1839, 0
    %v1847 = vunpack.c.l.b16 %v1834
    %v1848 = vunpack.c.l.b16 %v1835
    %v1849 = vunpack.c.l.b16 %v1836
    %v1850 = vunpack.c.l.b16 %v1837
    %v1851 = vpack.c.b16 %v1848, %v1847
    %v1852 = vpack.c.b16 %v1850, %v1849
    %v1856 = vsel %vm212, %v1832, 0
    %1858 = vmatpush.bf16.msra.mxu0 0
    %1859 = vmatpush.bf16.msra.mxu0 0
    %1860 = vmatpush.bf16.msra.mxu0 0
    %1861 = vmatpush.bf16.msra.mxu0 0
    %1862 = vmatpush.bf16.msra.mxu0 0
    %1863 = vmatpush.bf16.msra.mxu0 0
    %1864 = vmatpush.bf16.msra.mxu0 %v1852
    %1865 = vmatpush.bf16.msra.mxu0 %v1851
    %1866 = vmatmul.bf16.gmra.mxu0 %v1856
    %v1867 = vpop.f32.mrf.mxu0
    %v1868 = vadd.f32 %v1841, %v1867
    %v1869 = vpop.f32.mrf.mxu0
    %v1870 = vadd.f32 %v1841, %v1869
    %1871 = vdwg.mxu0
    %v1872 = vmax.f32 %v1868, 0.0
    %v1873 = vmax.f32 %v1870, 0.0
    %v1874 = vpack.c.bf16 %v1873, %v1872
    %s1875 = scalar_lea.vmem %s13, 32
    %v1876 = vld [vmem:[%s1875] sm:$0xf]
    %v1877 = vld [vmem:[%s1875 + $0x4] sm:$0xf]
    %v1878 = vld [vmem:[%s1875 + $0x8] sm:$0xf]
    %v1879 = vld [vmem:[%s1875 + $0xc] sm:$0xf]
    %v1880 = vld [vmem:[%s1875 + $0x10] sm:$0xf]
    %v1881 = vld [vmem:[%s1875 + $0x14] sm:$0xf]
    %v1882 = vld [vmem:[%s1875 + $0x18] sm:$0xf]
    %v1883 = vld [vmem:[%s1875 + $0x1c] sm:$0xf]
    %s1884 = scalar_lea.vmem %s14, 1
    %v1885 = vld [vmem:[%s1884] sm:$0x1]
    %v1887 = vperm.slane %v1885, 0
    %v1897 = vunpack.c.l.b16 %v1876
    %v1898 = vunpack.c.l.b16 %v1877
    %v1899 = vunpack.c.l.b16 %v1878
    %v1900 = vunpack.c.l.b16 %v1879
    %v1901 = vunpack.c.l.b16 %v1880
    %v1902 = vunpack.c.l.b16 %v1881
    %v1903 = vunpack.c.l.b16 %v1882
    %v1904 = vunpack.c.l.b16 %v1883
    %v1905 = vpack.c.b16 %v1898, %v1897
    %v1906 = vpack.c.b16 %v1900, %v1899
    %v1907 = vpack.c.b16 %v1902, %v1901
    %v1908 = vpack.c.b16 %v1904, %v1903
    %v1914 = vsel %vm1012, %v1874, 0
    %1916 = vmatpush.bf16.msra.mxu0 0
    %1917 = vmatpush.bf16.msra.mxu0 0
    %1918 = vmatpush.bf16.msra.mxu0 0
    %1919 = vmatpush.bf16.msra.mxu0 0
    %1920 = vmatpush.bf16.msra.mxu0 %v1908
    %1921 = vmatpush.bf16.msra.mxu0 %v1907
    %1922 = vmatpush.bf16.msra.mxu0 %v1906
    %1923 = vmatpush.bf16.msra.mxu0 %v1905
    %1924 = vmatmul.bf16.gmra.mxu0 %v1914
    %v1925 = vpop.f32.mrf.mxu0
    %v1926 = vadd.f32 %v1887, %v1925
    %v1927 = vpop.f32.mrf.mxu0
    %v1928 = vadd.f32 %v1887, %v1927
    %1929 = vdwg.mxu0
    %v1930 = vadd.f32 %v1830, %v1926
    %v1931 = vadd.f32 %v1831, %v1928
    %v1932 = vsel %vm212, %v1930, 0.0
    %1933 = vadd.xlane.f32.xlu0 %v1932
    %v1934 = vpop.xlane.xlu0 %1933
    %v1935 = vsel %vm212, %v1931, 0.0
    %1936 = vadd.xlane.f32.xlu0 %v1935
    %v1937 = vpop.xlane.xlu0 %1936
    %v1938 = vmul.f32 %v1934, %v884
    %v1939 = vmul.f32 %v1937, %v884
    %v1940 = vsub.f32 %v1930, %v1938
    %v1941 = vsub.f32 %v1931, %v1939
    %v1942 = vmul.f32 %v1940, %v1940
    %v1943 = vmul.f32 %v1941, %v1941
    %v1944 = vsel %vm212, %v1942, 0.0
    %1945 = vadd.xlane.f32.xlu0 %v1944
    %v1946 = vpop.xlane.xlu0 %1945
    %v1947 = vsel %vm212, %v1943, 0.0
    %1948 = vadd.xlane.f32.xlu0 %v1947
    %v1949 = vpop.xlane.xlu0 %1948
    %v1950 = vmul.f32 %v1946, %v884
    %v1951 = vmul.f32 %v1949, %v884
    %v1952 = vadd.f32 %v1950, 1e-05
    %v1953 = vadd.f32 %v1951, 1e-05
    %v1954 = vrsqrt.pop %v1952
    %v1955 = vmul.f32 %v1954, %v1952
    %v1956 = vmul.f32 %v1955, %v1954
    %v1957 = vmul.f32 0.5, %v1956
    %v1958 = vsub.f32 1.5, %v1957
    %v1959 = vmul.f32 %v1954, %v1958
    %vm1960 = vweird.f32 %v1952
    %vm1961 = vweird.f32 %v1954
    %vm1962 = vmor %vm1960, %vm1961
    %v1963 = vsel %vm1962, %v1954, %v1959
    %v1964 = vrsqrt.pop %v1953
    %v1965 = vmul.f32 %v1964, %v1953
    %v1966 = vmul.f32 %v1965, %v1964
    %v1967 = vmul.f32 0.5, %v1966
    %v1968 = vsub.f32 1.5, %v1967
    %v1969 = vmul.f32 %v1964, %v1968
    %vm1970 = vweird.f32 %v1953
    %vm1971 = vweird.f32 %v1964
    %vm1972 = vmor %vm1970, %vm1971
    %v1973 = vsel %vm1972, %v1964, %v1969
    %v1974 = vmul.f32 %v1940, %v1963
    %v1975 = vmul.f32 %v1941, %v1973
    %s1976 = scalar_lea.vmem [#allocation13], 1
    %v1977 = vld [vmem:[%s1976] sm:$0x1]
    %v1979 = vperm.slane %v1977, 0
    %v1981 = vmul.f32 %v1974, %v1979
    %v1982 = vmul.f32 %v1975, %v1979
    %s1983 = scalar_lea.vmem %s16, 1
    %v1984 = vld [vmem:[%s1983] sm:$0x1]
    %v1986 = vperm.slane %v1984, 0
    %v1988 = vadd.f32 %v1981, %v1986
    %v1989 = vadd.f32 %v1982, %v1986
    %v1990 = vpack.c.bf16 %v1988, %v1988
    %v1991 = vpack.c.bf16 %v1989, %v1989
    %v1992 = vld [vmem:[#allocation14] sm:$0xf]
    %v1993 = vld [vmem:[#allocation14 + $0x4] sm:$0xf]
    %v1994 = vld [vmem:[#allocation14 + $0x8] sm:$0xf]
    %v1995 = vld [vmem:[#allocation14 + $0xc] sm:$0xf]
    %s1996 = scalar_lea.vmem [#allocation14], 16
    %v1997 = vld [vmem:[%s1996] sm:$0xf]
    %v1998 = vld [vmem:[%s1996 + $0x4] sm:$0xf]
    %v1999 = vld [vmem:[%s1996 + $0x8] sm:$0xf]
    %v2000 = vld [vmem:[%s1996 + $0xc] sm:$0xf]
    %v2003 = vunpack.c.l.b16 %v1990
    %v2004 = vunpack.c.l.b16 %v1991
    %v2005 = vrot.slane %v2003, 1
    %vm2006 = vcmask 1041409
    %v2007 = vsel %vm2006, %v2004, %v2005
    %v2008 = vpack.c.b16 %v2007, %v2007
    %v2013 = vunpack.c.l.b16 %v1997
    %v2014 = vunpack.c.l.b16 %v1998
    %v2015 = vunpack.c.l.b16 %v1999
    %v2016 = vunpack.c.l.b16 %v2000
    %v2017 = vpack.c.b16 %v2014, %v2013
    %v2018 = vpack.c.b16 %v2016, %v2015
    %v2022 = vsel %vm212, %v2008, 0
    %2024 = vmatpush.bf16.msra.mxu0 0
    %2025 = vmatpush.bf16.msra.mxu0 0
    %2026 = vmatpush.bf16.msra.mxu0 0
    %2027 = vmatpush.bf16.msra.mxu0 0
    %2028 = vmatpush.bf16.msra.mxu0 0
    %2029 = vmatpush.bf16.msra.mxu0 0
    %2030 = vmatpush.bf16.msra.mxu0 %v2018
    %2031 = vmatpush.bf16.msra.mxu0 %v2017
    %2032 = vmatmul.bf16.gmra.mxu0 %v2022
    %v2033 = vpop.f32.mrf.mxu0
    %v2034 = vadd.f32 0.0, %v2033
    %v2035 = vpop.f32.mrf.mxu0
    %2036 = vdwg.mxu0
    %v2037 = vrot.slane %v2004, 7
    %v2038 = vsel %vm2006, %v2037, %v2003
    %v2039 = vpack.c.b16 %v2038, %v2038
    %v2044 = vunpack.c.l.b16 %v1992
    %v2045 = vunpack.c.l.b16 %v1993
    %v2046 = vunpack.c.l.b16 %v1994
    %v2047 = vunpack.c.l.b16 %v1995
    %v2048 = vpack.c.b16 %v2045, %v2044
    %v2049 = vpack.c.b16 %v2047, %v2046
    %v2053 = vsel %vm212, %v2039, 0
    %2055 = vmatpush.bf16.msra.mxu0 0
    %2056 = vmatpush.bf16.msra.mxu0 0
    %2057 = vmatpush.bf16.msra.mxu0 0
    %2058 = vmatpush.bf16.msra.mxu0 0
    %2059 = vmatpush.bf16.msra.mxu0 0
    %2060 = vmatpush.bf16.msra.mxu0 0
    %2061 = vmatpush.bf16.msra.mxu0 %v2049
    %2062 = vmatpush.bf16.msra.mxu0 %v2048
    %2063 = vmatmul.bf16.gmra.mxu0 %v2053
    %v2064 = vpop.f32.mrf.mxu0
    %v2065 = vadd.f32 %v2034, %v2064
    %v2066 = vpop.f32.mrf.mxu0
    %2067 = vdwg.mxu0
    %s2068 = scalar_lea.vmem [#allocation14], 32
    %v2069 = vld [vmem:[%s2068] sm:$0xf]
    %v2070 = vld [vmem:[%s2068 + $0x4] sm:$0xf]
    %v2071 = vld [vmem:[%s2068 + $0x8] sm:$0xf]
    %v2072 = vld [vmem:[%s2068 + $0xc] sm:$0xf]
    %v2073 = vrot.slane %v2003, 2
    %v2074 = vrot.slane %v2004, 1
    %v2075 = vsel %vm2006, %v2074, %v2073
    %v2076 = vpack.c.b16 %v2075, %v2075
    %v2081 = vunpack.c.l.b16 %v2069
    %v2082 = vunpack.c.l.b16 %v2070
    %v2083 = vunpack.c.l.b16 %v2071
    %v2084 = vunpack.c.l.b16 %v2072
    %v2085 = vpack.c.b16 %v2082, %v2081
    %v2086 = vpack.c.b16 %v2084, %v2083
    %v2090 = vsel %vm212, %v2076, 0
    %2092 = vmatpush.bf16.msra.mxu0 0
    %2093 = vmatpush.bf16.msra.mxu0 0
    %2094 = vmatpush.bf16.msra.mxu0 0
    %2095 = vmatpush.bf16.msra.mxu0 0
    %2096 = vmatpush.bf16.msra.mxu0 0
    %2097 = vmatpush.bf16.msra.mxu0 0
    %2098 = vmatpush.bf16.msra.mxu0 %v2086
    %2099 = vmatpush.bf16.msra.mxu0 %v2085
    %2100 = vmatmul.bf16.gmra.mxu0 %v2090
    %v2101 = vpop.f32.mrf.mxu0
    %v2102 = vadd.f32 0.0, %v2101
    %v2103 = vpop.f32.mrf.mxu0
    %2104 = vdwg.mxu0
    %v2105 = vadd.f32 %v2065, %v2102
    %s2106 = scalar_lea.vmem [#allocation14], 48
    %v2107 = vld [vmem:[%s2106] sm:$0xf]
    %v2108 = vld [vmem:[%s2106 + $0x4] sm:$0xf]
    %v2109 = vld [vmem:[%s2106 + $0x8] sm:$0xf]
    %v2110 = vld [vmem:[%s2106 + $0xc] sm:$0xf]
    %v2111 = vrot.slane %v2003, 3
    %v2112 = vrot.slane %v2004, 2
    %v2113 = vsel %vm2006, %v2112, %v2111
    %v2114 = vpack.c.b16 %v2113, %v2113
    %v2119 = vunpack.c.l.b16 %v2107
    %v2120 = vunpack.c.l.b16 %v2108
    %v2121 = vunpack.c.l.b16 %v2109
    %v2122 = vunpack.c.l.b16 %v2110
    %v2123 = vpack.c.b16 %v2120, %v2119
    %v2124 = vpack.c.b16 %v2122, %v2121
    %v2128 = vsel %vm212, %v2114, 0
    %2130 = vmatpush.bf16.msra.mxu0 0
    %2131 = vmatpush.bf16.msra.mxu0 0
    %2132 = vmatpush.bf16.msra.mxu0 0
    %2133 = vmatpush.bf16.msra.mxu0 0
    %2134 = vmatpush.bf16.msra.mxu0 0
    %2135 = vmatpush.bf16.msra.mxu0 0
    %2136 = vmatpush.bf16.msra.mxu0 %v2124
    %2137 = vmatpush.bf16.msra.mxu0 %v2123
    %2138 = vmatmul.bf16.gmra.mxu0 %v2128
    %v2139 = vpop.f32.mrf.mxu0
    %v2140 = vadd.f32 0.0, %v2139
    %v2141 = vpop.f32.mrf.mxu0
    %2142 = vdwg.mxu0
    %v2143 = vadd.f32 %v2105, %v2140
    %s2144 = scalar_lea.vmem [#allocation14], 64
    %v2145 = vld [vmem:[%s2144] sm:$0xf]
    %v2146 = vld [vmem:[%s2144 + $0x4] sm:$0xf]
    %v2147 = vld [vmem:[%s2144 + $0x8] sm:$0xf]
    %v2148 = vld [vmem:[%s2144 + $0xc] sm:$0xf]
    %v2149 = vrot.slane %v2003, 4
    %v2150 = vrot.slane %v2004, 3
    %v2151 = vsel %vm2006, %v2150, %v2149
    %v2152 = vpack.c.b16 %v2151, %v2151
    %v2157 = vunpack.c.l.b16 %v2145
    %v2158 = vunpack.c.l.b16 %v2146
    %v2159 = vunpack.c.l.b16 %v2147
    %v2160 = vunpack.c.l.b16 %v2148
    %v2161 = vpack.c.b16 %v2158, %v2157
    %v2162 = vpack.c.b16 %v2160, %v2159
    %v2166 = vsel %vm212, %v2152, 0
    %2168 = vmatpush.bf16.msra.mxu0 0
    %2169 = vmatpush.bf16.msra.mxu0 0
    %2170 = vmatpush.bf16.msra.mxu0 0
    %2171 = vmatpush.bf16.msra.mxu0 0
    %2172 = vmatpush.bf16.msra.mxu0 0
    %2173 = vmatpush.bf16.msra.mxu0 0
    %2174 = vmatpush.bf16.msra.mxu0 %v2162
    %2175 = vmatpush.bf16.msra.mxu0 %v2161
    %2176 = vmatmul.bf16.gmra.mxu0 %v2166
    %v2177 = vpop.f32.mrf.mxu0
    %v2178 = vadd.f32 0.0, %v2177
    %v2179 = vpop.f32.mrf.mxu0
    %2180 = vdwg.mxu0
    %v2181 = vadd.f32 %v2143, %v2178
    %s2182 = scalar_lea.vmem [#allocation14], 80
    %v2183 = vld [vmem:[%s2182] sm:$0xf]
    %v2184 = vld [vmem:[%s2182 + $0x4] sm:$0xf]
    %v2185 = vld [vmem:[%s2182 + $0x8] sm:$0xf]
    %v2186 = vld [vmem:[%s2182 + $0xc] sm:$0xf]
    %v2187 = vrot.slane %v2003, 5
    %v2188 = vrot.slane %v2004, 4
    %v2189 = vsel %vm2006, %v2188, %v2187
    %v2190 = vpack.c.b16 %v2189, %v2189
    %v2195 = vunpack.c.l.b16 %v2183
    %v2196 = vunpack.c.l.b16 %v2184
    %v2197 = vunpack.c.l.b16 %v2185
    %v2198 = vunpack.c.l.b16 %v2186
    %v2199 = vpack.c.b16 %v2196, %v2195
    %v2200 = vpack.c.b16 %v2198, %v2197
    %v2204 = vsel %vm212, %v2190, 0
    %2206 = vmatpush.bf16.msra.mxu0 0
    %2207 = vmatpush.bf16.msra.mxu0 0
    %2208 = vmatpush.bf16.msra.mxu0 0
    %2209 = vmatpush.bf16.msra.mxu0 0
    %2210 = vmatpush.bf16.msra.mxu0 0
    %2211 = vmatpush.bf16.msra.mxu0 0
    %2212 = vmatpush.bf16.msra.mxu0 %v2200
    %2213 = vmatpush.bf16.msra.mxu0 %v2199
    %2214 = vmatmul.bf16.gmra.mxu0 %v2204
    %v2215 = vpop.f32.mrf.mxu0
    %v2216 = vadd.f32 0.0, %v2215
    %v2217 = vpop.f32.mrf.mxu0
    %2218 = vdwg.mxu0
    %v2219 = vadd.f32 %v2181, %v2216
    %s2220 = scalar_lea.vmem [#allocation14], 96
    %v2221 = vld [vmem:[%s2220] sm:$0xf]
    %v2222 = vld [vmem:[%s2220 + $0x4] sm:$0xf]
    %v2223 = vld [vmem:[%s2220 + $0x8] sm:$0xf]
    %v2224 = vld [vmem:[%s2220 + $0xc] sm:$0xf]
    %v2225 = vrot.slane %v2003, 6
    %v2226 = vrot.slane %v2004, 5
    %v2227 = vsel %vm2006, %v2226, %v2225
    %v2228 = vpack.c.b16 %v2227, %v2227
    %v2233 = vunpack.c.l.b16 %v2221
    %v2234 = vunpack.c.l.b16 %v2222
    %v2235 = vunpack.c.l.b16 %v2223
    %v2236 = vunpack.c.l.b16 %v2224
    %v2237 = vpack.c.b16 %v2234, %v2233
    %v2238 = vpack.c.b16 %v2236, %v2235
    %v2242 = vsel %vm212, %v2228, 0
    %2244 = vmatpush.bf16.msra.mxu0 0
    %2245 = vmatpush.bf16.msra.mxu0 0
    %2246 = vmatpush.bf16.msra.mxu0 0
    %2247 = vmatpush.bf16.msra.mxu0 0
    %2248 = vmatpush.bf16.msra.mxu0 0
    %2249 = vmatpush.bf16.msra.mxu0 0
    %2250 = vmatpush.bf16.msra.mxu0 %v2238
    %2251 = vmatpush.bf16.msra.mxu0 %v2237
    %2252 = vmatmul.bf16.gmra.mxu0 %v2242
    %v2253 = vpop.f32.mrf.mxu0
    %v2254 = vadd.f32 0.0, %v2253
    %v2255 = vpop.f32.mrf.mxu0
    %2256 = vdwg.mxu0
    %v2257 = vadd.f32 %v2219, %v2254
    %s2258 = scalar_lea.vmem [#allocation14], 112
    %v2259 = vld [vmem:[%s2258] sm:$0xf]
    %v2260 = vld [vmem:[%s2258 + $0x4] sm:$0xf]
    %v2261 = vld [vmem:[%s2258 + $0x8] sm:$0xf]
    %v2262 = vld [vmem:[%s2258 + $0xc] sm:$0xf]
    %v2263 = vrot.slane %v2003, 7
    %v2264 = vrot.slane %v2004, 6
    %v2265 = vsel %vm2006, %v2264, %v2263
    %v2266 = vpack.c.b16 %v2265, %v2265
    %v2271 = vunpack.c.l.b16 %v2259
    %v2272 = vunpack.c.l.b16 %v2260
    %v2273 = vunpack.c.l.b16 %v2261
    %v2274 = vunpack.c.l.b16 %v2262
    %v2275 = vpack.c.b16 %v2272, %v2271
    %v2276 = vpack.c.b16 %v2274, %v2273
    %v2280 = vsel %vm212, %v2266, 0
    %2282 = vmatpush.bf16.msra.mxu0 0
    %2283 = vmatpush.bf16.msra.mxu0 0
    %2284 = vmatpush.bf16.msra.mxu0 0
    %2285 = vmatpush.bf16.msra.mxu0 0
    %2286 = vmatpush.bf16.msra.mxu0 0
    %2287 = vmatpush.bf16.msra.mxu0 0
    %2288 = vmatpush.bf16.msra.mxu0 %v2276
    %2289 = vmatpush.bf16.msra.mxu0 %v2275
    %2290 = vmatmul.bf16.gmra.mxu0 %v2280
    %v2291 = vpop.f32.mrf.mxu0
    %v2292 = vadd.f32 0.0, %v2291
    %v2293 = vpop.f32.mrf.mxu0
    %2294 = vdwg.mxu0
    %v2295 = vadd.f32 %v2257, %v2292
    %v2296 = vld [vmem:[%s18] sm:$0x1]
    %v2298 = vperm.slane %v2296, 0
    %v2300 = vadd.f32 %v2295, %v2298
    %2301 = vst [vmem:[#allocation16] sm:$0x3] %v2300
    // Predicated region
    $region110: #{tpu_custom_call.1} parent=1 // pred_check
      _
    $region111: #{tpu_custom_call.1} parent=1 // pred_check_branch
      %2303 = sbr.rel (0) target = $region113
    $region112: #{tpu_custom_call.1} parent=1 // pred_region
      %2305 = vsyncadd [#allocation4], 0
      %s2307 = sshll.u32 [#allocation16], 4
      %s2308 = int_to_ptr.vmem [resolvable:$true] %s2307
      %s2309 = sshll.u32 %s19, 4
      %s2310 = int_to_ptr.hbm [resolvable:$true] %s2309
      %2312 = dma.vmem_to_hbm [thread:$0]  %s2308, 32, %s2310, [#allocation4]
    $region113: #{tpu_custom_call.1} parent=1 // pred_fallthru
      _
    // Predicated region
    $region114: #{tpu_custom_call.1} parent=1 // pred_check
      _
    $region115: #{tpu_custom_call.1} parent=1 // pred_check_branch
      %2314 = sbr.rel (0) target = $region117
    $region116: #{tpu_custom_call.1} parent=1 // pred_region
      %2316 = dma.done [#allocation4], 32
    $region117: #{tpu_custom_call.1} parent=1 // pred_fallthru
      _
    %2317 = vsyncpa [#allocation3], 1
    %2318 = vsyncpa [#allocation6], 1
    %2319 = vsyncpa [#allocation9], 1
    %2320 = vsyncpa [#allocation12], 1
    %2321 = vsyncpa [#allocation15], 1
    %2322 = vsyncpa [#allocation4], 1

</llo_original>
